<compile_context>
chip_gen: v6e
topology: v6e:2x2x1
jax: 0.10.0
libtpu: 0.0.40
codegen_flags: <defaults>
</compile_context>

<pallas_src>
import jax
import jax.numpy as jnp
from jax.experimental import pallas as pl
from jax.experimental.pallas import tpu as pltpu

BN_EPS = 1e-5


# ----------------------------- tiling helpers -------------------------------

def _pick_tm(m):
    # Bigger lane tiles amortize the ~0.35us per-grid-step overhead; keep at
    # least 2 tiles when possible (accumulation axis is "arbitrary", so this
    # is pipelining, not megacore, but it still overlaps DMA with compute).
    for tm in (1024, 512, 256):
        if m >= 2 * tm:
            return tm
    return 256


def _pad_cols(a, m_pad):
    m = a.shape[1]
    if m_pad != m:          # only copies when M is not already TM-aligned
        a = jnp.pad(a, ((0, 0), (0, m_pad - m)))
    return a


# ------------------------- fused conv+BN(+res)+ReLU -------------------------

def fused_conv_bn_act(patches_km, w_row, gamma, beta, m_true, *,
                      residual=None, out_dtype=jnp.bfloat16):
    """One pallas_call: (Cout,K)@(K,M) conv GEMM with fused batch stats,
    BatchNorm (training-mode batch stats), optional fused 1x1 residual conv
    (+bias), and ReLU.

    patches_km : (K, M) bf16 im2col patches (K ordered (kh, kw, cin)).
    w_row      : (Cout, K) conv weights.
    residual   : None, or (x_km (Cin, M), wr (Cout, Cin), br (Cout,)).
    Returns (Cout, m_pad) array of `out_dtype`; columns >= M are garbage.
    """
    K, M = patches_km.shape
    Cout = w_row.shape[0]
    tm = _pick_tm(M)
    m_pad = pl.cdiv(M, tm) * tm
    nt = m_pad // tm
    inv_m = 1.0 / float(m_true)

    p_bf = _pad_cols(patches_km.astype(jnp.bfloat16), m_pad)
    w_bf = w_row.astype(jnp.bfloat16)
    g_col = gamma.reshape(Cout, 1).astype(jnp.float32)
    b_col = beta.reshape(Cout, 1).astype(jnp.float32)

    has_res = residual is not None
    if has_res:
        x_km, wr, br = residual
        Cin = x_km.shape[0]
        x_bf = _pad_cols(x_km.astype(jnp.bfloat16), m_pad)
        wr_bf = wr.astype(jnp.bfloat16)
        br_col = br.reshape(Cout, 1).astype(jnp.float32)

    def kernel(*refs):
        if has_res:
            (w_ref, p_ref, g_ref, be_ref, x_ref, wr_ref, br_ref,
             o_ref, y_sc, s_sc, q_sc) = refs
        else:
            (w_ref, p_ref, g_ref, be_ref,
             o_ref, y_sc, s_sc, q_sc) = refs

        i = pl.program_id(0)
        nsteps = pl.num_programs(0)

        @pl.when(i == 0)
        def _():
            s_sc[...] = jnp.zeros_like(s_sc)
            q_sc[...] = jnp.zeros_like(q_sc)

        # conv GEMM for this lane tile; f32 MXU accumulation.
        acc = jnp.dot(w_ref[...], p_ref[...],
                      preferred_element_type=jnp.float32)      # (Cout, tm)
        off = pl.multiple_of(i * tm, tm)
        y_sc[:, pl.ds(off, tm)] = acc                          # stays in VMEM
        # fused per-channel batch statistics (padded lanes are exactly 0:
        # zero patches, no conv bias -> partial sums are exact).
        s_sc[...] += jnp.sum(acc, axis=1, keepdims=True)       # (Cout, 1)
        q_sc[...] += jnp.sum(acc * acc, axis=1, keepdims=True)

        @pl.when(i == nsteps - 1)
        def _():
            mean = s_sc[...] * inv_m
            var = jnp.maximum(q_sc[...] * inv_m - mean * mean, 0.0)
            scale = g_ref[...] * jax.lax.rsqrt(var + BN_EPS)
            shift = be_ref[...] - mean * scale
            out = y_sc[...] * scale + shift                    # BN on f32 y
            if has_res:
                # fused 1x1 residual conv: (Cout,Cin)@(Cin,m_pad) + bias.
                out = out + jnp.dot(wr_ref[...], x_ref[...],
                                    preferred_element_type=jnp.float32) \
                          + br_ref[...]
            o_ref[...] = jnp.maximum(out, 0.0).astype(o_ref.dtype)

    cvec_spec = pl.BlockSpec((Cout, 1), lambda i: (0, 0))
    in_specs = [
        pl.BlockSpec((Cout, K), lambda i: (0, 0)),     # weights: resident
        pl.BlockSpec((K, tm), lambda i: (0, i)),       # patches: streamed
        cvec_spec, cvec_spec,                          # gamma, beta
    ]
    args = [w_bf, p_bf, g_col, b_col]
    if has_res:
        in_specs += [
            pl.BlockSpec((Cin, m_pad), lambda i: (0, 0)),   # x: resident
            pl.BlockSpec((Cout, Cin), lambda i: (0, 0)),    # w3
            cvec_spec,                                      # b3
        ]
        args += [x_bf, wr_bf, br_col]

    return pl.pallas_call(
        kernel,
        out_shape=jax.ShapeDtypeStruct((Cout, m_pad), out_dtype),
        grid=(nt,),
        in_specs=in_specs,
        # Output block index is constant -> output stays VMEM-resident across
        # the whole grid and is written back once (after the finalize step).
        out_specs=pl.BlockSpec((Cout, m_pad), lambda i: (0, 0)),
        scratch_shapes=[
            pltpu.VMEM((Cout, m_pad), jnp.float32),   # resident f32 conv out
            pltpu.VMEM((Cout, 1), jnp.float32),       # sum
            pltpu.VMEM((Cout, 1), jnp.float32),       # sum of squares
        ],
        compiler_params=pltpu.CompilerParams(
            dimension_semantics=("arbitrary",)),      # stats accumulate over M
    )(*args)


# ------------------------------ JAX glue ------------------------------------

def im2col_km(x_cnhw, ksz, pad):
    """Channel-major im2col: (C, N, H, W) -> (K, M), K ordered (kh, kw, cin)."""
    C, N, H, W = x_cnhw.shape
    xp = jnp.pad(x_cnhw, ((0, 0), (0, 0), (pad, pad), (pad, pad)))
    Ho = H + 2 * pad - ksz + 1
    Wo = W + 2 * pad - ksz + 1
    cols = []
    for kh in range(ksz):
        for kw in range(ksz):
            cols.append(xp[:, :, kh:kh + Ho, kw:kw + Wo])
    p = jnp.stack(cols, axis=0)                  # (ksz*ksz, C, N, Ho, Wo)
    return p.reshape(ksz * ksz * C, N * Ho * Wo), Ho, Wo


def _w_row(w_oihw):
    # (Cout, Cin, KH, KW) -> (Cout, KH, KW, Cin) -> (Cout, KH*KW*Cin)
    Cout = w_oihw.shape[0]
    return jnp.transpose(w_oihw, (0, 2, 3, 1)).reshape(Cout, -1)


def mcu_forward(x_nchw, params):
    """Pallas implementation of MCU.forward (use_1x1conv=True, stride=1)."""
    # channel-major, bf16 end-to-end on the activation path
    x_cnhw = jnp.transpose(x_nchw, (1, 0, 2, 3)).astype(jnp.bfloat16)
    Cin, N, H, W = x_cnhw.shape
    Cout = params["w0"].shape[0]
    M = N * H * W

    # Y = relu(bn(conv9x9(X)))  -- conv bias dropped (cancelled by batch mean)
    p0, Ho, Wo = im2col_km(x_cnhw, 9, 4)
    a0 = fused_conv_bn_act(p0, _w_row(params["w0"]),
                           params["g0"], params["be0"], M,
                           out_dtype=jnp.bfloat16)
    a0_cnhw = a0[:, :M].reshape(Cout, N, Ho, Wo)

    # Y = relu(bn1(conv7x7(Y)))
    p1, Ho, Wo = im2col_km(a0_cnhw, 7, 3)
    a1 = fused_conv_bn_act(p1, _w_row(params["w1"]),
                           params["g1"], params["be1"], M,
                           out_dtype=jnp.bfloat16)
    a1_cnhw = a1[:, :M].reshape(Cout, N, Ho, Wo)

    # out = relu(bn2(conv3x3(Y)) + conv1x1(X) + b3)   (residual fused in-kernel)
    p2, Ho, Wo = im2col_km(a1_cnhw, 3, 1)
    out = fused_conv_bn_act(p2, _w_row(params["w2"]),
                            params["g2"], params["be2"], M,
                            residual=(x_cnhw.reshape(Cin, M),
                                      params["w3"].reshape(Cout, Cin),
                                      params["b3"]),
                            out_dtype=jnp.float32)

    out_cnhw = out[:, :M].reshape(Cout, N, Ho, Wo)
    return jnp.transpose(out_cnhw, (1, 0, 2, 3))     # back to NCHW, f32


# ------------------------- pure-JAX reference (NCHW) ------------------------

def _ref_conv(x, w, b, pad, stride=1):
    y = jax.lax.conv_general_dilated(
        x, w, (stride, stride), [(pad, pad), (pad, pad)],
        dimension_numbers=("NCHW", "OIHW", "NCHW"),
        precision=jax.lax.Precision.HIGHEST)
    return y + b[None, :, None, None]


def _ref_bn(y, gamma, beta):
    m = jnp.mean(y, axis=(0, 2, 3), keepdims=True)
    v = jnp.var(y, axis=(0, 2, 3), keepdims=True)
    return (y - m) * jax.lax.rsqrt(v + BN_EPS) * gamma[None, :, None, None] \
        + beta[None, :, None, None]


def mcu_reference(x, p):
    y = jax.nn.relu(_ref_bn(_ref_conv(x, p["w0"], p["b0"], 4), p["g0"], p["be0"]))
    y = jax.nn.relu(_ref_bn(_ref_conv(y, p["w1"], p["b1"], 3), p["g1"], p["be1"]))
    y = _ref_bn(_ref_conv(y, p["w2"], p["b2"], 1), p["g2"], p["be2"])
    xr = _ref_conv(x, p["w3"], p["b3"], 0)
    return jax.nn.relu(y + xr)


# --------------------------------- main --------------------------------------

def init_params(key, cin, cout):
    ks = jax.random.split(key, 12)
    def w(k, shape, scale):
        return (scale * jax.random.normal(k, shape)).astype(jnp.float32)
    return {
        "w0": w(ks[0], (cout, cin, 9, 9), 0.05), "b0": w(ks[1], (cout,), 0.1),
        "w1": w(ks[2], (cout, cout, 7, 7), 0.05), "b1": w(ks[3], (cout,), 0.1),
        "w2": w(ks[4], (cout, cout, 3, 3), 0.1), "b2": w(ks[5], (cout,), 0.1),
        "w3": w(ks[6], (cout, cin, 1, 1), 0.2), "b3": w(ks[7], (cout,), 0.1),
        "g0": 1.0 + 0.1 * jax.random.normal(ks[8], (cout,)).astype(jnp.float32),
        "be0": w(ks[9], (cout,), 0.1),
        "g1": 1.0 + 0.1 * jax.random.normal(ks[10], (cout,)).astype(jnp.float32),
        "be1": w(ks[11], (cout,), 0.1),
        "g2": jnp.ones((cout,), jnp.float32),
        "be2": jnp.zeros((cout,), jnp.float32),
    }


if __name__ == "__main__":
    key = jax.random.PRNGKey(0)
    kx, kp = jax.random.split(key)

    N, Cin, Cout, H, W = 2, 4, 8, 16, 16
    x = jax.random.normal(kx, (N, Cin, H, W), dtype=jnp.float32)
    params = init_params(kp, Cin, Cout)

    out = jax.block_until_ready(jax.jit(mcu_forward)(x, params))
    ref = jax.block_until_ready(jax.jit(mcu_reference)(x, params))

    assert out.shape == (N, Cout, H, W)
    # bf16 MXU inputs / bf16 inter-layer activations (3 stacked convs) vs the
    # f32 Precision.HIGHEST reference: use a bf16-appropriate tolerance.
    err = jnp.max(jnp.abs(out - ref))
    assert jnp.allclose(out, ref, atol=2e-2, rtol=2e-2), f"max abs err {err}"

    print("KERNEL_OK")
</pallas_src>

<mosaic_0001>
module attributes {stable_mosaic.version = 11 : i64} {
  func.func @kernel(%arg0: i32, %arg1: memref<8x324xbf16, #tpu.memory_space<vmem>>, %arg2: memref<324x256xbf16, #tpu.memory_space<vmem>>, %arg3: memref<8x1xf32, #tpu.memory_space<vmem>>, %arg4: memref<8x1xf32, #tpu.memory_space<vmem>>, %arg5: memref<8x512xbf16, #tpu.memory_space<vmem>>, %arg6: memref<8x512xf32, #tpu.memory_space<vmem>>, %arg7: memref<8x1xf32, #tpu.memory_space<vmem>>, %arg8: memref<8x1xf32, #tpu.memory_space<vmem>>) attributes {dimension_semantics = [#tpu.dimension_semantics<arbitrary>], iteration_bounds = array<i64: 2>, scalar_prefetch = 0 : i64, scratch_operands = 3 : i64, tpu.core_type = #tpu.core_type<tc>, window_params = [{pipeline_mode = #tpu.pipeline_mode<synchronous>, transform_indices = @transform_0, window_bounds = array<i64: 8, 324>}, {transform_indices = @transform_1, window_bounds = array<i64: 324, 256>}, {pipeline_mode = #tpu.pipeline_mode<synchronous>, transform_indices = @transform_2, window_bounds = array<i64: 8, 1>}, {pipeline_mode = #tpu.pipeline_mode<synchronous>, transform_indices = @transform_3, window_bounds = array<i64: 8, 1>}, {pipeline_mode = #tpu.pipeline_mode<synchronous>, transform_indices = @transform_4, window_bounds = array<i64: 8, 512>}]} {
    %c0_i32 = arith.constant 0 : i32
    %0 = arith.cmpi eq, %arg0, %c0_i32 : i32
    %1 = arith.extui %0 : i1 to i32
    %c0_i32_0 = arith.constant 0 : i32
    %2 = arith.cmpi ne, %1, %c0_i32_0 : i32
    scf.if %2 {
      %cst_16 = arith.constant 0.000000e+00 : f32
      %24 = vector.broadcast %cst_16 : f32 to vector<8x1xf32>
      %c0_17 = arith.constant 0 : index
      %c0_18 = arith.constant 0 : index
      %25 = vector.load %arg7[%c0_17, %c0_18] : memref<8x1xf32, #tpu.memory_space<vmem>>, vector<8x1xf32>
      tpu.vector_store %arg7[%c0_17, %c0_18], %24 {strides = array<i32>} : memref<8x1xf32, #tpu.memory_space<vmem>>, vector<8x1xf32>,
      %cst_19 = arith.constant 0.000000e+00 : f32
      %26 = vector.broadcast %cst_19 : f32 to vector<8x1xf32>
      %c0_20 = arith.constant 0 : index
      %c0_21 = arith.constant 0 : index
      %27 = vector.load %arg8[%c0_20, %c0_21] : memref<8x1xf32, #tpu.memory_space<vmem>>, vector<8x1xf32>
      tpu.vector_store %arg8[%c0_20, %c0_21], %26 {strides = array<i32>} : memref<8x1xf32, #tpu.memory_space<vmem>>, vector<8x1xf32>,
    } else {
    }
    %c0 = arith.constant 0 : index
    %c0_1 = arith.constant 0 : index
    %3 = vector.load %arg1[%c0, %c0_1] : memref<8x324xbf16, #tpu.memory_space<vmem>>, vector<8x324xbf16>
    %c0_2 = arith.constant 0 : index
    %c0_3 = arith.constant 0 : index
    %4 = vector.load %arg2[%c0_2, %c0_3] : memref<324x256xbf16, #tpu.memory_space<vmem>>, vector<324x256xbf16>
    %cst = arith.constant dense<0.000000e+00> : vector<8x256xf32>
    %5 = tpu.matmul %3, %4, %cst {dimension_numbers = #tpu.dot_dimension_numbers<[1], [0], [0], [1], [0, 0, 1, 1], [], []>} : vector<8x324xbf16>, vector<324x256xbf16>, vector<8x256xf32> -> vector<8x256xf32>
    %c256_i32 = arith.constant 256 : i32
    %6 = arith.muli %arg0, %c256_i32 : i32
    %7 = tpu.assume_multiple %6, 256 : i32
    %c0_4 = arith.constant 0 : index
    %8 = arith.index_cast %7 : i32 to index
    %9 = vector.load %arg6[%c0_4, %8] : memref<8x512xf32, #tpu.memory_space<vmem>>, vector<8x256xf32>
    tpu.vector_store %arg6[%c0_4, %8], %5 {strides = array<i32>} : memref<8x512xf32, #tpu.memory_space<vmem>>, vector<8x256xf32>,
    %c0_5 = arith.constant 0 : index
    %c0_6 = arith.constant 0 : index
    %10 = vector.load %arg7[%c0_5, %c0_6] : memref<8x1xf32, #tpu.memory_space<vmem>>, vector<8x1xf32>
    %cst_7 = arith.constant dense<0.000000e+00> : vector<8xf32>
    %11 = vector.multi_reduction <add>, %5, %cst_7 [1] : vector<8x256xf32> to vector<8xf32>
    %12 = vector.shape_cast %11 : vector<8xf32> to vector<8x1xf32>
    %13 = arith.addf %10, %12 : vector<8x1xf32>
    %c0_8 = arith.constant 0 : index
    %c0_9 = arith.constant 0 : index
    %14 = vector.load %arg7[%c0_8, %c0_9] : memref<8x1xf32, #tpu.memory_space<vmem>>, vector<8x1xf32>
    tpu.vector_store %arg7[%c0_8, %c0_9], %13 {strides = array<i32>} : memref<8x1xf32, #tpu.memory_space<vmem>>, vector<8x1xf32>,
    %c0_10 = arith.constant 0 : index
    %c0_11 = arith.constant 0 : index
    %15 = vector.load %arg8[%c0_10, %c0_11] : memref<8x1xf32, #tpu.memory_space<vmem>>, vector<8x1xf32>
    %16 = arith.mulf %5, %5 : vector<8x256xf32>
    %cst_12 = arith.constant dense<0.000000e+00> : vector<8xf32>
    %17 = vector.multi_reduction <add>, %16, %cst_12 [1] : vector<8x256xf32> to vector<8xf32>
    %18 = vector.shape_cast %17 : vector<8xf32> to vector<8x1xf32>
    %19 = arith.addf %15, %18 : vector<8x1xf32>
    %c0_13 = arith.constant 0 : index
    %c0_14 = arith.constant 0 : index
    %20 = vector.load %arg8[%c0_13, %c0_14] : memref<8x1xf32, #tpu.memory_space<vmem>>, vector<8x1xf32>
    tpu.vector_store %arg8[%c0_13, %c0_14], %19 {strides = array<i32>} : memref<8x1xf32, #tpu.memory_space<vmem>>, vector<8x1xf32>,
    %c1_i32 = arith.constant 1 : i32
    %21 = arith.cmpi eq, %arg0, %c1_i32 : i32
    %22 = arith.extui %21 : i1 to i32
    %c0_i32_15 = arith.constant 0 : i32
    %23 = arith.cmpi ne, %22, %c0_i32_15 : i32
    scf.if %23 {
      %c0_16 = arith.constant 0 : index
      %c0_17 = arith.constant 0 : index
      %24 = vector.load %arg7[%c0_16, %c0_17] : memref<8x1xf32, #tpu.memory_space<vmem>>, vector<8x1xf32>
      %cst_18 = arith.constant 0.001953125 : f32
      %25 = vector.broadcast %cst_18 : f32 to vector<8x1xf32>
      %26 = arith.mulf %24, %25 : vector<8x1xf32>
      %c0_19 = arith.constant 0 : index
      %c0_20 = arith.constant 0 : index
      %27 = vector.load %arg8[%c0_19, %c0_20] : memref<8x1xf32, #tpu.memory_space<vmem>>, vector<8x1xf32>
      %cst_21 = arith.constant 0.001953125 : f32
      %28 = vector.broadcast %cst_21 : f32 to vector<8x1xf32>
      %29 = arith.mulf %27, %28 : vector<8x1xf32>
      %30 = arith.mulf %26, %26 : vector<8x1xf32>
      %31 = arith.subf %29, %30 : vector<8x1xf32>
      %cst_22 = arith.constant 0.000000e+00 : f32
      %32 = vector.broadcast %cst_22 : f32 to vector<8x1xf32>
      %33 = arith.maximumf %31, %32 : vector<8x1xf32>
      %c0_23 = arith.constant 0 : index
      %c0_24 = arith.constant 0 : index
      %34 = vector.load %arg3[%c0_23, %c0_24] : memref<8x1xf32, #tpu.memory_space<vmem>>, vector<8x1xf32>
      %cst_25 = arith.constant 9.99999974E-6 : f32
      %35 = vector.broadcast %cst_25 : f32 to vector<8x1xf32>
      %36 = arith.addf %33, %35 : vector<8x1xf32>
      %37 = math.rsqrt %36 : vector<8x1xf32>
      %38 = arith.mulf %34, %37 : vector<8x1xf32>
      %c0_26 = arith.constant 0 : index
      %c0_27 = arith.constant 0 : index
      %39 = vector.load %arg4[%c0_26, %c0_27] : memref<8x1xf32, #tpu.memory_space<vmem>>, vector<8x1xf32>
      %40 = arith.mulf %26, %38 : vector<8x1xf32>
      %41 = arith.subf %39, %40 : vector<8x1xf32>
      %c0_28 = arith.constant 0 : index
      %c0_29 = arith.constant 0 : index
      %42 = vector.load %arg6[%c0_28, %c0_29] : memref<8x512xf32, #tpu.memory_space<vmem>>, vector<8x512xf32>
      %43 = vector.broadcast %38 : vector<8x1xf32> to vector<8x512xf32>
      %44 = arith.mulf %42, %43 : vector<8x512xf32>
      %45 = vector.broadcast %41 : vector<8x1xf32> to vector<8x512xf32>
      %46 = arith.addf %44, %45 : vector<8x512xf32>
      %cst_30 = arith.constant 0.000000e+00 : f32
      %47 = vector.broadcast %cst_30 : f32 to vector<8x512xf32>
      %48 = arith.maximumf %46, %47 : vector<8x512xf32>
      %49 = arith.truncf %48 : vector<8x512xf32> to vector<8x512xbf16>
      %c0_31 = arith.constant 0 : index
      %c0_32 = arith.constant 0 : index
      %50 = vector.load %arg5[%c0_31, %c0_32] : memref<8x512xbf16, #tpu.memory_space<vmem>>, vector<8x512xbf16>
      tpu.vector_store %arg5[%c0_31, %c0_32], %49 {strides = array<i32>} : memref<8x512xbf16, #tpu.memory_space<vmem>>, vector<8x512xbf16>,
    } else {
    }
    return
  }
  func.func @transform_0(%arg0: i32) -> (i32, i32) {
    %c0_i32 = arith.constant 0 : i32
    %c0_i32_0 = arith.constant 0 : i32
    %c0_i32_1 = arith.constant 0 : i32
    return %c0_i32, %c0_i32_0 : i32, i32
  }
  func.func @transform_1(%arg0: i32) -> (i32, i32) {
    %c0_i32 = arith.constant 0 : i32
    %c0_i32_0 = arith.constant 0 : i32
    return %c0_i32, %arg0 : i32, i32
  }
  func.func @transform_2(%arg0: i32) -> (i32, i32) {
    %c0_i32 = arith.constant 0 : i32
    %c0_i32_0 = arith.constant 0 : i32
    %c0_i32_1 = arith.constant 0 : i32
    return %c0_i32, %c0_i32_0 : i32, i32
  }
  func.func @transform_3(%arg0: i32) -> (i32, i32) {
    %c0_i32 = arith.constant 0 : i32
    %c0_i32_0 = arith.constant 0 : i32
    %c0_i32_1 = arith.constant 0 : i32
    return %c0_i32, %c0_i32_0 : i32, i32
  }
  func.func @transform_4(%arg0: i32) -> (i32, i32) {
    %c0_i32 = arith.constant 0 : i32
    %c0_i32_0 = arith.constant 0 : i32
    %c0_i32_1 = arith.constant 0 : i32
    return %c0_i32, %c0_i32_0 : i32, i32
  }
}

module attributes {stable_mosaic.version = 11 : i64} {
  func.func @kernel(%arg0: i32, %arg1: memref<8x392xbf16, #tpu.memory_space<vmem>>, %arg2: memref<392x256xbf16, #tpu.memory_space<vmem>>, %arg3: memref<8x1xf32, #tpu.memory_space<vmem>>, %arg4: memref<8x1xf32, #tpu.memory_space<vmem>>, %arg5: memref<8x512xbf16, #tpu.memory_space<vmem>>, %arg6: memref<8x512xf32, #tpu.memory_space<vmem>>, %arg7: memref<8x1xf32, #tpu.memory_space<vmem>>, %arg8: memref<8x1xf32, #tpu.memory_space<vmem>>) attributes {dimension_semantics = [#tpu.dimension_semantics<arbitrary>], iteration_bounds = array<i64: 2>, scalar_prefetch = 0 : i64, scratch_operands = 3 : i64, tpu.core_type = #tpu.core_type<tc>, window_params = [{pipeline_mode = #tpu.pipeline_mode<synchronous>, transform_indices = @transform_0, window_bounds = array<i64: 8, 392>}, {transform_indices = @transform_1, window_bounds = array<i64: 392, 256>}, {pipeline_mode = #tpu.pipeline_mode<synchronous>, transform_indices = @transform_2, window_bounds = array<i64: 8, 1>}, {pipeline_mode = #tpu.pipeline_mode<synchronous>, transform_indices = @transform_3, window_bounds = array<i64: 8, 1>}, {pipeline_mode = #tpu.pipeline_mode<synchronous>, transform_indices = @transform_4, window_bounds = array<i64: 8, 512>}]} {
    %c0_i32 = arith.constant 0 : i32
    %0 = arith.cmpi eq, %arg0, %c0_i32 : i32
    %1 = arith.extui %0 : i1 to i32
    %c0_i32_0 = arith.constant 0 : i32
    %2 = arith.cmpi ne, %1, %c0_i32_0 : i32
    scf.if %2 {
      %cst_16 = arith.constant 0.000000e+00 : f32
      %24 = vector.broadcast %cst_16 : f32 to vector<8x1xf32>
      %c0_17 = arith.constant 0 : index
      %c0_18 = arith.constant 0 : index
      %25 = vector.load %arg7[%c0_17, %c0_18] : memref<8x1xf32, #tpu.memory_space<vmem>>, vector<8x1xf32>
      tpu.vector_store %arg7[%c0_17, %c0_18], %24 {strides = array<i32>} : memref<8x1xf32, #tpu.memory_space<vmem>>, vector<8x1xf32>,
      %cst_19 = arith.constant 0.000000e+00 : f32
      %26 = vector.broadcast %cst_19 : f32 to vector<8x1xf32>
      %c0_20 = arith.constant 0 : index
      %c0_21 = arith.constant 0 : index
      %27 = vector.load %arg8[%c0_20, %c0_21] : memref<8x1xf32, #tpu.memory_space<vmem>>, vector<8x1xf32>
      tpu.vector_store %arg8[%c0_20, %c0_21], %26 {strides = array<i32>} : memref<8x1xf32, #tpu.memory_space<vmem>>, vector<8x1xf32>,
    } else {
    }
    %c0 = arith.constant 0 : index
    %c0_1 = arith.constant 0 : index
    %3 = vector.load %arg1[%c0, %c0_1] : memref<8x392xbf16, #tpu.memory_space<vmem>>, vector<8x392xbf16>
    %c0_2 = arith.constant 0 : index
    %c0_3 = arith.constant 0 : index
    %4 = vector.load %arg2[%c0_2, %c0_3] : memref<392x256xbf16, #tpu.memory_space<vmem>>, vector<392x256xbf16>
    %cst = arith.constant dense<0.000000e+00> : vector<8x256xf32>
    %5 = tpu.matmul %3, %4, %cst {dimension_numbers = #tpu.dot_dimension_numbers<[1], [0], [0], [1], [0, 0, 1, 1], [], []>} : vector<8x392xbf16>, vector<392x256xbf16>, vector<8x256xf32> -> vector<8x256xf32>
    %c256_i32 = arith.constant 256 : i32
    %6 = arith.muli %arg0, %c256_i32 : i32
    %7 = tpu.assume_multiple %6, 256 : i32
    %c0_4 = arith.constant 0 : index
    %8 = arith.index_cast %7 : i32 to index
    %9 = vector.load %arg6[%c0_4, %8] : memref<8x512xf32, #tpu.memory_space<vmem>>, vector<8x256xf32>
    tpu.vector_store %arg6[%c0_4, %8], %5 {strides = array<i32>} : memref<8x512xf32, #tpu.memory_space<vmem>>, vector<8x256xf32>,
    %c0_5 = arith.constant 0 : index
    %c0_6 = arith.constant 0 : index
    %10 = vector.load %arg7[%c0_5, %c0_6] : memref<8x1xf32, #tpu.memory_space<vmem>>, vector<8x1xf32>
    %cst_7 = arith.constant dense<0.000000e+00> : vector<8xf32>
    %11 = vector.multi_reduction <add>, %5, %cst_7 [1] : vector<8x256xf32> to vector<8xf32>
    %12 = vector.shape_cast %11 : vector<8xf32> to vector<8x1xf32>
    %13 = arith.addf %10, %12 : vector<8x1xf32>
    %c0_8 = arith.constant 0 : index
    %c0_9 = arith.constant 0 : index
    %14 = vector.load %arg7[%c0_8, %c0_9] : memref<8x1xf32, #tpu.memory_space<vmem>>, vector<8x1xf32>
    tpu.vector_store %arg7[%c0_8, %c0_9], %13 {strides = array<i32>} : memref<8x1xf32, #tpu.memory_space<vmem>>, vector<8x1xf32>,
    %c0_10 = arith.constant 0 : index
    %c0_11 = arith.constant 0 : index
    %15 = vector.load %arg8[%c0_10, %c0_11] : memref<8x1xf32, #tpu.memory_space<vmem>>, vector<8x1xf32>
    %16 = arith.mulf %5, %5 : vector<8x256xf32>
    %cst_12 = arith.constant dense<0.000000e+00> : vector<8xf32>
    %17 = vector.multi_reduction <add>, %16, %cst_12 [1] : vector<8x256xf32> to vector<8xf32>
    %18 = vector.shape_cast %17 : vector<8xf32> to vector<8x1xf32>
    %19 = arith.addf %15, %18 : vector<8x1xf32>
    %c0_13 = arith.constant 0 : index
    %c0_14 = arith.constant 0 : index
    %20 = vector.load %arg8[%c0_13, %c0_14] : memref<8x1xf32, #tpu.memory_space<vmem>>, vector<8x1xf32>
    tpu.vector_store %arg8[%c0_13, %c0_14], %19 {strides = array<i32>} : memref<8x1xf32, #tpu.memory_space<vmem>>, vector<8x1xf32>,
    %c1_i32 = arith.constant 1 : i32
    %21 = arith.cmpi eq, %arg0, %c1_i32 : i32
    %22 = arith.extui %21 : i1 to i32
    %c0_i32_15 = arith.constant 0 : i32
    %23 = arith.cmpi ne, %22, %c0_i32_15 : i32
    scf.if %23 {
      %c0_16 = arith.constant 0 : index
      %c0_17 = arith.constant 0 : index
      %24 = vector.load %arg7[%c0_16, %c0_17] : memref<8x1xf32, #tpu.memory_space<vmem>>, vector<8x1xf32>
      %cst_18 = arith.constant 0.001953125 : f32
      %25 = vector.broadcast %cst_18 : f32 to vector<8x1xf32>
      %26 = arith.mulf %24, %25 : vector<8x1xf32>
      %c0_19 = arith.constant 0 : index
      %c0_20 = arith.constant 0 : index
      %27 = vector.load %arg8[%c0_19, %c0_20] : memref<8x1xf32, #tpu.memory_space<vmem>>, vector<8x1xf32>
      %cst_21 = arith.constant 0.001953125 : f32
      %28 = vector.broadcast %cst_21 : f32 to vector<8x1xf32>
      %29 = arith.mulf %27, %28 : vector<8x1xf32>
      %30 = arith.mulf %26, %26 : vector<8x1xf32>
      %31 = arith.subf %29, %30 : vector<8x1xf32>
      %cst_22 = arith.constant 0.000000e+00 : f32
      %32 = vector.broadcast %cst_22 : f32 to vector<8x1xf32>
      %33 = arith.maximumf %31, %32 : vector<8x1xf32>
      %c0_23 = arith.constant 0 : index
      %c0_24 = arith.constant 0 : index
      %34 = vector.load %arg3[%c0_23, %c0_24] : memref<8x1xf32, #tpu.memory_space<vmem>>, vector<8x1xf32>
      %cst_25 = arith.constant 9.99999974E-6 : f32
      %35 = vector.broadcast %cst_25 : f32 to vector<8x1xf32>
      %36 = arith.addf %33, %35 : vector<8x1xf32>
      %37 = math.rsqrt %36 : vector<8x1xf32>
      %38 = arith.mulf %34, %37 : vector<8x1xf32>
      %c0_26 = arith.constant 0 : index
      %c0_27 = arith.constant 0 : index
      %39 = vector.load %arg4[%c0_26, %c0_27] : memref<8x1xf32, #tpu.memory_space<vmem>>, vector<8x1xf32>
      %40 = arith.mulf %26, %38 : vector<8x1xf32>
      %41 = arith.subf %39, %40 : vector<8x1xf32>
      %c0_28 = arith.constant 0 : index
      %c0_29 = arith.constant 0 : index
      %42 = vector.load %arg6[%c0_28, %c0_29] : memref<8x512xf32, #tpu.memory_space<vmem>>, vector<8x512xf32>
      %43 = vector.broadcast %38 : vector<8x1xf32> to vector<8x512xf32>
      %44 = arith.mulf %42, %43 : vector<8x512xf32>
      %45 = vector.broadcast %41 : vector<8x1xf32> to vector<8x512xf32>
      %46 = arith.addf %44, %45 : vector<8x512xf32>
      %cst_30 = arith.constant 0.000000e+00 : f32
      %47 = vector.broadcast %cst_30 : f32 to vector<8x512xf32>
      %48 = arith.maximumf %46, %47 : vector<8x512xf32>
      %49 = arith.truncf %48 : vector<8x512xf32> to vector<8x512xbf16>
      %c0_31 = arith.constant 0 : index
      %c0_32 = arith.constant 0 : index
      %50 = vector.load %arg5[%c0_31, %c0_32] : memref<8x512xbf16, #tpu.memory_space<vmem>>, vector<8x512xbf16>
      tpu.vector_store %arg5[%c0_31, %c0_32], %49 {strides = array<i32>} : memref<8x512xbf16, #tpu.memory_space<vmem>>, vector<8x512xbf16>,
    } else {
    }
    return
  }
  func.func @transform_0(%arg0: i32) -> (i32, i32) {
    %c0_i32 = arith.constant 0 : i32
    %c0_i32_0 = arith.constant 0 : i32
    %c0_i32_1 = arith.constant 0 : i32
    return %c0_i32, %c0_i32_0 : i32, i32
  }
  func.func @transform_1(%arg0: i32) -> (i32, i32) {
    %c0_i32 = arith.constant 0 : i32
    %c0_i32_0 = arith.constant 0 : i32
    return %c0_i32, %arg0 : i32, i32
  }
  func.func @transform_2(%arg0: i32) -> (i32, i32) {
    %c0_i32 = arith.constant 0 : i32
    %c0_i32_0 = arith.constant 0 : i32
    %c0_i32_1 = arith.constant 0 : i32
    return %c0_i32, %c0_i32_0 : i32, i32
  }
  func.func @transform_3(%arg0: i32) -> (i32, i32) {
    %c0_i32 = arith.constant 0 : i32
    %c0_i32_0 = arith.constant 0 : i32
    %c0_i32_1 = arith.constant 0 : i32
    return %c0_i32, %c0_i32_0 : i32, i32
  }
  func.func @transform_4(%arg0: i32) -> (i32, i32) {
    %c0_i32 = arith.constant 0 : i32
    %c0_i32_0 = arith.constant 0 : i32
    %c0_i32_1 = arith.constant 0 : i32
    return %c0_i32, %c0_i32_0 : i32, i32
  }
}

module attributes {stable_mosaic.version = 11 : i64} {
  func.func @kernel(%arg0: i32, %arg1: memref<8x72xbf16, #tpu.memory_space<vmem>>, %arg2: memref<72x256xbf16, #tpu.memory_space<vmem>>, %arg3: memref<8x1xf32, #tpu.memory_space<vmem>>, %arg4: memref<8x1xf32, #tpu.memory_space<vmem>>, %arg5: memref<4x512xbf16, #tpu.memory_space<vmem>>, %arg6: memref<8x4xbf16, #tpu.memory_space<vmem>>, %arg7: memref<8x1xf32, #tpu.memory_space<vmem>>, %arg8: memref<8x512xf32, #tpu.memory_space<vmem>>, %arg9: memref<8x512xf32, #tpu.memory_space<vmem>>, %arg10: memref<8x1xf32, #tpu.memory_space<vmem>>, %arg11: memref<8x1xf32, #tpu.memory_space<vmem>>) attributes {dimension_semantics = [#tpu.dimension_semantics<arbitrary>], iteration_bounds = array<i64: 2>, scalar_prefetch = 0 : i64, scratch_operands = 3 : i64, tpu.core_type = #tpu.core_type<tc>, window_params = [{pipeline_mode = #tpu.pipeline_mode<synchronous>, transform_indices = @transform_0, window_bounds = array<i64: 8, 72>}, {transform_indices = @transform_1, window_bounds = array<i64: 72, 256>}, {pipeline_mode = #tpu.pipeline_mode<synchronous>, transform_indices = @transform_2, window_bounds = array<i64: 8, 1>}, {pipeline_mode = #tpu.pipeline_mode<synchronous>, transform_indices = @transform_3, window_bounds = array<i64: 8, 1>}, {pipeline_mode = #tpu.pipeline_mode<synchronous>, transform_indices = @transform_4, window_bounds = array<i64: 4, 512>}, {pipeline_mode = #tpu.pipeline_mode<synchronous>, transform_indices = @transform_5, window_bounds = array<i64: 8, 4>}, {pipeline_mode = #tpu.pipeline_mode<synchronous>, transform_indices = @transform_6, window_bounds = array<i64: 8, 1>}, {pipeline_mode = #tpu.pipeline_mode<synchronous>, transform_indices = @transform_7, window_bounds = array<i64: 8, 512>}]} {
    %c0_i32 = arith.constant 0 : i32
    %0 = arith.cmpi eq, %arg0, %c0_i32 : i32
    %1 = arith.extui %0 : i1 to i32
    %c0_i32_0 = arith.constant 0 : i32
    %2 = arith.cmpi ne, %1, %c0_i32_0 : i32
    scf.if %2 {
      %cst_16 = arith.constant 0.000000e+00 : f32
      %24 = vector.broadcast %cst_16 : f32 to vector<8x1xf32>
      %c0_17 = arith.constant 0 : index
      %c0_18 = arith.constant 0 : index
      %25 = vector.load %arg10[%c0_17, %c0_18] : memref<8x1xf32, #tpu.memory_space<vmem>>, vector<8x1xf32>
      tpu.vector_store %arg10[%c0_17, %c0_18], %24 {strides = array<i32>} : memref<8x1xf32, #tpu.memory_space<vmem>>, vector<8x1xf32>,
      %cst_19 = arith.constant 0.000000e+00 : f32
      %26 = vector.broadcast %cst_19 : f32 to vector<8x1xf32>
      %c0_20 = arith.constant 0 : index
      %c0_21 = arith.constant 0 : index
      %27 = vector.load %arg11[%c0_20, %c0_21] : memref<8x1xf32, #tpu.memory_space<vmem>>, vector<8x1xf32>
      tpu.vector_store %arg11[%c0_20, %c0_21], %26 {strides = array<i32>} : memref<8x1xf32, #tpu.memory_space<vmem>>, vector<8x1xf32>,
    } else {
    }
    %c0 = arith.constant 0 : index
    %c0_1 = arith.constant 0 : index
    %3 = vector.load %arg1[%c0, %c0_1] : memref<8x72xbf16, #tpu.memory_space<vmem>>, vector<8x72xbf16>
    %c0_2 = arith.constant 0 : index
    %c0_3 = arith.constant 0 : index
    %4 = vector.load %arg2[%c0_2, %c0_3] : memref<72x256xbf16, #tpu.memory_space<vmem>>, vector<72x256xbf16>
    %cst = arith.constant dense<0.000000e+00> : vector<8x256xf32>
    %5 = tpu.matmul %3, %4, %cst {dimension_numbers = #tpu.dot_dimension_numbers<[1], [0], [0], [1], [0, 0, 1, 1], [], []>} : vector<8x72xbf16>, vector<72x256xbf16>, vector<8x256xf32> -> vector<8x256xf32>
    %c256_i32 = arith.constant 256 : i32
    %6 = arith.muli %arg0, %c256_i32 : i32
    %7 = tpu.assume_multiple %6, 256 : i32
    %c0_4 = arith.constant 0 : index
    %8 = arith.index_cast %7 : i32 to index
    %9 = vector.load %arg9[%c0_4, %8] : memref<8x512xf32, #tpu.memory_space<vmem>>, vector<8x256xf32>
    tpu.vector_store %arg9[%c0_4, %8], %5 {strides = array<i32>} : memref<8x512xf32, #tpu.memory_space<vmem>>, vector<8x256xf32>,
    %c0_5 = arith.constant 0 : index
    %c0_6 = arith.constant 0 : index
    %10 = vector.load %arg10[%c0_5, %c0_6] : memref<8x1xf32, #tpu.memory_space<vmem>>, vector<8x1xf32>
    %cst_7 = arith.constant dense<0.000000e+00> : vector<8xf32>
    %11 = vector.multi_reduction <add>, %5, %cst_7 [1] : vector<8x256xf32> to vector<8xf32>
    %12 = vector.shape_cast %11 : vector<8xf32> to vector<8x1xf32>
    %13 = arith.addf %10, %12 : vector<8x1xf32>
    %c0_8 = arith.constant 0 : index
    %c0_9 = arith.constant 0 : index
    %14 = vector.load %arg10[%c0_8, %c0_9] : memref<8x1xf32, #tpu.memory_space<vmem>>, vector<8x1xf32>
    tpu.vector_store %arg10[%c0_8, %c0_9], %13 {strides = array<i32>} : memref<8x1xf32, #tpu.memory_space<vmem>>, vector<8x1xf32>,
    %c0_10 = arith.constant 0 : index
    %c0_11 = arith.constant 0 : index
    %15 = vector.load %arg11[%c0_10, %c0_11] : memref<8x1xf32, #tpu.memory_space<vmem>>, vector<8x1xf32>
    %16 = arith.mulf %5, %5 : vector<8x256xf32>
    %cst_12 = arith.constant dense<0.000000e+00> : vector<8xf32>
    %17 = vector.multi_reduction <add>, %16, %cst_12 [1] : vector<8x256xf32> to vector<8xf32>
    %18 = vector.shape_cast %17 : vector<8xf32> to vector<8x1xf32>
    %19 = arith.addf %15, %18 : vector<8x1xf32>
    %c0_13 = arith.constant 0 : index
    %c0_14 = arith.constant 0 : index
    %20 = vector.load %arg11[%c0_13, %c0_14] : memref<8x1xf32, #tpu.memory_space<vmem>>, vector<8x1xf32>
    tpu.vector_store %arg11[%c0_13, %c0_14], %19 {strides = array<i32>} : memref<8x1xf32, #tpu.memory_space<vmem>>, vector<8x1xf32>,
    %c1_i32 = arith.constant 1 : i32
    %21 = arith.cmpi eq, %arg0, %c1_i32 : i32
    %22 = arith.extui %21 : i1 to i32
    %c0_i32_15 = arith.constant 0 : i32
    %23 = arith.cmpi ne, %22, %c0_i32_15 : i32
    scf.if %23 {
      %c0_16 = arith.constant 0 : index
      %c0_17 = arith.constant 0 : index
      %24 = vector.load %arg10[%c0_16, %c0_17] : memref<8x1xf32, #tpu.memory_space<vmem>>, vector<8x1xf32>
      %cst_18 = arith.constant 0.001953125 : f32
      %25 = vector.broadcast %cst_18 : f32 to vector<8x1xf32>
      %26 = arith.mulf %24, %25 : vector<8x1xf32>
      %c0_19 = arith.constant 0 : index
      %c0_20 = arith.constant 0 : index
      %27 = vector.load %arg11[%c0_19, %c0_20] : memref<8x1xf32, #tpu.memory_space<vmem>>, vector<8x1xf32>
      %cst_21 = arith.constant 0.001953125 : f32
      %28 = vector.broadcast %cst_21 : f32 to vector<8x1xf32>
      %29 = arith.mulf %27, %28 : vector<8x1xf32>
      %30 = arith.mulf %26, %26 : vector<8x1xf32>
      %31 = arith.subf %29, %30 : vector<8x1xf32>
      %cst_22 = arith.constant 0.000000e+00 : f32
      %32 = vector.broadcast %cst_22 : f32 to vector<8x1xf32>
      %33 = arith.maximumf %31, %32 : vector<8x1xf32>
      %c0_23 = arith.constant 0 : index
      %c0_24 = arith.constant 0 : index
      %34 = vector.load %arg3[%c0_23, %c0_24] : memref<8x1xf32, #tpu.memory_space<vmem>>, vector<8x1xf32>
      %cst_25 = arith.constant 9.99999974E-6 : f32
      %35 = vector.broadcast %cst_25 : f32 to vector<8x1xf32>
      %36 = arith.addf %33, %35 : vector<8x1xf32>
      %37 = math.rsqrt %36 : vector<8x1xf32>
      %38 = arith.mulf %34, %37 : vector<8x1xf32>
      %c0_26 = arith.constant 0 : index
      %c0_27 = arith.constant 0 : index
      %39 = vector.load %arg4[%c0_26, %c0_27] : memref<8x1xf32, #tpu.memory_space<vmem>>, vector<8x1xf32>
      %40 = arith.mulf %26, %38 : vector<8x1xf32>
      %41 = arith.subf %39, %40 : vector<8x1xf32>
      %c0_28 = arith.constant 0 : index
      %c0_29 = arith.constant 0 : index
      %42 = vector.load %arg9[%c0_28, %c0_29] : memref<8x512xf32, #tpu.memory_space<vmem>>, vector<8x512xf32>
      %43 = vector.broadcast %38 : vector<8x1xf32> to vector<8x512xf32>
      %44 = arith.mulf %42, %43 : vector<8x512xf32>
      %45 = vector.broadcast %41 : vector<8x1xf32> to vector<8x512xf32>
      %46 = arith.addf %44, %45 : vector<8x512xf32>
      %c0_30 = arith.constant 0 : index
      %c0_31 = arith.constant 0 : index
      %47 = vector.load %arg6[%c0_30, %c0_31] : memref<8x4xbf16, #tpu.memory_space<vmem>>, vector<8x4xbf16>
      %c0_32 = arith.constant 0 : index
      %c0_33 = arith.constant 0 : index
      %48 = vector.load %arg5[%c0_32, %c0_33] : memref<4x512xbf16, #tpu.memory_space<vmem>>, vector<4x512xbf16>
      %cst_34 = arith.constant dense<0.000000e+00> : vector<8x512xf32>
      %49 = tpu.matmul %47, %48, %cst_34 {dimension_numbers = #tpu.dot_dimension_numbers<[1], [0], [0], [1], [0, 0, 1, 1], [], []>} : vector<8x4xbf16>, vector<4x512xbf16>, vector<8x512xf32> -> vector<8x512xf32>
      %50 = arith.addf %46, %49 : vector<8x512xf32>
      %c0_35 = arith.constant 0 : index
      %c0_36 = arith.constant 0 : index
      %51 = vector.load %arg7[%c0_35, %c0_36] : memref<8x1xf32, #tpu.memory_space<vmem>>, vector<8x1xf32>
      %52 = vector.broadcast %51 : vector<8x1xf32> to vector<8x512xf32>
      %53 = arith.addf %50, %52 : vector<8x512xf32>
      %cst_37 = arith.constant 0.000000e+00 : f32
      %54 = vector.broadcast %cst_37 : f32 to vector<8x512xf32>
      %55 = arith.maximumf %53, %54 : vector<8x512xf32>
      %c0_38 = arith.constant 0 : index
      %c0_39 = arith.constant 0 : index
      %56 = vector.load %arg8[%c0_38, %c0_39] : memref<8x512xf32, #tpu.memory_space<vmem>>, vector<8x512xf32>
      tpu.vector_store %arg8[%c0_38, %c0_39], %55 {strides = array<i32>} : memref<8x512xf32, #tpu.memory_space<vmem>>, vector<8x512xf32>,
    } else {
    }
    return
  }
  func.func @transform_0(%arg0: i32) -> (i32, i32) {
    %c0_i32 = arith.constant 0 : i32
    %c0_i32_0 = arith.constant 0 : i32
    %c0_i32_1 = arith.constant 0 : i32
    return %c0_i32, %c0_i32_0 : i32, i32
  }
  func.func @transform_1(%arg0: i32) -> (i32, i32) {
    %c0_i32 = arith.constant 0 : i32
    %c0_i32_0 = arith.constant 0 : i32
    return %c0_i32, %arg0 : i32, i32
  }
  func.func @transform_2(%arg0: i32) -> (i32, i32) {
    %c0_i32 = arith.constant 0 : i32
    %c0_i32_0 = arith.constant 0 : i32
    %c0_i32_1 = arith.constant 0 : i32
    return %c0_i32, %c0_i32_0 : i32, i32
  }
  func.func @transform_3(%arg0: i32) -> (i32, i32) {
    %c0_i32 = arith.constant 0 : i32
    %c0_i32_0 = arith.constant 0 : i32
    %c0_i32_1 = arith.constant 0 : i32
    return %c0_i32, %c0_i32_0 : i32, i32
  }
  func.func @transform_4(%arg0: i32) -> (i32, i32) {
    %c0_i32 = arith.constant 0 : i32
    %c0_i32_0 = arith.constant 0 : i32
    %c0_i32_1 = arith.constant 0 : i32
    return %c0_i32, %c0_i32_0 : i32, i32
  }
  func.func @transform_5(%arg0: i32) -> (i32, i32) {
    %c0_i32 = arith.constant 0 : i32
    %c0_i32_0 = arith.constant 0 : i32
    %c0_i32_1 = arith.constant 0 : i32
    return %c0_i32, %c0_i32_0 : i32, i32
  }
  func.func @transform_6(%arg0: i32) -> (i32, i32) {
    %c0_i32 = arith.constant 0 : i32
    %c0_i32_0 = arith.constant 0 : i32
    %c0_i32_1 = arith.constant 0 : i32
    return %c0_i32, %c0_i32_0 : i32, i32
  }
  func.func @transform_7(%arg0: i32) -> (i32, i32) {
    %c0_i32 = arith.constant 0 : i32
    %c0_i32_0 = arith.constant 0 : i32
    %c0_i32_1 = arith.constant 0 : i32
    return %c0_i32, %c0_i32_0 : i32, i32
  }
}

</mosaic_0001>

<llo_original>
// kernel: mcu_forward.3
$region0: #{mcu_forward.3}
  #allocation0 [shape = 'u32[]', space=smem, size = 0x4, offset = 0x4, fixed_abs, tag = 'smem constant byte address 0x4 - core index']
  #allocation1 [shape = 'u32[144,128]{1,0:T(1,128)}', space=vmem, size = 0x12000, scoped, tag = 'internal scratch']
  #allocation2 [shape = 'f32[8,512]{1,0:T(8,128)}', space=vmem, size = 0x4000, scoped, tag = 'scratch operand']
  #allocation3 [shape = 'f32[8,1]{1,0:T(8,128)}', space=vmem, size = 0x1000, scoped, tag = 'scratch operand']
  #allocation4 [shape = 'f32[8,1]{1,0:T(8,128)}', space=vmem, size = 0x1000, scoped, tag = 'scratch operand']
  %s0 = inlined_call_operand.vmem [shape: bf16[8,324], index: 0, kind: input, shape index: {}]
  %s1 = inlined_call_operand.vmem [shape: bf16[324,512], index: 1, kind: input, shape index: {}]
  %s2 = inlined_call_operand.vmem [shape: f32[8,1], index: 2, kind: input, shape index: {}]
  %s3 = inlined_call_operand.vmem [shape: f32[8,1], index: 3, kind: input, shape index: {}]
  %s4 = inlined_call_operand.vmem [shape: bf16[8,512], index: 4, kind: output, shape index: {}]
  %s5 = sld [smem:[#allocation0]]
  $region95: #{mcu_forward.3} parent=0
    _
  %s7 = ssub.s32 1, %s5
  %s8 = scalar_select 0, %s7, %s5
  $region1: #{mcu_forward.3} parent=0
    #allocation5 [shape = 'u8[335872]{0}', space=vmem, size = 0x52000, scoped, tag = 'input window, operand 1']
    loop: start=0, step=1, limit=4
    $region2: #{mcu_forward.3} parent=1 // loop_pre_header
      _
    $region3: #{mcu_forward.3} parent=1 // loop_header
      %s10 = sphi 0, %s14
      %p11 = scmp.ge.s32.totalorder %s10, 4
      %s18 = sphi 0, %s18
      %s20 = sphi 0, %s18
      %s21 = sphi 0, %s20
      %s35 = sphi 0, %s21
      %s41 = sphi 0, %s43
      %s44 = sphi 0, %s41
      %s45 = sphi 0, %s44
      %s61 = sphi 0, %s45
      %s65 = sphi 0, %s65
      %s67 = sphi 0, %s65
      %s68 = sphi 0, %s67
      %s82 = sphi 0, %s68
      %s86 = sphi 0, %s86
      %s88 = sphi 0, %s86
      %s89 = sphi 0, %s88
      %s103 = sphi 0, %s89
      %s107 = sphi 0, %s107
      %s109 = sphi 0, %s107
      %s110 = sphi 0, %s109
      %s124 = sphi 0, %s110
    $region4: #{mcu_forward.3} parent=1 // loop_header_branch
      %13 = sbr.rel (%p11) target = $region8
    $region5: #{mcu_forward.3} parent=1 // loop_body
      %s15 = ssub.s32 %s10, 1
      %s16 = ssub.s32 %s10, 2
      %s17 = sadd.s32 %s10, 1
      %s19 = sadd.s32 %s18, 1
      %p22 = scmp.eq.s32.totalorder %s10, 1
      %p23 = scmp.ne.s32.totalorder %s18, %s20
      %p24 = scmp.eq.s32.totalorder %s10, 0
      %p25 = por %p23, %p24
      %p26 = scmp.ne.s32.totalorder %s18, %s20
      %p27 = scmp.eq.s32.totalorder %s15, 1
      %p28 = por %p26, %p27
      %p29 = scmp.ne.s32.totalorder %s20, %s21
      %p30 = scmp.eq.s32.totalorder %s15, 0
      %p31 = por %p29, %p30
      %p32 = scmp.ne.s32.totalorder %s20, %s21
      %p33 = scmp.eq.s32.totalorder %s16, 1
      %p34 = por %p32, %p33
      %p36 = scmp.ne.s32.totalorder %s21, %s35
      %p37 = scmp.eq.s32.totalorder %s16, 0
      %p38 = por %p36, %p37
      %s39 = ssub.s32 %s10, %s17
      %p40 = scmp.eq.s32.totalorder %s39, 0
      %s42 = sadd.s32 %s41, 1
      %s43 = scalar_select %p40, %s41, %s42
      %p46 = pneg %p40
      %p47 = scmp.eq.s32.totalorder %s10, 1
      %p48 = por %p46, %p47
      %p49 = scmp.ne.s32.totalorder %s41, %s44
      %p50 = scmp.eq.s32.totalorder %s10, 0
      %p51 = por %p49, %p50
      %p52 = scmp.ne.s32.totalorder %s41, %s44
      %p53 = scmp.eq.s32.totalorder %s15, 1
      %p54 = por %p52, %p53
      %p55 = scmp.ne.s32.totalorder %s44, %s45
      %p56 = scmp.eq.s32.totalorder %s15, 0
      %p57 = por %p55, %p56
      %p58 = scmp.ne.s32.totalorder %s44, %s45
      %p59 = scmp.eq.s32.totalorder %s16, 1
      %p60 = por %p58, %p59
      %p62 = scmp.ne.s32.totalorder %s45, %s61
      %p63 = scmp.eq.s32.totalorder %s16, 0
      %p64 = por %p62, %p63
      %s66 = sadd.s32 %s65, 1
      %p69 = scmp.eq.s32.totalorder %s10, 1
      %p70 = scmp.ne.s32.totalorder %s65, %s67
      %p71 = scmp.eq.s32.totalorder %s10, 0
      %p72 = por %p70, %p71
      %p73 = scmp.ne.s32.totalorder %s65, %s67
      %p74 = scmp.eq.s32.totalorder %s15, 1
      %p75 = por %p73, %p74
      %p76 = scmp.ne.s32.totalorder %s67, %s68
      %p77 = scmp.eq.s32.totalorder %s15, 0
      %p78 = por %p76, %p77
      %p79 = scmp.ne.s32.totalorder %s67, %s68
      %p80 = scmp.eq.s32.totalorder %s16, 1
      %p81 = por %p79, %p80
      %p83 = scmp.ne.s32.totalorder %s68, %s82
      %p84 = scmp.eq.s32.totalorder %s16, 0
      %p85 = por %p83, %p84
      %s87 = sadd.s32 %s86, 1
      %p90 = scmp.eq.s32.totalorder %s10, 1
      %p91 = scmp.ne.s32.totalorder %s86, %s88
      %p92 = scmp.eq.s32.totalorder %s10, 0
      %p93 = por %p91, %p92
      %p94 = scmp.ne.s32.totalorder %s86, %s88
      %p95 = scmp.eq.s32.totalorder %s15, 1
      %p96 = por %p94, %p95
      %p97 = scmp.ne.s32.totalorder %s88, %s89
      %p98 = scmp.eq.s32.totalorder %s15, 0
      %p99 = por %p97, %p98
      %p100 = scmp.ne.s32.totalorder %s88, %s89
      %p101 = scmp.eq.s32.totalorder %s16, 1
      %p102 = por %p100, %p101
      %p104 = scmp.ne.s32.totalorder %s89, %s103
      %p105 = scmp.eq.s32.totalorder %s16, 0
      %p106 = por %p104, %p105
      %s108 = sadd.s32 %s107, 1
      %p111 = scmp.eq.s32.totalorder %s10, 1
      %p112 = scmp.ne.s32.totalorder %s107, %s109
      %p113 = scmp.eq.s32.totalorder %s10, 0
      %p114 = por %p112, %p113
      %p115 = scmp.ne.s32.totalorder %s107, %s109
      %p116 = scmp.eq.s32.totalorder %s15, 1
      %p117 = por %p115, %p116
      %p118 = scmp.ne.s32.totalorder %s109, %s110
      %p119 = scmp.eq.s32.totalorder %s15, 0
      %p120 = por %p118, %p119
      %p121 = scmp.ne.s32.totalorder %s109, %s110
      %p122 = scmp.eq.s32.totalorder %s16, 1
      %p123 = por %p121, %p122
      %p125 = scmp.ne.s32.totalorder %s110, %s124
      %p126 = scmp.eq.s32.totalorder %s16, 0
      %p127 = por %p125, %p126
      %p128 = scmp.le.s32.totalorder 1, %s10
      %p129 = scmp.lt.s32.totalorder %s10, 3
      %p130 = pnand %p128, %p129
      %p131 = pneg %p130
      // Predicated region
      $region9: #{mcu_forward.3} parent=5 // pred_check
        _
      $region10: #{mcu_forward.3} parent=5 // pred_check_branch
        %133 = sbr.rel (%p130) target = $region12
      $region11: #{mcu_forward.3} parent=5 // pred_region
        %s134 = ssub.s32 %s10, 1
        // Predicated region
        $region13: #{mcu_forward.3} parent=11 // pred_check
          %p135 = pneg %p31
        $region14: #{mcu_forward.3} parent=11 // pred_check_branch
          %137 = sbr.rel (%p135) target = $region16
        $region15: #{mcu_forward.3} parent=11 // pred_region
          _
        $region16: #{mcu_forward.3} parent=11 // pred_fallthru
          _
        // Predicated region
        $region17: #{mcu_forward.3} parent=11 // pred_check
          %p138 = pneg %p78
        $region18: #{mcu_forward.3} parent=11 // pred_check_branch
          %140 = sbr.rel (%p138) target = $region20
        $region19: #{mcu_forward.3} parent=11 // pred_region
          _
        $region20: #{mcu_forward.3} parent=11 // pred_fallthru
          _
        // Predicated region
        $region21: #{mcu_forward.3} parent=11 // pred_check
          %p141 = pneg %p99
        $region22: #{mcu_forward.3} parent=11 // pred_check_branch
          %143 = sbr.rel (%p141) target = $region24
        $region23: #{mcu_forward.3} parent=11 // pred_region
          _
        $region24: #{mcu_forward.3} parent=11 // pred_fallthru
          _
      $region12: #{mcu_forward.3} parent=5 // pred_fallthru
        _
      %p144 = scmp.lt.s32.totalorder %s10, 2
      // Predicated region
      $region25: #{mcu_forward.3} parent=5 // pred_check
        %p145 = pneg %p144
      $region26: #{mcu_forward.3} parent=5 // pred_check_branch
        %147 = sbr.rel (%p145) target = $region28
      $region27: #{mcu_forward.3} parent=5 // pred_region
        // Predicated region
        $region29: #{mcu_forward.3} parent=27 // pred_check
          %p148 = pneg %p51
        $region30: #{mcu_forward.3} parent=27 // pred_check_branch
          %150 = sbr.rel (%p148) target = $region32
        $region31: #{mcu_forward.3} parent=27 // pred_region
          %s151 = sand.u32 %s41, 1
          %s152 = sand.u32 %s41, 1
          %s153 = smul.addr %s152, 328
          %s154 = scalar_lea.vmem [#allocation5], %s153
          %s155 = smul.u32 2, %s10
          %s156 = smul.addr %s155, 4
          %s157 = scalar_lea.vmem %s1, %s156
          // Predicated region
          $region33: #{mcu_forward.3} parent=31 // pred_check
            _
          $region34: #{mcu_forward.3} parent=31 // pred_check_branch
            %159 = sbr.rel (0) target = $region36
          $region35: #{mcu_forward.3} parent=31 // pred_region
            // Predicated region
            $region37: #{mcu_forward.3} parent=35 // pred_check
              _
            $region38: #{mcu_forward.3} parent=35 // pred_check_branch
              %161 = sbr.rel (0) target = $region40
            $region39: #{mcu_forward.3} parent=35 // pred_region
              // Predicated region
              $region52: #{mcu_forward.3} parent=39 // pred_check
                _
              $region53: #{mcu_forward.3} parent=39 // pred_check_branch
                %257 = sbr.rel (0) target = $region55
              $region54: #{mcu_forward.3} parent=39 // pred_region
                loop: start=0, step=1, limit=1
                $region56: #{mcu_forward.3} parent=54 // loop_pre_header
                  _
                $region57: #{mcu_forward.3} parent=54 // loop_header
                  %s259 = sphi 0, %s263
                  %p260 = scmp.ge.s32.totalorder %s259, 1
                  %s264 = sphi %s157, %s157
                  %s265 = sphi %s154, %s154
                $region58: #{mcu_forward.3} parent=54 // loop_header_branch
                  %262 = sbr.rel (%p260) target = $region62
                $region59: #{mcu_forward.3} parent=54 // loop_body
                  %v266 = vld [vmem:[%s264] sm:$0xff]
                  %267 = vst [vmem:[%s265] sm:$0xff] %v266
                  %v268 = vld [vmem:[%s264 + $0x10] sm:$0xff]
                  %269 = vst [vmem:[%s265 + $0x8] sm:$0xff] %v268
                  %v270 = vld [vmem:[%s264 + $0x20] sm:$0xff]
                  %271 = vst [vmem:[%s265 + $0x10] sm:$0xff] %v270
                  %v272 = vld [vmem:[%s264 + $0x30] sm:$0xff]
                  %273 = vst [vmem:[%s265 + $0x18] sm:$0xff] %v272
                  %v274 = vld [vmem:[%s264 + $0x40] sm:$0xff]
                  %275 = vst [vmem:[%s265 + $0x20] sm:$0xff] %v274
                  %v276 = vld [vmem:[%s264 + $0x50] sm:$0xff]
                  %277 = vst [vmem:[%s265 + $0x28] sm:$0xff] %v276
                  %v278 = vld [vmem:[%s264 + $0x60] sm:$0xff]
                  %279 = vst [vmem:[%s265 + $0x30] sm:$0xff] %v278
                  %v280 = vld [vmem:[%s264 + $0x70] sm:$0xff]
                  %281 = vst [vmem:[%s265 + $0x38] sm:$0xff] %v280
                  %v282 = vld [vmem:[%s264 + $0x80] sm:$0xff]
                  %283 = vst [vmem:[%s265 + $0x40] sm:$0xff] %v282
                  %v284 = vld [vmem:[%s264 + $0x90] sm:$0xff]
                  %285 = vst [vmem:[%s265 + $0x48] sm:$0xff] %v284
                  %v286 = vld [vmem:[%s264 + $0xa0] sm:$0xff]
                  %287 = vst [vmem:[%s265 + $0x50] sm:$0xff] %v286
                  %v288 = vld [vmem:[%s264 + $0xb0] sm:$0xff]
                  %289 = vst [vmem:[%s265 + $0x58] sm:$0xff] %v288
                  %v290 = vld [vmem:[%s264 + $0xc0] sm:$0xff]
                  %291 = vst [vmem:[%s265 + $0x60] sm:$0xff] %v290
                  %v292 = vld [vmem:[%s264 + $0xd0] sm:$0xff]
                  %293 = vst [vmem:[%s265 + $0x68] sm:$0xff] %v292
                  %v294 = vld [vmem:[%s264 + $0xe0] sm:$0xff]
                  %295 = vst [vmem:[%s265 + $0x70] sm:$0xff] %v294
                  %v296 = vld [vmem:[%s264 + $0xf0] sm:$0xff]
                  %297 = vst [vmem:[%s265 + $0x78] sm:$0xff] %v296
                  %v298 = vld [vmem:[%s264 + $0x100] sm:$0xff]
                  %299 = vst [vmem:[%s265 + $0x80] sm:$0xff] %v298
                  %v300 = vld [vmem:[%s264 + $0x110] sm:$0xff]
                  %301 = vst [vmem:[%s265 + $0x88] sm:$0xff] %v300
                  %v302 = vld [vmem:[%s264 + $0x120] sm:$0xff]
                  %303 = vst [vmem:[%s265 + $0x90] sm:$0xff] %v302
                  %v304 = vld [vmem:[%s264 + $0x130] sm:$0xff]
                  %305 = vst [vmem:[%s265 + $0x98] sm:$0xff] %v304
                  %v306 = vld [vmem:[%s264 + $0x140] sm:$0xff]
                  %307 = vst [vmem:[%s265 + $0xa0] sm:$0xff] %v306
                  %v308 = vld [vmem:[%s264 + $0x150] sm:$0xff]
                  %309 = vst [vmem:[%s265 + $0xa8] sm:$0xff] %v308
                  %v310 = vld [vmem:[%s264 + $0x160] sm:$0xff]
                  %311 = vst [vmem:[%s265 + $0xb0] sm:$0xff] %v310
                  %v312 = vld [vmem:[%s264 + $0x170] sm:$0xff]
                  %313 = vst [vmem:[%s265 + $0xb8] sm:$0xff] %v312
                  %v314 = vld [vmem:[%s264 + $0x180] sm:$0xff]
                  %315 = vst [vmem:[%s265 + $0xc0] sm:$0xff] %v314
                  %v316 = vld [vmem:[%s264 + $0x190] sm:$0xff]
                  %317 = vst [vmem:[%s265 + $0xc8] sm:$0xff] %v316
                  %v318 = vld [vmem:[%s264 + $0x1a0] sm:$0xff]
                  %319 = vst [vmem:[%s265 + $0xd0] sm:$0xff] %v318
                  %v320 = vld [vmem:[%s264 + $0x1b0] sm:$0xff]
                  %321 = vst [vmem:[%s265 + $0xd8] sm:$0xff] %v320
                  %v322 = vld [vmem:[%s264 + $0x1c0] sm:$0xff]
                  %323 = vst [vmem:[%s265 + $0xe0] sm:$0xff] %v322
                  %v324 = vld [vmem:[%s264 + $0x1d0] sm:$0xff]
                  %325 = vst [vmem:[%s265 + $0xe8] sm:$0xff] %v324
                  %v326 = vld [vmem:[%s264 + $0x1e0] sm:$0xff]
                  %327 = vst [vmem:[%s265 + $0xf0] sm:$0xff] %v326
                  %v328 = vld [vmem:[%s264 + $0x1f0] sm:$0xff]
                  %329 = vst [vmem:[%s265 + $0xf8] sm:$0xff] %v328
                  %v330 = vld [vmem:[%s264 + $0x200] sm:$0xff]
                  %331 = vst [vmem:[%s265 + $0x100] sm:$0xff] %v330
                  %v332 = vld [vmem:[%s264 + $0x210] sm:$0xff]
                  %333 = vst [vmem:[%s265 + $0x108] sm:$0xff] %v332
                  %v334 = vld [vmem:[%s264 + $0x220] sm:$0xff]
                  %335 = vst [vmem:[%s265 + $0x110] sm:$0xff] %v334
                  %v336 = vld [vmem:[%s264 + $0x230] sm:$0xff]
                  %337 = vst [vmem:[%s265 + $0x118] sm:$0xff] %v336
                  %v338 = vld [vmem:[%s264 + $0x240] sm:$0xff]
                  %339 = vst [vmem:[%s265 + $0x120] sm:$0xff] %v338
                  %v340 = vld [vmem:[%s264 + $0x250] sm:$0xff]
                  %341 = vst [vmem:[%s265 + $0x128] sm:$0xff] %v340
                  %v342 = vld [vmem:[%s264 + $0x260] sm:$0xff]
                  %343 = vst [vmem:[%s265 + $0x130] sm:$0xff] %v342
                  %v344 = vld [vmem:[%s264 + $0x270] sm:$0xff]
                  %345 = vst [vmem:[%s265 + $0x138] sm:$0xff] %v344
                  %v346 = vld [vmem:[%s264 + $0x280] sm:$0xff]
                  %347 = vst [vmem:[%s265 + $0x140] sm:$0xff] %v346
                $region60: #{mcu_forward.3} parent=54 // loop_footer
                  %s263 = sadd.s32 1, %s259
                $region61: #{mcu_forward.3} parent=54 // loop_footer_branch
                  %258 = sbr.rel target = $region57
                $region62: #{mcu_forward.3} parent=54 // loop_exit
                  _
              $region55: #{mcu_forward.3} parent=39 // pred_fallthru
                _
              // Predicated region
              $region63: #{mcu_forward.3} parent=39 // pred_check
                _
              $region64: #{mcu_forward.3} parent=39 // pred_check_branch
                %349 = sbr.rel target = $region66
              $region65: #{mcu_forward.3} parent=39 // pred_region
                _
              $region66: #{mcu_forward.3} parent=39 // pred_fallthru
                _
            $region40: #{mcu_forward.3} parent=35 // pred_fallthru
              _
            // Predicated region
            $region41: #{mcu_forward.3} parent=35 // pred_check
              _
            $region42: #{mcu_forward.3} parent=35 // pred_check_branch
              %163 = sbr.rel target = $region44
            $region43: #{mcu_forward.3} parent=35 // pred_region
              %s165 = ssub.s32 256, 1
              loop: start=0, step=1, limit=1
              $region45: #{mcu_forward.3} parent=43 // loop_pre_header
                _
              $region46: #{mcu_forward.3} parent=43 // loop_header
                %s167 = sphi 0, %s171
                %p168 = scmp.ge.s32.totalorder %s167, 1
                %s172 = sphi %s157, %s157
                %s173 = sphi %s154, %s154
              $region47: #{mcu_forward.3} parent=43 // loop_header_branch
                %170 = sbr.rel (%p168) target = $region51
              $region48: #{mcu_forward.3} parent=43 // loop_body
                %v174 = vld [vmem:[%s172] sm:%s165]
                %175 = vst [vmem:[%s173] sm:%s165] %v174
                %v176 = vld [vmem:[%s172 + $0x10] sm:%s165]
                %177 = vst [vmem:[%s173 + $0x8] sm:%s165] %v176
                %v178 = vld [vmem:[%s172 + $0x20] sm:%s165]
                %179 = vst [vmem:[%s173 + $0x10] sm:%s165] %v178
                %v180 = vld [vmem:[%s172 + $0x30] sm:%s165]
                %181 = vst [vmem:[%s173 + $0x18] sm:%s165] %v180
                %v182 = vld [vmem:[%s172 + $0x40] sm:%s165]
                %183 = vst [vmem:[%s173 + $0x20] sm:%s165] %v182
                %v184 = vld [vmem:[%s172 + $0x50] sm:%s165]
                %185 = vst [vmem:[%s173 + $0x28] sm:%s165] %v184
                %v186 = vld [vmem:[%s172 + $0x60] sm:%s165]
                %187 = vst [vmem:[%s173 + $0x30] sm:%s165] %v186
                %v188 = vld [vmem:[%s172 + $0x70] sm:%s165]
                %189 = vst [vmem:[%s173 + $0x38] sm:%s165] %v188
                %v190 = vld [vmem:[%s172 + $0x80] sm:%s165]
                %191 = vst [vmem:[%s173 + $0x40] sm:%s165] %v190
                %v192 = vld [vmem:[%s172 + $0x90] sm:%s165]
                %193 = vst [vmem:[%s173 + $0x48] sm:%s165] %v192
                %v194 = vld [vmem:[%s172 + $0xa0] sm:%s165]
                %195 = vst [vmem:[%s173 + $0x50] sm:%s165] %v194
                %v196 = vld [vmem:[%s172 + $0xb0] sm:%s165]
                %197 = vst [vmem:[%s173 + $0x58] sm:%s165] %v196
                %v198 = vld [vmem:[%s172 + $0xc0] sm:%s165]
                %199 = vst [vmem:[%s173 + $0x60] sm:%s165] %v198
                %v200 = vld [vmem:[%s172 + $0xd0] sm:%s165]
                %201 = vst [vmem:[%s173 + $0x68] sm:%s165] %v200
                %v202 = vld [vmem:[%s172 + $0xe0] sm:%s165]
                %203 = vst [vmem:[%s173 + $0x70] sm:%s165] %v202
                %v204 = vld [vmem:[%s172 + $0xf0] sm:%s165]
                %205 = vst [vmem:[%s173 + $0x78] sm:%s165] %v204
                %v206 = vld [vmem:[%s172 + $0x100] sm:%s165]
                %207 = vst [vmem:[%s173 + $0x80] sm:%s165] %v206
                %v208 = vld [vmem:[%s172 + $0x110] sm:%s165]
                %209 = vst [vmem:[%s173 + $0x88] sm:%s165] %v208
                %v210 = vld [vmem:[%s172 + $0x120] sm:%s165]
                %211 = vst [vmem:[%s173 + $0x90] sm:%s165] %v210
                %v212 = vld [vmem:[%s172 + $0x130] sm:%s165]
                %213 = vst [vmem:[%s173 + $0x98] sm:%s165] %v212
                %v214 = vld [vmem:[%s172 + $0x140] sm:%s165]
                %215 = vst [vmem:[%s173 + $0xa0] sm:%s165] %v214
                %v216 = vld [vmem:[%s172 + $0x150] sm:%s165]
                %217 = vst [vmem:[%s173 + $0xa8] sm:%s165] %v216
                %v218 = vld [vmem:[%s172 + $0x160] sm:%s165]
                %219 = vst [vmem:[%s173 + $0xb0] sm:%s165] %v218
                %v220 = vld [vmem:[%s172 + $0x170] sm:%s165]
                %221 = vst [vmem:[%s173 + $0xb8] sm:%s165] %v220
                %v222 = vld [vmem:[%s172 + $0x180] sm:%s165]
                %223 = vst [vmem:[%s173 + $0xc0] sm:%s165] %v222
                %v224 = vld [vmem:[%s172 + $0x190] sm:%s165]
                %225 = vst [vmem:[%s173 + $0xc8] sm:%s165] %v224
                %v226 = vld [vmem:[%s172 + $0x1a0] sm:%s165]
                %227 = vst [vmem:[%s173 + $0xd0] sm:%s165] %v226
                %v228 = vld [vmem:[%s172 + $0x1b0] sm:%s165]
                %229 = vst [vmem:[%s173 + $0xd8] sm:%s165] %v228
                %v230 = vld [vmem:[%s172 + $0x1c0] sm:%s165]
                %231 = vst [vmem:[%s173 + $0xe0] sm:%s165] %v230
                %v232 = vld [vmem:[%s172 + $0x1d0] sm:%s165]
                %233 = vst [vmem:[%s173 + $0xe8] sm:%s165] %v232
                %v234 = vld [vmem:[%s172 + $0x1e0] sm:%s165]
                %235 = vst [vmem:[%s173 + $0xf0] sm:%s165] %v234
                %v236 = vld [vmem:[%s172 + $0x1f0] sm:%s165]
                %237 = vst [vmem:[%s173 + $0xf8] sm:%s165] %v236
                %v238 = vld [vmem:[%s172 + $0x200] sm:%s165]
                %239 = vst [vmem:[%s173 + $0x100] sm:%s165] %v238
                %v240 = vld [vmem:[%s172 + $0x210] sm:%s165]
                %241 = vst [vmem:[%s173 + $0x108] sm:%s165] %v240
                %v242 = vld [vmem:[%s172 + $0x220] sm:%s165]
                %243 = vst [vmem:[%s173 + $0x110] sm:%s165] %v242
                %v244 = vld [vmem:[%s172 + $0x230] sm:%s165]
                %245 = vst [vmem:[%s173 + $0x118] sm:%s165] %v244
                %v246 = vld [vmem:[%s172 + $0x240] sm:%s165]
                %247 = vst [vmem:[%s173 + $0x120] sm:%s165] %v246
                %v248 = vld [vmem:[%s172 + $0x250] sm:%s165]
                %249 = vst [vmem:[%s173 + $0x128] sm:%s165] %v248
                %v250 = vld [vmem:[%s172 + $0x260] sm:%s165]
                %251 = vst [vmem:[%s173 + $0x130] sm:%s165] %v250
                %v252 = vld [vmem:[%s172 + $0x270] sm:%s165]
                %253 = vst [vmem:[%s173 + $0x138] sm:%s165] %v252
                %v254 = vld [vmem:[%s172 + $0x280] sm:%s165]
                %255 = vst [vmem:[%s173 + $0x140] sm:%s165] %v254
              $region49: #{mcu_forward.3} parent=43 // loop_footer
                %s171 = sadd.s32 1, %s167
              $region50: #{mcu_forward.3} parent=43 // loop_footer_branch
                %166 = sbr.rel target = $region46
              $region51: #{mcu_forward.3} parent=43 // loop_exit
                _
            $region44: #{mcu_forward.3} parent=35 // pred_fallthru
              _
          $region36: #{mcu_forward.3} parent=31 // pred_fallthru
            _
          %350 = vnop
        $region32: #{mcu_forward.3} parent=27 // pred_fallthru
          _
      $region28: #{mcu_forward.3} parent=5 // pred_fallthru
        _
      %p351 = scmp.le.s32.totalorder 1, %s10
      %p352 = scmp.lt.s32.totalorder %s10, 3
      %p353 = pnand %p351, %p352
      %p354 = pneg %p353
      // Predicated region
      $region67: #{mcu_forward.3} parent=5 // pred_check
        _
      $region68: #{mcu_forward.3} parent=5 // pred_check_branch
        %356 = sbr.rel (%p353) target = $region70
      $region69: #{mcu_forward.3} parent=5 // pred_region
        %s357 = ssub.s32 %s10, 1
        %s358 = sand.u32 %s44, 1
        %s359 = sand.u32 %s44, 1
        %s360 = smul.addr %s359, 328
        %s361 = scalar_lea.vmem [#allocation5], %s360
        // Predicated region
        $region71: #{mcu_forward.3} parent=69 // pred_check
          %p362 = pneg %p57
        $region72: #{mcu_forward.3} parent=69 // pred_check_branch
          %364 = sbr.rel (%p362) target = $region74
        $region73: #{mcu_forward.3} parent=69 // pred_region
          _
        $region74: #{mcu_forward.3} parent=69 // pred_fallthru
          _
        %p365 = pneg %p31
        %p366 = pneg %p28
        %s367 = sand.u32 %s44, 1
        %s368 = sand.u32 %s44, 1
        %s369 = smul.addr %s368, 328
        %s370 = scalar_lea.vmem [#allocation5], %s369
        %p371 = pneg %p57
        %p372 = pneg %p54
        %p373 = pneg %p78
        %p374 = pneg %p75
        %p375 = pneg %p99
        %p376 = pneg %p96
        %p377 = pneg %p120
        %p378 = pneg %p117
        %s379 = smul.u32 2, %s15
        %p381 = scmp.eq.s32.totalorder %s15, 0
        // Predicated region
        $region75: #{mcu_forward.3} parent=69 // pred_check
          %p382 = pneg %p381
        $region76: #{mcu_forward.3} parent=69 // pred_check_branch
          %384 = sbr.rel (%p382) target = $region78
        $region77: #{mcu_forward.3} parent=69 // pred_region
          %vm385 = vcmask 7168
          %386 = vst.msk [vmem:[#allocation3] sm:$0xff] %vm385, 0.0
          %387 = vst.msk [vmem:[#allocation4] sm:$0xff] %vm385, 0.0
        $region78: #{mcu_forward.3} parent=69 // pred_fallthru
          _
        %v388 = vld [vmem:[%s0] sm:$0xff]
        %v389 = vld [vmem:[%s0 + $0x8] sm:$0xf]
        %v390 = vld [vmem:[%s361] sm:$0xff]
        %v391 = vld [vmem:[%s361 + $0x8] sm:$0xff]
        %v392 = vld [vmem:[%s361 + $0x10] sm:$0xff]
        %v393 = vld [vmem:[%s361 + $0x18] sm:$0xff]
        %v394 = vld [vmem:[%s361 + $0x20] sm:$0xff]
        %v395 = vld [vmem:[%s361 + $0x28] sm:$0xff]
        %v396 = vld [vmem:[%s361 + $0x30] sm:$0xff]
        %v397 = vld [vmem:[%s361 + $0x38] sm:$0xff]
        %v398 = vld [vmem:[%s361 + $0x40] sm:$0xff]
        %v399 = vld [vmem:[%s361 + $0x48] sm:$0xff]
        %v400 = vld [vmem:[%s361 + $0x50] sm:$0xff]
        %v401 = vld [vmem:[%s361 + $0x58] sm:$0xff]
        %v402 = vld [vmem:[%s361 + $0x60] sm:$0xff]
        %v403 = vld [vmem:[%s361 + $0x68] sm:$0xff]
        %v404 = vld [vmem:[%s361 + $0x70] sm:$0xff]
        %v405 = vld [vmem:[%s361 + $0x78] sm:$0xff]
        %v406 = vld [vmem:[%s361 + $0x80] sm:$0xff]
        %v407 = vld [vmem:[%s361 + $0x88] sm:$0xff]
        %v408 = vld [vmem:[%s361 + $0x90] sm:$0xff]
        %v409 = vld [vmem:[%s361 + $0x98] sm:$0xff]
        %v410 = vld [vmem:[%s361 + $0xa0] sm:$0xff]
        %v411 = vld [vmem:[%s361 + $0xa8] sm:$0xff]
        %v412 = vld [vmem:[%s361 + $0xb0] sm:$0xff]
        %v413 = vld [vmem:[%s361 + $0xb8] sm:$0xff]
        %v414 = vld [vmem:[%s361 + $0xc0] sm:$0xff]
        %v415 = vld [vmem:[%s361 + $0xc8] sm:$0xff]
        %v416 = vld [vmem:[%s361 + $0xd0] sm:$0xff]
        %v417 = vld [vmem:[%s361 + $0xd8] sm:$0xff]
        %v418 = vld [vmem:[%s361 + $0xe0] sm:$0xff]
        %v419 = vld [vmem:[%s361 + $0xe8] sm:$0xff]
        %v420 = vld [vmem:[%s361 + $0xf0] sm:$0xff]
        %v421 = vld [vmem:[%s361 + $0xf8] sm:$0xff]
        %v422 = vld [vmem:[%s361 + $0x100] sm:$0xff]
        %v423 = vld [vmem:[%s361 + $0x108] sm:$0xff]
        %v424 = vld [vmem:[%s361 + $0x110] sm:$0xff]
        %v425 = vld [vmem:[%s361 + $0x118] sm:$0xff]
        %v426 = vld [vmem:[%s361 + $0x120] sm:$0xff]
        %v427 = vld [vmem:[%s361 + $0x128] sm:$0xff]
        %v428 = vld [vmem:[%s361 + $0x130] sm:$0xff]
        %v429 = vld [vmem:[%s361 + $0x138] sm:$0xff]
        %v430 = vld [vmem:[%s361 + $0x140] sm:$0x33]
        %v433 = vunpack.c.l.b16 %v388
        %v434 = vunpack.c.h.b16 %v388
        %v435 = vunpack.c.l.b16 %v389
        %v436 = vpack.c.b16 %v433, %v433
        %v437 = vpack.c.b16 %v434, %v434
        %v438 = vpack.c.b16 %v435, %v435
        %v482 = vunpack.c.l.b16 %v390
        %v483 = vunpack.c.h.b16 %v390
        %v484 = vunpack.c.l.b16 %v391
        %v485 = vunpack.c.h.b16 %v391
        %v486 = vunpack.c.l.b16 %v392
        %v487 = vunpack.c.h.b16 %v392
        %v488 = vunpack.c.l.b16 %v393
        %v489 = vunpack.c.h.b16 %v393
        %v490 = vunpack.c.l.b16 %v394
        %v491 = vunpack.c.h.b16 %v394
        %v492 = vunpack.c.l.b16 %v395
        %v493 = vunpack.c.h.b16 %v395
        %v494 = vunpack.c.l.b16 %v396
        %v495 = vunpack.c.h.b16 %v396
        %v496 = vunpack.c.l.b16 %v397
        %v497 = vunpack.c.h.b16 %v397
        %v498 = vunpack.c.l.b16 %v398
        %v499 = vunpack.c.h.b16 %v398
        %v500 = vunpack.c.l.b16 %v399
        %v501 = vunpack.c.h.b16 %v399
        %v502 = vunpack.c.l.b16 %v400
        %v503 = vunpack.c.h.b16 %v400
        %v504 = vunpack.c.l.b16 %v401
        %v505 = vunpack.c.h.b16 %v401
        %v506 = vunpack.c.l.b16 %v402
        %v507 = vunpack.c.h.b16 %v402
        %v508 = vunpack.c.l.b16 %v403
        %v509 = vunpack.c.h.b16 %v403
        %v510 = vunpack.c.l.b16 %v404
        %v511 = vunpack.c.h.b16 %v404
        %v512 = vunpack.c.l.b16 %v405
        %v513 = vunpack.c.h.b16 %v405
        %v514 = vunpack.c.l.b16 %v406
        %v515 = vunpack.c.h.b16 %v406
        %v516 = vunpack.c.l.b16 %v407
        %v517 = vunpack.c.h.b16 %v407
        %v518 = vunpack.c.l.b16 %v408
        %v519 = vunpack.c.h.b16 %v408
        %v520 = vunpack.c.l.b16 %v409
        %v521 = vunpack.c.h.b16 %v409
        %v522 = vunpack.c.l.b16 %v410
        %v523 = vunpack.c.h.b16 %v410
        %v524 = vunpack.c.l.b16 %v411
        %v525 = vunpack.c.h.b16 %v411
        %v526 = vunpack.c.l.b16 %v412
        %v527 = vunpack.c.h.b16 %v412
        %v528 = vunpack.c.l.b16 %v413
        %v529 = vunpack.c.h.b16 %v413
        %v530 = vunpack.c.l.b16 %v414
        %v531 = vunpack.c.h.b16 %v414
        %v532 = vunpack.c.l.b16 %v415
        %v533 = vunpack.c.h.b16 %v415
        %v534 = vunpack.c.l.b16 %v416
        %v535 = vunpack.c.h.b16 %v416
        %v536 = vunpack.c.l.b16 %v417
        %v537 = vunpack.c.h.b16 %v417
        %v538 = vunpack.c.l.b16 %v418
        %v539 = vunpack.c.h.b16 %v418
        %v540 = vunpack.c.l.b16 %v419
        %v541 = vunpack.c.h.b16 %v419
        %v542 = vunpack.c.l.b16 %v420
        %v543 = vunpack.c.h.b16 %v420
        %v544 = vunpack.c.l.b16 %v421
        %v545 = vunpack.c.h.b16 %v421
        %v546 = vunpack.c.l.b16 %v422
        %v547 = vunpack.c.h.b16 %v422
        %v548 = vunpack.c.l.b16 %v423
        %v549 = vunpack.c.h.b16 %v423
        %v550 = vunpack.c.l.b16 %v424
        %v551 = vunpack.c.h.b16 %v424
        %v552 = vunpack.c.l.b16 %v425
        %v553 = vunpack.c.h.b16 %v425
        %v554 = vunpack.c.l.b16 %v426
        %v555 = vunpack.c.h.b16 %v426
        %v556 = vunpack.c.l.b16 %v427
        %v557 = vunpack.c.h.b16 %v427
        %v558 = vunpack.c.l.b16 %v428
        %v559 = vunpack.c.h.b16 %v428
        %v560 = vunpack.c.l.b16 %v429
        %v561 = vunpack.c.h.b16 %v429
        %v562 = vunpack.c.l.b16 %v430
        %v563 = vunpack.c.h.b16 %v430
        %v564 = vpack.c.b16 %v484, %v482
        %v565 = vpack.c.b16 %v485, %v483
        %v566 = vpack.c.b16 %v488, %v486
        %v567 = vpack.c.b16 %v489, %v487
        %v568 = vpack.c.b16 %v492, %v490
        %v569 = vpack.c.b16 %v493, %v491
        %v570 = vpack.c.b16 %v496, %v494
        %v571 = vpack.c.b16 %v497, %v495
        %v572 = vpack.c.b16 %v500, %v498
        %v573 = vpack.c.b16 %v501, %v499
        %v574 = vpack.c.b16 %v504, %v502
        %v575 = vpack.c.b16 %v505, %v503
        %v576 = vpack.c.b16 %v508, %v506
        %v577 = vpack.c.b16 %v509, %v507
        %v578 = vpack.c.b16 %v512, %v510
        %v579 = vpack.c.b16 %v513, %v511
        %v580 = vpack.c.b16 %v516, %v514
        %v581 = vpack.c.b16 %v517, %v515
        %v582 = vpack.c.b16 %v520, %v518
        %v583 = vpack.c.b16 %v521, %v519
        %v584 = vpack.c.b16 %v524, %v522
        %v585 = vpack.c.b16 %v525, %v523
        %v586 = vpack.c.b16 %v528, %v526
        %v587 = vpack.c.b16 %v529, %v527
        %v588 = vpack.c.b16 %v532, %v530
        %v589 = vpack.c.b16 %v533, %v531
        %v590 = vpack.c.b16 %v536, %v534
        %v591 = vpack.c.b16 %v537, %v535
        %v592 = vpack.c.b16 %v540, %v538
        %v593 = vpack.c.b16 %v541, %v539
        %v594 = vpack.c.b16 %v544, %v542
        %v595 = vpack.c.b16 %v545, %v543
        %v596 = vpack.c.b16 %v548, %v546
        %v597 = vpack.c.b16 %v549, %v547
        %v598 = vpack.c.b16 %v552, %v550
        %v599 = vpack.c.b16 %v553, %v551
        %v600 = vpack.c.b16 %v556, %v554
        %v601 = vpack.c.b16 %v557, %v555
        %v602 = vpack.c.b16 %v560, %v558
        %v603 = vpack.c.b16 %v561, %v559
        %v604 = vpack.c.b16 %v562, %v562
        %v605 = vpack.c.b16 %v563, %v563
        %vm646 = vcmask 556032
        %v648 = vsel %vm646, %v438, 0
        %vm650 = vcmask 1041408
        %v652 = vsel %vm650, %v604, 0
        %v655 = vsel %vm650, %v605, 0
        %657 = vmatprep.subr.bf16.mxu0 %v579
        %658 = vmatpush1.bf16.msra.mxu0 %v578
        %659 = vmatprep.subr.bf16.mxu0 %v577
        %660 = vmatpush1.bf16.msra.mxu0 %v576
        %661 = vmatprep.subr.bf16.mxu0 %v575
        %662 = vmatpush1.bf16.msra.mxu0 %v574
        %663 = vmatprep.subr.bf16.mxu0 %v573
        %664 = vmatpush1.bf16.msra.mxu0 %v572
        %665 = vmatprep.subr.bf16.mxu0 %v571
        %666 = vmatpush1.bf16.msra.mxu0 %v570
        %667 = vmatprep.subr.bf16.mxu0 %v569
        %668 = vmatpush1.bf16.msra.mxu0 %v568
        %669 = vmatprep.subr.bf16.mxu0 %v567
        %670 = vmatpush1.bf16.msra.mxu0 %v566
        %671 = vmatprep.subr.bf16.mxu0 %v565
        %672 = vmatpush1.bf16.msra.mxu0 %v564
        %673 = vmatprep.subr.bf16.mxu0 %v595
        %674 = vmatpush2.bf16.msra.mxu0 %v594
        %675 = vmatprep.subr.bf16.mxu0 %v593
        %676 = vmatpush2.bf16.msra.mxu0 %v592
        %677 = vmatprep.subr.bf16.mxu0 %v591
        %678 = vmatpush2.bf16.msra.mxu0 %v590
        %679 = vmatprep.subr.bf16.mxu0 %v589
        %680 = vmatpush2.bf16.msra.mxu0 %v588
        %681 = vmatprep.subr.bf16.mxu0 %v587
        %682 = vmatpush2.bf16.msra.mxu0 %v586
        %683 = vmatprep.subr.bf16.mxu0 %v585
        %684 = vmatpush2.bf16.msra.mxu0 %v584
        %685 = vmatprep.subr.bf16.mxu0 %v583
        %686 = vmatpush2.bf16.msra.mxu0 %v582
        %687 = vmatprep.subr.bf16.mxu0 %v581
        %688 = vmatpush2.bf16.msra.mxu0 %v580
        %689 = vmatprep.mubr.bf16.mxu0 %v437
        %690 = vmatmul.mubr.bf16.gmra.mxu0 %v436
        %v691 = vpop.f32.mrf.mxu0
        %v692 = vadd.f32 0.0, %v691
        %v693 = vpop.f32.mrf.mxu0
        %v694 = vadd.f32 0.0, %v693
        %v695 = vpop.f32.mrf.mxu0
        %v696 = vpop.f32.mrf.mxu0
        %697 = vdwg.mxu0
        %698 = vmatprep.subr.bf16.mxu0 0
        %699 = vmatpush1.bf16.msra.mxu0 0
        %700 = vmatprep.subr.bf16.mxu0 0
        %701 = vmatpush1.bf16.msra.mxu0 0
        %702 = vmatprep.subr.bf16.mxu0 0
        %703 = vmatpush1.bf16.msra.mxu0 0
        %704 = vmatprep.subr.bf16.mxu0 %v655
        %705 = vmatpush1.bf16.msra.mxu0 %v652
        %706 = vmatprep.subr.bf16.mxu0 %v603
        %707 = vmatpush1.bf16.msra.mxu0 %v602
        %708 = vmatprep.subr.bf16.mxu0 %v601
        %709 = vmatpush1.bf16.msra.mxu0 %v600
        %710 = vmatprep.subr.bf16.mxu0 %v599
        %711 = vmatpush1.bf16.msra.mxu0 %v598
        %712 = vmatprep.subr.bf16.mxu0 %v597
        %713 = vmatpush1.bf16.msra.mxu0 %v596
        %714 = vmatprep.subr.bf16.mxu0 0
        %715 = vmatpush2.bf16.msra.mxu0 0
        %716 = vmatprep.subr.bf16.mxu0 0
        %717 = vmatpush2.bf16.msra.mxu0 0
        %718 = vmatprep.subr.bf16.mxu0 0
        %719 = vmatpush2.bf16.msra.mxu0 0
        %720 = vmatprep.subr.bf16.mxu0 0
        %721 = vmatpush2.bf16.msra.mxu0 0
        %722 = vmatprep.subr.bf16.mxu0 0
        %723 = vmatpush2.bf16.msra.mxu0 0
        %724 = vmatprep.subr.bf16.mxu0 0
        %725 = vmatpush2.bf16.msra.mxu0 0
        %726 = vmatprep.subr.bf16.mxu0 0
        %727 = vmatpush2.bf16.msra.mxu0 0
        %728 = vmatprep.subr.bf16.mxu0 0
        %729 = vmatpush2.bf16.msra.mxu0 0
        %730 = vmatprep.mubr.bf16.mxu0 0
        %731 = vmatmul.mubr.bf16.gmra.mxu0 %v648
        %v732 = vpop.f32.mrf.mxu0
        %v733 = vadd.f32 %v692, %v732
        %v734 = vpop.f32.mrf.mxu0
        %v735 = vadd.f32 %v694, %v734
        %v736 = vpop.f32.mrf.mxu0
        %v737 = vpop.f32.mrf.mxu0
        %738 = vdwg.mxu0
        %s739 = smul.u32 %s15, 256
        %s740 = sshra.s32 %s739, 7
        %s741 = sand.u32 %s739, 127
        %s742 = smul.addr %s740, 8
        %s743 = scalar_lea.vmem [#allocation2], %s742
        %744 = vst [vmem:[%s743] sm:$0xff] %v733
        %745 = vst [vmem:[%s743 + $0x8] sm:$0xff] %v735
        %v746 = vld [vmem:[#allocation3] sm:$0xff]
        %v747 = vadd.f32 %v733, %v735
        %748 = vadd.xlane.f32.xlu0 %v747
        %v749 = vpop.xlane.xlu0 %748
        %v750 = vadd.f32 %v746, %v749
        %vm751 = vcmask 7168
        %752 = vst.msk [vmem:[#allocation3] sm:$0xff] %vm751, %v750
        %v753 = vld [vmem:[#allocation4] sm:$0xff]
        %v754 = vmul.f32 %v733, %v733
        %v755 = vmul.f32 %v735, %v735
        %v756 = vadd.f32 %v754, %v755
        %757 = vadd.xlane.f32.xlu0 %v756
        %v758 = vpop.xlane.xlu0 %757
        %v759 = vadd.f32 %v753, %v758
        %760 = vst.msk [vmem:[#allocation4] sm:$0xff] %vm751, %v759
        %p761 = scmp.eq.s32.totalorder %s15, 1
        // Predicated region
        $region79: #{mcu_forward.3} parent=69 // pred_check
          %p762 = pneg %p761
        $region80: #{mcu_forward.3} parent=69 // pred_check_branch
          %764 = sbr.rel (%p762) target = $region82
        $region81: #{mcu_forward.3} parent=69 // pred_region
          %v765 = vld [vmem:[#allocation3] sm:$0xff]
          %v766 = vmul.f32 %v765, 0.001953125
          %v767 = vld [vmem:[#allocation4] sm:$0xff]
          %v768 = vmul.f32 %v767, 0.001953125
          %v769 = vmul.f32 %v766, %v766
          %v770 = vsub.f32 %v768, %v769
          %v771 = vmax.f32 %v770, 0.0
          %v772 = vld [vmem:[%s2] sm:$0xff]
          %v773 = vadd.f32 %v771, 1e-05
          %v774 = vrsqrt.pop %v773
          %v775 = vmul.f32 %v772, %v774
          %v776 = vld [vmem:[%s3] sm:$0xff]
          %v777 = vmul.f32 %v766, %v775
          %v778 = vsub.f32 %v776, %v777
          %v779 = vld [vmem:[#allocation2] sm:$0xff]
          %v780 = vld [vmem:[#allocation2 + $0x8] sm:$0xff]
          %v781 = vld [vmem:[#allocation2 + $0x10] sm:$0xff]
          %v782 = vld [vmem:[#allocation2 + $0x18] sm:$0xff]
          %784 = vset.pattern.permute.xlu0 0
          %785 = vperm.xlu0 %784, %v775
          %v786 = vpop.permute.xlu0 %785
          %v788 = vmul.f32 %v779, %v786
          %v789 = vmul.f32 %v780, %v786
          %v790 = vmul.f32 %v781, %v786
          %v791 = vmul.f32 %v782, %v786
          %793 = vset.pattern.permute.xlu0 0
          %794 = vperm.xlu0 %793, %v778
          %v795 = vpop.permute.xlu0 %794
          %v797 = vadd.f32 %v788, %v795
          %v798 = vadd.f32 %v789, %v795
          %v799 = vadd.f32 %v790, %v795
          %v800 = vadd.f32 %v791, %v795
          %v801 = vmax.f32 %v797, 0.0
          %v802 = vmax.f32 %v798, 0.0
          %v803 = vmax.f32 %v799, 0.0
          %v804 = vmax.f32 %v800, 0.0
          %v805 = vpack.c.bf16 %v801, %v801
          %v806 = vpack.c.bf16 %v802, %v802
          %v807 = vpack.c.bf16 %v803, %v803
          %v808 = vpack.c.bf16 %v804, %v804
          %v813 = vunpack.c.l.b16 %v805
          %v814 = vunpack.c.l.b16 %v806
          %v815 = vunpack.c.l.b16 %v807
          %v816 = vunpack.c.l.b16 %v808
          %v817 = vpack.c.b16 %v814, %v813
          %v818 = vpack.c.b16 %v816, %v815
          %821 = vst [vmem:[%s4] sm:$0xff] %v817
          %822 = vst [vmem:[%s4 + $0x8] sm:$0xff] %v818
        $region82: #{mcu_forward.3} parent=69 // pred_fallthru
          _
        // Predicated region
        $region83: #{mcu_forward.3} parent=69 // pred_check
          %p823 = pneg %p117
        $region84: #{mcu_forward.3} parent=69 // pred_check_branch
          %825 = sbr.rel (%p823) target = $region86
        $region85: #{mcu_forward.3} parent=69 // pred_region
          _
        $region86: #{mcu_forward.3} parent=69 // pred_fallthru
          _
        // Predicated region
        $region87: #{mcu_forward.3} parent=69 // pred_check
          %p826 = pneg %p117
        $region88: #{mcu_forward.3} parent=69 // pred_check_branch
          %828 = sbr.rel (%p826) target = $region90
        $region89: #{mcu_forward.3} parent=69 // pred_region
          _
        $region90: #{mcu_forward.3} parent=69 // pred_fallthru
          _
      $region70: #{mcu_forward.3} parent=5 // pred_fallthru
        _
      %p829 = scmp.le.s32.totalorder 2, %s10
      // Predicated region
      $region91: #{mcu_forward.3} parent=5 // pred_check
        %p830 = pneg %p829
      $region92: #{mcu_forward.3} parent=5 // pred_check_branch
        %832 = sbr.rel (%p830) target = $region94
      $region93: #{mcu_forward.3} parent=5 // pred_region
        %s833 = ssub.s32 %s10, 2
      $region94: #{mcu_forward.3} parent=5 // pred_fallthru
        _
    $region6: #{mcu_forward.3} parent=1 // loop_footer
      %s14 = sadd.s32 1, %s10
    $region7: #{mcu_forward.3} parent=1 // loop_footer_branch
      %9 = sbr.rel target = $region3
    $region8: #{mcu_forward.3} parent=1 // loop_exit
      _

// kernel: mcu_forward.4
$region0: #{mcu_forward.4}
  #allocation0 [shape = 'u32[]', space=smem, size = 0x4, offset = 0x4, fixed_abs, tag = 'smem constant byte address 0x4 - core index']
  #allocation1 [shape = 'u32[144,128]{1,0:T(1,128)}', space=vmem, size = 0x12000, scoped, tag = 'internal scratch']
  #allocation2 [shape = 'f32[8,512]{1,0:T(8,128)}', space=vmem, size = 0x4000, scoped, tag = 'scratch operand']
  #allocation3 [shape = 'f32[8,1]{1,0:T(8,128)}', space=vmem, size = 0x1000, scoped, tag = 'scratch operand']
  #allocation4 [shape = 'f32[8,1]{1,0:T(8,128)}', space=vmem, size = 0x1000, scoped, tag = 'scratch operand']
  %s0 = inlined_call_operand.vmem [shape: bf16[8,392], index: 0, kind: input, shape index: {}]
  %s1 = inlined_call_operand.vmem [shape: bf16[392,512], index: 1, kind: input, shape index: {}]
  %s2 = inlined_call_operand.vmem [shape: f32[8,1], index: 2, kind: input, shape index: {}]
  %s3 = inlined_call_operand.vmem [shape: f32[8,1], index: 3, kind: input, shape index: {}]
  %s4 = inlined_call_operand.vmem [shape: bf16[8,512], index: 4, kind: output, shape index: {}]
  %s5 = sld [smem:[#allocation0]]
  $region95: #{mcu_forward.4} parent=0
    _
  %s7 = ssub.s32 1, %s5
  %s8 = scalar_select 0, %s7, %s5
  $region1: #{mcu_forward.4} parent=0
    #allocation5 [shape = 'u8[401408]{0}', space=vmem, size = 0x62000, scoped, tag = 'input window, operand 1']
    loop: start=0, step=1, limit=4
    $region2: #{mcu_forward.4} parent=1 // loop_pre_header
      _
    $region3: #{mcu_forward.4} parent=1 // loop_header
      %s10 = sphi 0, %s14
      %p11 = scmp.ge.s32.totalorder %s10, 4
      %s18 = sphi 0, %s18
      %s20 = sphi 0, %s18
      %s21 = sphi 0, %s20
      %s35 = sphi 0, %s21
      %s41 = sphi 0, %s43
      %s44 = sphi 0, %s41
      %s45 = sphi 0, %s44
      %s61 = sphi 0, %s45
      %s65 = sphi 0, %s65
      %s67 = sphi 0, %s65
      %s68 = sphi 0, %s67
      %s82 = sphi 0, %s68
      %s86 = sphi 0, %s86
      %s88 = sphi 0, %s86
      %s89 = sphi 0, %s88
      %s103 = sphi 0, %s89
      %s107 = sphi 0, %s107
      %s109 = sphi 0, %s107
      %s110 = sphi 0, %s109
      %s124 = sphi 0, %s110
    $region4: #{mcu_forward.4} parent=1 // loop_header_branch
      %13 = sbr.rel (%p11) target = $region8
    $region5: #{mcu_forward.4} parent=1 // loop_body
      %s15 = ssub.s32 %s10, 1
      %s16 = ssub.s32 %s10, 2
      %s17 = sadd.s32 %s10, 1
      %s19 = sadd.s32 %s18, 1
      %p22 = scmp.eq.s32.totalorder %s10, 1
      %p23 = scmp.ne.s32.totalorder %s18, %s20
      %p24 = scmp.eq.s32.totalorder %s10, 0
      %p25 = por %p23, %p24
      %p26 = scmp.ne.s32.totalorder %s18, %s20
      %p27 = scmp.eq.s32.totalorder %s15, 1
      %p28 = por %p26, %p27
      %p29 = scmp.ne.s32.totalorder %s20, %s21
      %p30 = scmp.eq.s32.totalorder %s15, 0
      %p31 = por %p29, %p30
      %p32 = scmp.ne.s32.totalorder %s20, %s21
      %p33 = scmp.eq.s32.totalorder %s16, 1
      %p34 = por %p32, %p33
      %p36 = scmp.ne.s32.totalorder %s21, %s35
      %p37 = scmp.eq.s32.totalorder %s16, 0
      %p38 = por %p36, %p37
      %s39 = ssub.s32 %s10, %s17
      %p40 = scmp.eq.s32.totalorder %s39, 0
      %s42 = sadd.s32 %s41, 1
      %s43 = scalar_select %p40, %s41, %s42
      %p46 = pneg %p40
      %p47 = scmp.eq.s32.totalorder %s10, 1
      %p48 = por %p46, %p47
      %p49 = scmp.ne.s32.totalorder %s41, %s44
      %p50 = scmp.eq.s32.totalorder %s10, 0
      %p51 = por %p49, %p50
      %p52 = scmp.ne.s32.totalorder %s41, %s44
      %p53 = scmp.eq.s32.totalorder %s15, 1
      %p54 = por %p52, %p53
      %p55 = scmp.ne.s32.totalorder %s44, %s45
      %p56 = scmp.eq.s32.totalorder %s15, 0
      %p57 = por %p55, %p56
      %p58 = scmp.ne.s32.totalorder %s44, %s45
      %p59 = scmp.eq.s32.totalorder %s16, 1
      %p60 = por %p58, %p59
      %p62 = scmp.ne.s32.totalorder %s45, %s61
      %p63 = scmp.eq.s32.totalorder %s16, 0
      %p64 = por %p62, %p63
      %s66 = sadd.s32 %s65, 1
      %p69 = scmp.eq.s32.totalorder %s10, 1
      %p70 = scmp.ne.s32.totalorder %s65, %s67
      %p71 = scmp.eq.s32.totalorder %s10, 0
      %p72 = por %p70, %p71
      %p73 = scmp.ne.s32.totalorder %s65, %s67
      %p74 = scmp.eq.s32.totalorder %s15, 1
      %p75 = por %p73, %p74
      %p76 = scmp.ne.s32.totalorder %s67, %s68
      %p77 = scmp.eq.s32.totalorder %s15, 0
      %p78 = por %p76, %p77
      %p79 = scmp.ne.s32.totalorder %s67, %s68
      %p80 = scmp.eq.s32.totalorder %s16, 1
      %p81 = por %p79, %p80
      %p83 = scmp.ne.s32.totalorder %s68, %s82
      %p84 = scmp.eq.s32.totalorder %s16, 0
      %p85 = por %p83, %p84
      %s87 = sadd.s32 %s86, 1
      %p90 = scmp.eq.s32.totalorder %s10, 1
      %p91 = scmp.ne.s32.totalorder %s86, %s88
      %p92 = scmp.eq.s32.totalorder %s10, 0
      %p93 = por %p91, %p92
      %p94 = scmp.ne.s32.totalorder %s86, %s88
      %p95 = scmp.eq.s32.totalorder %s15, 1
      %p96 = por %p94, %p95
      %p97 = scmp.ne.s32.totalorder %s88, %s89
      %p98 = scmp.eq.s32.totalorder %s15, 0
      %p99 = por %p97, %p98
      %p100 = scmp.ne.s32.totalorder %s88, %s89
      %p101 = scmp.eq.s32.totalorder %s16, 1
      %p102 = por %p100, %p101
      %p104 = scmp.ne.s32.totalorder %s89, %s103
      %p105 = scmp.eq.s32.totalorder %s16, 0
      %p106 = por %p104, %p105
      %s108 = sadd.s32 %s107, 1
      %p111 = scmp.eq.s32.totalorder %s10, 1
      %p112 = scmp.ne.s32.totalorder %s107, %s109
      %p113 = scmp.eq.s32.totalorder %s10, 0
      %p114 = por %p112, %p113
      %p115 = scmp.ne.s32.totalorder %s107, %s109
      %p116 = scmp.eq.s32.totalorder %s15, 1
      %p117 = por %p115, %p116
      %p118 = scmp.ne.s32.totalorder %s109, %s110
      %p119 = scmp.eq.s32.totalorder %s15, 0
      %p120 = por %p118, %p119
      %p121 = scmp.ne.s32.totalorder %s109, %s110
      %p122 = scmp.eq.s32.totalorder %s16, 1
      %p123 = por %p121, %p122
      %p125 = scmp.ne.s32.totalorder %s110, %s124
      %p126 = scmp.eq.s32.totalorder %s16, 0
      %p127 = por %p125, %p126
      %p128 = scmp.le.s32.totalorder 1, %s10
      %p129 = scmp.lt.s32.totalorder %s10, 3
      %p130 = pnand %p128, %p129
      %p131 = pneg %p130
      // Predicated region
      $region9: #{mcu_forward.4} parent=5 // pred_check
        _
      $region10: #{mcu_forward.4} parent=5 // pred_check_branch
        %133 = sbr.rel (%p130) target = $region12
      $region11: #{mcu_forward.4} parent=5 // pred_region
        %s134 = ssub.s32 %s10, 1
        // Predicated region
        $region13: #{mcu_forward.4} parent=11 // pred_check
          %p135 = pneg %p31
        $region14: #{mcu_forward.4} parent=11 // pred_check_branch
          %137 = sbr.rel (%p135) target = $region16
        $region15: #{mcu_forward.4} parent=11 // pred_region
          _
        $region16: #{mcu_forward.4} parent=11 // pred_fallthru
          _
        // Predicated region
        $region17: #{mcu_forward.4} parent=11 // pred_check
          %p138 = pneg %p78
        $region18: #{mcu_forward.4} parent=11 // pred_check_branch
          %140 = sbr.rel (%p138) target = $region20
        $region19: #{mcu_forward.4} parent=11 // pred_region
          _
        $region20: #{mcu_forward.4} parent=11 // pred_fallthru
          _
        // Predicated region
        $region21: #{mcu_forward.4} parent=11 // pred_check
          %p141 = pneg %p99
        $region22: #{mcu_forward.4} parent=11 // pred_check_branch
          %143 = sbr.rel (%p141) target = $region24
        $region23: #{mcu_forward.4} parent=11 // pred_region
          _
        $region24: #{mcu_forward.4} parent=11 // pred_fallthru
          _
      $region12: #{mcu_forward.4} parent=5 // pred_fallthru
        _
      %p144 = scmp.lt.s32.totalorder %s10, 2
      // Predicated region
      $region25: #{mcu_forward.4} parent=5 // pred_check
        %p145 = pneg %p144
      $region26: #{mcu_forward.4} parent=5 // pred_check_branch
        %147 = sbr.rel (%p145) target = $region28
      $region27: #{mcu_forward.4} parent=5 // pred_region
        // Predicated region
        $region29: #{mcu_forward.4} parent=27 // pred_check
          %p148 = pneg %p51
        $region30: #{mcu_forward.4} parent=27 // pred_check_branch
          %150 = sbr.rel (%p148) target = $region32
        $region31: #{mcu_forward.4} parent=27 // pred_region
          %s151 = sand.u32 %s41, 1
          %s152 = sand.u32 %s41, 1
          %s153 = smul.addr %s152, 392
          %s154 = scalar_lea.vmem [#allocation5], %s153
          %s155 = smul.u32 2, %s10
          %s156 = smul.addr %s155, 4
          %s157 = scalar_lea.vmem %s1, %s156
          // Predicated region
          $region33: #{mcu_forward.4} parent=31 // pred_check
            _
          $region34: #{mcu_forward.4} parent=31 // pred_check_branch
            %159 = sbr.rel (0) target = $region36
          $region35: #{mcu_forward.4} parent=31 // pred_region
            // Predicated region
            $region37: #{mcu_forward.4} parent=35 // pred_check
              _
            $region38: #{mcu_forward.4} parent=35 // pred_check_branch
              %161 = sbr.rel (0) target = $region40
            $region39: #{mcu_forward.4} parent=35 // pred_region
              // Predicated region
              $region52: #{mcu_forward.4} parent=39 // pred_check
                _
              $region53: #{mcu_forward.4} parent=39 // pred_check_branch
                %273 = sbr.rel (0) target = $region55
              $region54: #{mcu_forward.4} parent=39 // pred_region
                loop: start=0, step=1, limit=1
                $region56: #{mcu_forward.4} parent=54 // loop_pre_header
                  _
                $region57: #{mcu_forward.4} parent=54 // loop_header
                  %s275 = sphi 0, %s279
                  %p276 = scmp.ge.s32.totalorder %s275, 1
                  %s280 = sphi %s157, %s157
                  %s281 = sphi %s154, %s154
                $region58: #{mcu_forward.4} parent=54 // loop_header_branch
                  %278 = sbr.rel (%p276) target = $region62
                $region59: #{mcu_forward.4} parent=54 // loop_body
                  %v282 = vld [vmem:[%s280] sm:$0xff]
                  %283 = vst [vmem:[%s281] sm:$0xff] %v282
                  %v284 = vld [vmem:[%s280 + $0x10] sm:$0xff]
                  %285 = vst [vmem:[%s281 + $0x8] sm:$0xff] %v284
                  %v286 = vld [vmem:[%s280 + $0x20] sm:$0xff]
                  %287 = vst [vmem:[%s281 + $0x10] sm:$0xff] %v286
                  %v288 = vld [vmem:[%s280 + $0x30] sm:$0xff]
                  %289 = vst [vmem:[%s281 + $0x18] sm:$0xff] %v288
                  %v290 = vld [vmem:[%s280 + $0x40] sm:$0xff]
                  %291 = vst [vmem:[%s281 + $0x20] sm:$0xff] %v290
                  %v292 = vld [vmem:[%s280 + $0x50] sm:$0xff]
                  %293 = vst [vmem:[%s281 + $0x28] sm:$0xff] %v292
                  %v294 = vld [vmem:[%s280 + $0x60] sm:$0xff]
                  %295 = vst [vmem:[%s281 + $0x30] sm:$0xff] %v294
                  %v296 = vld [vmem:[%s280 + $0x70] sm:$0xff]
                  %297 = vst [vmem:[%s281 + $0x38] sm:$0xff] %v296
                  %v298 = vld [vmem:[%s280 + $0x80] sm:$0xff]
                  %299 = vst [vmem:[%s281 + $0x40] sm:$0xff] %v298
                  %v300 = vld [vmem:[%s280 + $0x90] sm:$0xff]
                  %301 = vst [vmem:[%s281 + $0x48] sm:$0xff] %v300
                  %v302 = vld [vmem:[%s280 + $0xa0] sm:$0xff]
                  %303 = vst [vmem:[%s281 + $0x50] sm:$0xff] %v302
                  %v304 = vld [vmem:[%s280 + $0xb0] sm:$0xff]
                  %305 = vst [vmem:[%s281 + $0x58] sm:$0xff] %v304
                  %v306 = vld [vmem:[%s280 + $0xc0] sm:$0xff]
                  %307 = vst [vmem:[%s281 + $0x60] sm:$0xff] %v306
                  %v308 = vld [vmem:[%s280 + $0xd0] sm:$0xff]
                  %309 = vst [vmem:[%s281 + $0x68] sm:$0xff] %v308
                  %v310 = vld [vmem:[%s280 + $0xe0] sm:$0xff]
                  %311 = vst [vmem:[%s281 + $0x70] sm:$0xff] %v310
                  %v312 = vld [vmem:[%s280 + $0xf0] sm:$0xff]
                  %313 = vst [vmem:[%s281 + $0x78] sm:$0xff] %v312
                  %v314 = vld [vmem:[%s280 + $0x100] sm:$0xff]
                  %315 = vst [vmem:[%s281 + $0x80] sm:$0xff] %v314
                  %v316 = vld [vmem:[%s280 + $0x110] sm:$0xff]
                  %317 = vst [vmem:[%s281 + $0x88] sm:$0xff] %v316
                  %v318 = vld [vmem:[%s280 + $0x120] sm:$0xff]
                  %319 = vst [vmem:[%s281 + $0x90] sm:$0xff] %v318
                  %v320 = vld [vmem:[%s280 + $0x130] sm:$0xff]
                  %321 = vst [vmem:[%s281 + $0x98] sm:$0xff] %v320
                  %v322 = vld [vmem:[%s280 + $0x140] sm:$0xff]
                  %323 = vst [vmem:[%s281 + $0xa0] sm:$0xff] %v322
                  %v324 = vld [vmem:[%s280 + $0x150] sm:$0xff]
                  %325 = vst [vmem:[%s281 + $0xa8] sm:$0xff] %v324
                  %v326 = vld [vmem:[%s280 + $0x160] sm:$0xff]
                  %327 = vst [vmem:[%s281 + $0xb0] sm:$0xff] %v326
                  %v328 = vld [vmem:[%s280 + $0x170] sm:$0xff]
                  %329 = vst [vmem:[%s281 + $0xb8] sm:$0xff] %v328
                  %v330 = vld [vmem:[%s280 + $0x180] sm:$0xff]
                  %331 = vst [vmem:[%s281 + $0xc0] sm:$0xff] %v330
                  %v332 = vld [vmem:[%s280 + $0x190] sm:$0xff]
                  %333 = vst [vmem:[%s281 + $0xc8] sm:$0xff] %v332
                  %v334 = vld [vmem:[%s280 + $0x1a0] sm:$0xff]
                  %335 = vst [vmem:[%s281 + $0xd0] sm:$0xff] %v334
                  %v336 = vld [vmem:[%s280 + $0x1b0] sm:$0xff]
                  %337 = vst [vmem:[%s281 + $0xd8] sm:$0xff] %v336
                  %v338 = vld [vmem:[%s280 + $0x1c0] sm:$0xff]
                  %339 = vst [vmem:[%s281 + $0xe0] sm:$0xff] %v338
                  %v340 = vld [vmem:[%s280 + $0x1d0] sm:$0xff]
                  %341 = vst [vmem:[%s281 + $0xe8] sm:$0xff] %v340
                  %v342 = vld [vmem:[%s280 + $0x1e0] sm:$0xff]
                  %343 = vst [vmem:[%s281 + $0xf0] sm:$0xff] %v342
                  %v344 = vld [vmem:[%s280 + $0x1f0] sm:$0xff]
                  %345 = vst [vmem:[%s281 + $0xf8] sm:$0xff] %v344
                  %v346 = vld [vmem:[%s280 + $0x200] sm:$0xff]
                  %347 = vst [vmem:[%s281 + $0x100] sm:$0xff] %v346
                  %v348 = vld [vmem:[%s280 + $0x210] sm:$0xff]
                  %349 = vst [vmem:[%s281 + $0x108] sm:$0xff] %v348
                  %v350 = vld [vmem:[%s280 + $0x220] sm:$0xff]
                  %351 = vst [vmem:[%s281 + $0x110] sm:$0xff] %v350
                  %v352 = vld [vmem:[%s280 + $0x230] sm:$0xff]
                  %353 = vst [vmem:[%s281 + $0x118] sm:$0xff] %v352
                  %v354 = vld [vmem:[%s280 + $0x240] sm:$0xff]
                  %355 = vst [vmem:[%s281 + $0x120] sm:$0xff] %v354
                  %v356 = vld [vmem:[%s280 + $0x250] sm:$0xff]
                  %357 = vst [vmem:[%s281 + $0x128] sm:$0xff] %v356
                  %v358 = vld [vmem:[%s280 + $0x260] sm:$0xff]
                  %359 = vst [vmem:[%s281 + $0x130] sm:$0xff] %v358
                  %v360 = vld [vmem:[%s280 + $0x270] sm:$0xff]
                  %361 = vst [vmem:[%s281 + $0x138] sm:$0xff] %v360
                  %v362 = vld [vmem:[%s280 + $0x280] sm:$0xff]
                  %363 = vst [vmem:[%s281 + $0x140] sm:$0xff] %v362
                  %v364 = vld [vmem:[%s280 + $0x290] sm:$0xff]
                  %365 = vst [vmem:[%s281 + $0x148] sm:$0xff] %v364
                  %v366 = vld [vmem:[%s280 + $0x2a0] sm:$0xff]
                  %367 = vst [vmem:[%s281 + $0x150] sm:$0xff] %v366
                  %v368 = vld [vmem:[%s280 + $0x2b0] sm:$0xff]
                  %369 = vst [vmem:[%s281 + $0x158] sm:$0xff] %v368
                  %v370 = vld [vmem:[%s280 + $0x2c0] sm:$0xff]
                  %371 = vst [vmem:[%s281 + $0x160] sm:$0xff] %v370
                  %v372 = vld [vmem:[%s280 + $0x2d0] sm:$0xff]
                  %373 = vst [vmem:[%s281 + $0x168] sm:$0xff] %v372
                  %v374 = vld [vmem:[%s280 + $0x2e0] sm:$0xff]
                  %375 = vst [vmem:[%s281 + $0x170] sm:$0xff] %v374
                  %v376 = vld [vmem:[%s280 + $0x2f0] sm:$0xff]
                  %377 = vst [vmem:[%s281 + $0x178] sm:$0xff] %v376
                  %v378 = vld [vmem:[%s280 + $0x300] sm:$0xff]
                  %379 = vst [vmem:[%s281 + $0x180] sm:$0xff] %v378
                $region60: #{mcu_forward.4} parent=54 // loop_footer
                  %s279 = sadd.s32 1, %s275
                $region61: #{mcu_forward.4} parent=54 // loop_footer_branch
                  %274 = sbr.rel target = $region57
                $region62: #{mcu_forward.4} parent=54 // loop_exit
                  _
              $region55: #{mcu_forward.4} parent=39 // pred_fallthru
                _
              // Predicated region
              $region63: #{mcu_forward.4} parent=39 // pred_check
                _
              $region64: #{mcu_forward.4} parent=39 // pred_check_branch
                %381 = sbr.rel target = $region66
              $region65: #{mcu_forward.4} parent=39 // pred_region
                _
              $region66: #{mcu_forward.4} parent=39 // pred_fallthru
                _
            $region40: #{mcu_forward.4} parent=35 // pred_fallthru
              _
            // Predicated region
            $region41: #{mcu_forward.4} parent=35 // pred_check
              _
            $region42: #{mcu_forward.4} parent=35 // pred_check_branch
              %163 = sbr.rel target = $region44
            $region43: #{mcu_forward.4} parent=35 // pred_region
              %s165 = ssub.s32 256, 1
              loop: start=0, step=1, limit=1
              $region45: #{mcu_forward.4} parent=43 // loop_pre_header
                _
              $region46: #{mcu_forward.4} parent=43 // loop_header
                %s167 = sphi 0, %s171
                %p168 = scmp.ge.s32.totalorder %s167, 1
                %s172 = sphi %s157, %s157
                %s173 = sphi %s154, %s154
              $region47: #{mcu_forward.4} parent=43 // loop_header_branch
                %170 = sbr.rel (%p168) target = $region51
              $region48: #{mcu_forward.4} parent=43 // loop_body
                %v174 = vld [vmem:[%s172] sm:%s165]
                %175 = vst [vmem:[%s173] sm:%s165] %v174
                %v176 = vld [vmem:[%s172 + $0x10] sm:%s165]
                %177 = vst [vmem:[%s173 + $0x8] sm:%s165] %v176
                %v178 = vld [vmem:[%s172 + $0x20] sm:%s165]
                %179 = vst [vmem:[%s173 + $0x10] sm:%s165] %v178
                %v180 = vld [vmem:[%s172 + $0x30] sm:%s165]
                %181 = vst [vmem:[%s173 + $0x18] sm:%s165] %v180
                %v182 = vld [vmem:[%s172 + $0x40] sm:%s165]
                %183 = vst [vmem:[%s173 + $0x20] sm:%s165] %v182
                %v184 = vld [vmem:[%s172 + $0x50] sm:%s165]
                %185 = vst [vmem:[%s173 + $0x28] sm:%s165] %v184
                %v186 = vld [vmem:[%s172 + $0x60] sm:%s165]
                %187 = vst [vmem:[%s173 + $0x30] sm:%s165] %v186
                %v188 = vld [vmem:[%s172 + $0x70] sm:%s165]
                %189 = vst [vmem:[%s173 + $0x38] sm:%s165] %v188
                %v190 = vld [vmem:[%s172 + $0x80] sm:%s165]
                %191 = vst [vmem:[%s173 + $0x40] sm:%s165] %v190
                %v192 = vld [vmem:[%s172 + $0x90] sm:%s165]
                %193 = vst [vmem:[%s173 + $0x48] sm:%s165] %v192
                %v194 = vld [vmem:[%s172 + $0xa0] sm:%s165]
                %195 = vst [vmem:[%s173 + $0x50] sm:%s165] %v194
                %v196 = vld [vmem:[%s172 + $0xb0] sm:%s165]
                %197 = vst [vmem:[%s173 + $0x58] sm:%s165] %v196
                %v198 = vld [vmem:[%s172 + $0xc0] sm:%s165]
                %199 = vst [vmem:[%s173 + $0x60] sm:%s165] %v198
                %v200 = vld [vmem:[%s172 + $0xd0] sm:%s165]
                %201 = vst [vmem:[%s173 + $0x68] sm:%s165] %v200
                %v202 = vld [vmem:[%s172 + $0xe0] sm:%s165]
                %203 = vst [vmem:[%s173 + $0x70] sm:%s165] %v202
                %v204 = vld [vmem:[%s172 + $0xf0] sm:%s165]
                %205 = vst [vmem:[%s173 + $0x78] sm:%s165] %v204
                %v206 = vld [vmem:[%s172 + $0x100] sm:%s165]
                %207 = vst [vmem:[%s173 + $0x80] sm:%s165] %v206
                %v208 = vld [vmem:[%s172 + $0x110] sm:%s165]
                %209 = vst [vmem:[%s173 + $0x88] sm:%s165] %v208
                %v210 = vld [vmem:[%s172 + $0x120] sm:%s165]
                %211 = vst [vmem:[%s173 + $0x90] sm:%s165] %v210
                %v212 = vld [vmem:[%s172 + $0x130] sm:%s165]
                %213 = vst [vmem:[%s173 + $0x98] sm:%s165] %v212
                %v214 = vld [vmem:[%s172 + $0x140] sm:%s165]
                %215 = vst [vmem:[%s173 + $0xa0] sm:%s165] %v214
                %v216 = vld [vmem:[%s172 + $0x150] sm:%s165]
                %217 = vst [vmem:[%s173 + $0xa8] sm:%s165] %v216
                %v218 = vld [vmem:[%s172 + $0x160] sm:%s165]
                %219 = vst [vmem:[%s173 + $0xb0] sm:%s165] %v218
                %v220 = vld [vmem:[%s172 + $0x170] sm:%s165]
                %221 = vst [vmem:[%s173 + $0xb8] sm:%s165] %v220
                %v222 = vld [vmem:[%s172 + $0x180] sm:%s165]
                %223 = vst [vmem:[%s173 + $0xc0] sm:%s165] %v222
                %v224 = vld [vmem:[%s172 + $0x190] sm:%s165]
                %225 = vst [vmem:[%s173 + $0xc8] sm:%s165] %v224
                %v226 = vld [vmem:[%s172 + $0x1a0] sm:%s165]
                %227 = vst [vmem:[%s173 + $0xd0] sm:%s165] %v226
                %v228 = vld [vmem:[%s172 + $0x1b0] sm:%s165]
                %229 = vst [vmem:[%s173 + $0xd8] sm:%s165] %v228
                %v230 = vld [vmem:[%s172 + $0x1c0] sm:%s165]
                %231 = vst [vmem:[%s173 + $0xe0] sm:%s165] %v230
                %v232 = vld [vmem:[%s172 + $0x1d0] sm:%s165]
                %233 = vst [vmem:[%s173 + $0xe8] sm:%s165] %v232
                %v234 = vld [vmem:[%s172 + $0x1e0] sm:%s165]
                %235 = vst [vmem:[%s173 + $0xf0] sm:%s165] %v234
                %v236 = vld [vmem:[%s172 + $0x1f0] sm:%s165]
                %237 = vst [vmem:[%s173 + $0xf8] sm:%s165] %v236
                %v238 = vld [vmem:[%s172 + $0x200] sm:%s165]
                %239 = vst [vmem:[%s173 + $0x100] sm:%s165] %v238
                %v240 = vld [vmem:[%s172 + $0x210] sm:%s165]
                %241 = vst [vmem:[%s173 + $0x108] sm:%s165] %v240
                %v242 = vld [vmem:[%s172 + $0x220] sm:%s165]
                %243 = vst [vmem:[%s173 + $0x110] sm:%s165] %v242
                %v244 = vld [vmem:[%s172 + $0x230] sm:%s165]
                %245 = vst [vmem:[%s173 + $0x118] sm:%s165] %v244
                %v246 = vld [vmem:[%s172 + $0x240] sm:%s165]
                %247 = vst [vmem:[%s173 + $0x120] sm:%s165] %v246
                %v248 = vld [vmem:[%s172 + $0x250] sm:%s165]
                %249 = vst [vmem:[%s173 + $0x128] sm:%s165] %v248
                %v250 = vld [vmem:[%s172 + $0x260] sm:%s165]
                %251 = vst [vmem:[%s173 + $0x130] sm:%s165] %v250
                %v252 = vld [vmem:[%s172 + $0x270] sm:%s165]
                %253 = vst [vmem:[%s173 + $0x138] sm:%s165] %v252
                %v254 = vld [vmem:[%s172 + $0x280] sm:%s165]
                %255 = vst [vmem:[%s173 + $0x140] sm:%s165] %v254
                %v256 = vld [vmem:[%s172 + $0x290] sm:%s165]
                %257 = vst [vmem:[%s173 + $0x148] sm:%s165] %v256
                %v258 = vld [vmem:[%s172 + $0x2a0] sm:%s165]
                %259 = vst [vmem:[%s173 + $0x150] sm:%s165] %v258
                %v260 = vld [vmem:[%s172 + $0x2b0] sm:%s165]
                %261 = vst [vmem:[%s173 + $0x158] sm:%s165] %v260
                %v262 = vld [vmem:[%s172 + $0x2c0] sm:%s165]
                %263 = vst [vmem:[%s173 + $0x160] sm:%s165] %v262
                %v264 = vld [vmem:[%s172 + $0x2d0] sm:%s165]
                %265 = vst [vmem:[%s173 + $0x168] sm:%s165] %v264
                %v266 = vld [vmem:[%s172 + $0x2e0] sm:%s165]
                %267 = vst [vmem:[%s173 + $0x170] sm:%s165] %v266
                %v268 = vld [vmem:[%s172 + $0x2f0] sm:%s165]
                %269 = vst [vmem:[%s173 + $0x178] sm:%s165] %v268
                %v270 = vld [vmem:[%s172 + $0x300] sm:%s165]
                %271 = vst [vmem:[%s173 + $0x180] sm:%s165] %v270
              $region49: #{mcu_forward.4} parent=43 // loop_footer
                %s171 = sadd.s32 1, %s167
              $region50: #{mcu_forward.4} parent=43 // loop_footer_branch
                %166 = sbr.rel target = $region46
              $region51: #{mcu_forward.4} parent=43 // loop_exit
                _
            $region44: #{mcu_forward.4} parent=35 // pred_fallthru
              _
          $region36: #{mcu_forward.4} parent=31 // pred_fallthru
            _
          %382 = vnop
        $region32: #{mcu_forward.4} parent=27 // pred_fallthru
          _
      $region28: #{mcu_forward.4} parent=5 // pred_fallthru
        _
      %p383 = scmp.le.s32.totalorder 1, %s10
      %p384 = scmp.lt.s32.totalorder %s10, 3
      %p385 = pnand %p383, %p384
      %p386 = pneg %p385
      // Predicated region
      $region67: #{mcu_forward.4} parent=5 // pred_check
        _
      $region68: #{mcu_forward.4} parent=5 // pred_check_branch
        %388 = sbr.rel (%p385) target = $region70
      $region69: #{mcu_forward.4} parent=5 // pred_region
        %s389 = ssub.s32 %s10, 1
        %s390 = sand.u32 %s44, 1
        %s391 = sand.u32 %s44, 1
        %s392 = smul.addr %s391, 392
        %s393 = scalar_lea.vmem [#allocation5], %s392
        // Predicated region
        $region71: #{mcu_forward.4} parent=69 // pred_check
          %p394 = pneg %p57
        $region72: #{mcu_forward.4} parent=69 // pred_check_branch
          %396 = sbr.rel (%p394) target = $region74
        $region73: #{mcu_forward.4} parent=69 // pred_region
          _
        $region74: #{mcu_forward.4} parent=69 // pred_fallthru
          _
        %p397 = pneg %p31
        %p398 = pneg %p28
        %s399 = sand.u32 %s44, 1
        %s400 = sand.u32 %s44, 1
        %s401 = smul.addr %s400, 392
        %s402 = scalar_lea.vmem [#allocation5], %s401
        %p403 = pneg %p57
        %p404 = pneg %p54
        %p405 = pneg %p78
        %p406 = pneg %p75
        %p407 = pneg %p99
        %p408 = pneg %p96
        %p409 = pneg %p120
        %p410 = pneg %p117
        %s411 = smul.u32 2, %s15
        %p413 = scmp.eq.s32.totalorder %s15, 0
        // Predicated region
        $region75: #{mcu_forward.4} parent=69 // pred_check
          %p414 = pneg %p413
        $region76: #{mcu_forward.4} parent=69 // pred_check_branch
          %416 = sbr.rel (%p414) target = $region78
        $region77: #{mcu_forward.4} parent=69 // pred_region
          %vm417 = vcmask 7168
          %418 = vst.msk [vmem:[#allocation3] sm:$0xff] %vm417, 0.0
          %419 = vst.msk [vmem:[#allocation4] sm:$0xff] %vm417, 0.0
        $region78: #{mcu_forward.4} parent=69 // pred_fallthru
          _
        %v420 = vld [vmem:[%s0] sm:$0xff]
        %v421 = vld [vmem:[%s0 + $0x8] sm:$0xff]
        %v422 = vld [vmem:[%s393] sm:$0xff]
        %v423 = vld [vmem:[%s393 + $0x8] sm:$0xff]
        %v424 = vld [vmem:[%s393 + $0x10] sm:$0xff]
        %v425 = vld [vmem:[%s393 + $0x18] sm:$0xff]
        %v426 = vld [vmem:[%s393 + $0x20] sm:$0xff]
        %v427 = vld [vmem:[%s393 + $0x28] sm:$0xff]
        %v428 = vld [vmem:[%s393 + $0x30] sm:$0xff]
        %v429 = vld [vmem:[%s393 + $0x38] sm:$0xff]
        %v430 = vld [vmem:[%s393 + $0x40] sm:$0xff]
        %v431 = vld [vmem:[%s393 + $0x48] sm:$0xff]
        %v432 = vld [vmem:[%s393 + $0x50] sm:$0xff]
        %v433 = vld [vmem:[%s393 + $0x58] sm:$0xff]
        %v434 = vld [vmem:[%s393 + $0x60] sm:$0xff]
        %v435 = vld [vmem:[%s393 + $0x68] sm:$0xff]
        %v436 = vld [vmem:[%s393 + $0x70] sm:$0xff]
        %v437 = vld [vmem:[%s393 + $0x78] sm:$0xff]
        %v438 = vld [vmem:[%s393 + $0x80] sm:$0xff]
        %v439 = vld [vmem:[%s393 + $0x88] sm:$0xff]
        %v440 = vld [vmem:[%s393 + $0x90] sm:$0xff]
        %v441 = vld [vmem:[%s393 + $0x98] sm:$0xff]
        %v442 = vld [vmem:[%s393 + $0xa0] sm:$0xff]
        %v443 = vld [vmem:[%s393 + $0xa8] sm:$0xff]
        %v444 = vld [vmem:[%s393 + $0xb0] sm:$0xff]
        %v445 = vld [vmem:[%s393 + $0xb8] sm:$0xff]
        %v446 = vld [vmem:[%s393 + $0xc0] sm:$0xff]
        %v447 = vld [vmem:[%s393 + $0xc8] sm:$0xff]
        %v448 = vld [vmem:[%s393 + $0xd0] sm:$0xff]
        %v449 = vld [vmem:[%s393 + $0xd8] sm:$0xff]
        %v450 = vld [vmem:[%s393 + $0xe0] sm:$0xff]
        %v451 = vld [vmem:[%s393 + $0xe8] sm:$0xff]
        %v452 = vld [vmem:[%s393 + $0xf0] sm:$0xff]
        %v453 = vld [vmem:[%s393 + $0xf8] sm:$0xff]
        %v454 = vld [vmem:[%s393 + $0x100] sm:$0xff]
        %v455 = vld [vmem:[%s393 + $0x108] sm:$0xff]
        %v456 = vld [vmem:[%s393 + $0x110] sm:$0xff]
        %v457 = vld [vmem:[%s393 + $0x118] sm:$0xff]
        %v458 = vld [vmem:[%s393 + $0x120] sm:$0xff]
        %v459 = vld [vmem:[%s393 + $0x128] sm:$0xff]
        %v460 = vld [vmem:[%s393 + $0x130] sm:$0xff]
        %v461 = vld [vmem:[%s393 + $0x138] sm:$0xff]
        %v462 = vld [vmem:[%s393 + $0x140] sm:$0xff]
        %v463 = vld [vmem:[%s393 + $0x148] sm:$0xff]
        %v464 = vld [vmem:[%s393 + $0x150] sm:$0xff]
        %v465 = vld [vmem:[%s393 + $0x158] sm:$0xff]
        %v466 = vld [vmem:[%s393 + $0x160] sm:$0xff]
        %v467 = vld [vmem:[%s393 + $0x168] sm:$0xff]
        %v468 = vld [vmem:[%s393 + $0x170] sm:$0xff]
        %v469 = vld [vmem:[%s393 + $0x178] sm:$0xff]
        %v470 = vld [vmem:[%s393 + $0x180] sm:$0xff]
        %v473 = vunpack.c.l.b16 %v420
        %v474 = vunpack.c.h.b16 %v420
        %v475 = vunpack.c.l.b16 %v421
        %v476 = vunpack.c.h.b16 %v421
        %v477 = vpack.c.b16 %v473, %v473
        %v478 = vpack.c.b16 %v474, %v474
        %v479 = vpack.c.b16 %v475, %v475
        %v480 = vpack.c.b16 %v476, %v476
        %v533 = vunpack.c.l.b16 %v422
        %v534 = vunpack.c.h.b16 %v422
        %v535 = vunpack.c.l.b16 %v423
        %v536 = vunpack.c.h.b16 %v423
        %v537 = vunpack.c.l.b16 %v424
        %v538 = vunpack.c.h.b16 %v424
        %v539 = vunpack.c.l.b16 %v425
        %v540 = vunpack.c.h.b16 %v425
        %v541 = vunpack.c.l.b16 %v426
        %v542 = vunpack.c.h.b16 %v426
        %v543 = vunpack.c.l.b16 %v427
        %v544 = vunpack.c.h.b16 %v427
        %v545 = vunpack.c.l.b16 %v428
        %v546 = vunpack.c.h.b16 %v428
        %v547 = vunpack.c.l.b16 %v429
        %v548 = vunpack.c.h.b16 %v429
        %v549 = vunpack.c.l.b16 %v430
        %v550 = vunpack.c.h.b16 %v430
        %v551 = vunpack.c.l.b16 %v431
        %v552 = vunpack.c.h.b16 %v431
        %v553 = vunpack.c.l.b16 %v432
        %v554 = vunpack.c.h.b16 %v432
        %v555 = vunpack.c.l.b16 %v433
        %v556 = vunpack.c.h.b16 %v433
        %v557 = vunpack.c.l.b16 %v434
        %v558 = vunpack.c.h.b16 %v434
        %v559 = vunpack.c.l.b16 %v435
        %v560 = vunpack.c.h.b16 %v435
        %v561 = vunpack.c.l.b16 %v436
        %v562 = vunpack.c.h.b16 %v436
        %v563 = vunpack.c.l.b16 %v437
        %v564 = vunpack.c.h.b16 %v437
        %v565 = vunpack.c.l.b16 %v438
        %v566 = vunpack.c.h.b16 %v438
        %v567 = vunpack.c.l.b16 %v439
        %v568 = vunpack.c.h.b16 %v439
        %v569 = vunpack.c.l.b16 %v440
        %v570 = vunpack.c.h.b16 %v440
        %v571 = vunpack.c.l.b16 %v441
        %v572 = vunpack.c.h.b16 %v441
        %v573 = vunpack.c.l.b16 %v442
        %v574 = vunpack.c.h.b16 %v442
        %v575 = vunpack.c.l.b16 %v443
        %v576 = vunpack.c.h.b16 %v443
        %v577 = vunpack.c.l.b16 %v444
        %v578 = vunpack.c.h.b16 %v444
        %v579 = vunpack.c.l.b16 %v445
        %v580 = vunpack.c.h.b16 %v445
        %v581 = vunpack.c.l.b16 %v446
        %v582 = vunpack.c.h.b16 %v446
        %v583 = vunpack.c.l.b16 %v447
        %v584 = vunpack.c.h.b16 %v447
        %v585 = vunpack.c.l.b16 %v448
        %v586 = vunpack.c.h.b16 %v448
        %v587 = vunpack.c.l.b16 %v449
        %v588 = vunpack.c.h.b16 %v449
        %v589 = vunpack.c.l.b16 %v450
        %v590 = vunpack.c.h.b16 %v450
        %v591 = vunpack.c.l.b16 %v451
        %v592 = vunpack.c.h.b16 %v451
        %v593 = vunpack.c.l.b16 %v452
        %v594 = vunpack.c.h.b16 %v452
        %v595 = vunpack.c.l.b16 %v453
        %v596 = vunpack.c.h.b16 %v453
        %v597 = vunpack.c.l.b16 %v454
        %v598 = vunpack.c.h.b16 %v454
        %v599 = vunpack.c.l.b16 %v455
        %v600 = vunpack.c.h.b16 %v455
        %v601 = vunpack.c.l.b16 %v456
        %v602 = vunpack.c.h.b16 %v456
        %v603 = vunpack.c.l.b16 %v457
        %v604 = vunpack.c.h.b16 %v457
        %v605 = vunpack.c.l.b16 %v458
        %v606 = vunpack.c.h.b16 %v458
        %v607 = vunpack.c.l.b16 %v459
        %v608 = vunpack.c.h.b16 %v459
        %v609 = vunpack.c.l.b16 %v460
        %v610 = vunpack.c.h.b16 %v460
        %v611 = vunpack.c.l.b16 %v461
        %v612 = vunpack.c.h.b16 %v461
        %v613 = vunpack.c.l.b16 %v462
        %v614 = vunpack.c.h.b16 %v462
        %v615 = vunpack.c.l.b16 %v463
        %v616 = vunpack.c.h.b16 %v463
        %v617 = vunpack.c.l.b16 %v464
        %v618 = vunpack.c.h.b16 %v464
        %v619 = vunpack.c.l.b16 %v465
        %v620 = vunpack.c.h.b16 %v465
        %v621 = vunpack.c.l.b16 %v466
        %v622 = vunpack.c.h.b16 %v466
        %v623 = vunpack.c.l.b16 %v467
        %v624 = vunpack.c.h.b16 %v467
        %v625 = vunpack.c.l.b16 %v468
        %v626 = vunpack.c.h.b16 %v468
        %v627 = vunpack.c.l.b16 %v469
        %v628 = vunpack.c.h.b16 %v469
        %v629 = vunpack.c.l.b16 %v470
        %v630 = vunpack.c.h.b16 %v470
        %v631 = vpack.c.b16 %v535, %v533
        %v632 = vpack.c.b16 %v536, %v534
        %v633 = vpack.c.b16 %v539, %v537
        %v634 = vpack.c.b16 %v540, %v538
        %v635 = vpack.c.b16 %v543, %v541
        %v636 = vpack.c.b16 %v544, %v542
        %v637 = vpack.c.b16 %v547, %v545
        %v638 = vpack.c.b16 %v548, %v546
        %v639 = vpack.c.b16 %v551, %v549
        %v640 = vpack.c.b16 %v552, %v550
        %v641 = vpack.c.b16 %v555, %v553
        %v642 = vpack.c.b16 %v556, %v554
        %v643 = vpack.c.b16 %v559, %v557
        %v644 = vpack.c.b16 %v560, %v558
        %v645 = vpack.c.b16 %v563, %v561
        %v646 = vpack.c.b16 %v564, %v562
        %v647 = vpack.c.b16 %v567, %v565
        %v648 = vpack.c.b16 %v568, %v566
        %v649 = vpack.c.b16 %v571, %v569
        %v650 = vpack.c.b16 %v572, %v570
        %v651 = vpack.c.b16 %v575, %v573
        %v652 = vpack.c.b16 %v576, %v574
        %v653 = vpack.c.b16 %v579, %v577
        %v654 = vpack.c.b16 %v580, %v578
        %v655 = vpack.c.b16 %v583, %v581
        %v656 = vpack.c.b16 %v584, %v582
        %v657 = vpack.c.b16 %v587, %v585
        %v658 = vpack.c.b16 %v588, %v586
        %v659 = vpack.c.b16 %v591, %v589
        %v660 = vpack.c.b16 %v592, %v590
        %v661 = vpack.c.b16 %v595, %v593
        %v662 = vpack.c.b16 %v596, %v594
        %v663 = vpack.c.b16 %v599, %v597
        %v664 = vpack.c.b16 %v600, %v598
        %v665 = vpack.c.b16 %v603, %v601
        %v666 = vpack.c.b16 %v604, %v602
        %v667 = vpack.c.b16 %v607, %v605
        %v668 = vpack.c.b16 %v608, %v606
        %v669 = vpack.c.b16 %v611, %v609
        %v670 = vpack.c.b16 %v612, %v610
        %v671 = vpack.c.b16 %v615, %v613
        %v672 = vpack.c.b16 %v616, %v614
        %v673 = vpack.c.b16 %v619, %v617
        %v674 = vpack.c.b16 %v620, %v618
        %v675 = vpack.c.b16 %v623, %v621
        %v676 = vpack.c.b16 %v624, %v622
        %v677 = vpack.c.b16 %v627, %v625
        %v678 = vpack.c.b16 %v628, %v626
        %v679 = vpack.c.b16 %v629, %v629
        %v680 = vpack.c.b16 %v630, %v630
        %vm729 = vcmask 64512
        %v731 = vsel %vm729, %v480, 0
        %vm733 = vcmask 1043456
        %v735 = vsel %vm733, %v679, 0
        %v738 = vsel %vm733, %v680, 0
        %740 = vmatprep.subr.bf16.mxu0 %v646
        %741 = vmatpush1.bf16.msra.mxu0 %v645
        %742 = vmatprep.subr.bf16.mxu0 %v644
        %743 = vmatpush1.bf16.msra.mxu0 %v643
        %744 = vmatprep.subr.bf16.mxu0 %v642
        %745 = vmatpush1.bf16.msra.mxu0 %v641
        %746 = vmatprep.subr.bf16.mxu0 %v640
        %747 = vmatpush1.bf16.msra.mxu0 %v639
        %748 = vmatprep.subr.bf16.mxu0 %v638
        %749 = vmatpush1.bf16.msra.mxu0 %v637
        %750 = vmatprep.subr.bf16.mxu0 %v636
        %751 = vmatpush1.bf16.msra.mxu0 %v635
        %752 = vmatprep.subr.bf16.mxu0 %v634
        %753 = vmatpush1.bf16.msra.mxu0 %v633
        %754 = vmatprep.subr.bf16.mxu0 %v632
        %755 = vmatpush1.bf16.msra.mxu0 %v631
        %756 = vmatprep.subr.bf16.mxu0 %v662
        %757 = vmatpush2.bf16.msra.mxu0 %v661
        %758 = vmatprep.subr.bf16.mxu0 %v660
        %759 = vmatpush2.bf16.msra.mxu0 %v659
        %760 = vmatprep.subr.bf16.mxu0 %v658
        %761 = vmatpush2.bf16.msra.mxu0 %v657
        %762 = vmatprep.subr.bf16.mxu0 %v656
        %763 = vmatpush2.bf16.msra.mxu0 %v655
        %764 = vmatprep.subr.bf16.mxu0 %v654
        %765 = vmatpush2.bf16.msra.mxu0 %v653
        %766 = vmatprep.subr.bf16.mxu0 %v652
        %767 = vmatpush2.bf16.msra.mxu0 %v651
        %768 = vmatprep.subr.bf16.mxu0 %v650
        %769 = vmatpush2.bf16.msra.mxu0 %v649
        %770 = vmatprep.subr.bf16.mxu0 %v648
        %771 = vmatpush2.bf16.msra.mxu0 %v647
        %772 = vmatprep.mubr.bf16.mxu0 %v478
        %773 = vmatmul.mubr.bf16.gmra.mxu0 %v477
        %v774 = vpop.f32.mrf.mxu0
        %v775 = vadd.f32 0.0, %v774
        %v776 = vpop.f32.mrf.mxu0
        %v777 = vadd.f32 0.0, %v776
        %v778 = vpop.f32.mrf.mxu0
        %v779 = vpop.f32.mrf.mxu0
        %780 = vdwg.mxu0
        %781 = vmatprep.subr.bf16.mxu0 %v678
        %782 = vmatpush1.bf16.msra.mxu0 %v677
        %783 = vmatprep.subr.bf16.mxu0 %v676
        %784 = vmatpush1.bf16.msra.mxu0 %v675
        %785 = vmatprep.subr.bf16.mxu0 %v674
        %786 = vmatpush1.bf16.msra.mxu0 %v673
        %787 = vmatprep.subr.bf16.mxu0 %v672
        %788 = vmatpush1.bf16.msra.mxu0 %v671
        %789 = vmatprep.subr.bf16.mxu0 %v670
        %790 = vmatpush1.bf16.msra.mxu0 %v669
        %791 = vmatprep.subr.bf16.mxu0 %v668
        %792 = vmatpush1.bf16.msra.mxu0 %v667
        %793 = vmatprep.subr.bf16.mxu0 %v666
        %794 = vmatpush1.bf16.msra.mxu0 %v665
        %795 = vmatprep.subr.bf16.mxu0 %v664
        %796 = vmatpush1.bf16.msra.mxu0 %v663
        %797 = vmatprep.subr.bf16.mxu0 0
        %798 = vmatpush2.bf16.msra.mxu0 0
        %799 = vmatprep.subr.bf16.mxu0 0
        %800 = vmatpush2.bf16.msra.mxu0 0
        %801 = vmatprep.subr.bf16.mxu0 0
        %802 = vmatpush2.bf16.msra.mxu0 0
        %803 = vmatprep.subr.bf16.mxu0 0
        %804 = vmatpush2.bf16.msra.mxu0 0
        %805 = vmatprep.subr.bf16.mxu0 0
        %806 = vmatpush2.bf16.msra.mxu0 0
        %807 = vmatprep.subr.bf16.mxu0 0
        %808 = vmatpush2.bf16.msra.mxu0 0
        %809 = vmatprep.subr.bf16.mxu0 0
        %810 = vmatpush2.bf16.msra.mxu0 0
        %811 = vmatprep.subr.bf16.mxu0 %v738
        %812 = vmatpush2.bf16.msra.mxu0 %v735
        %813 = vmatprep.mubr.bf16.mxu0 %v731
        %814 = vmatmul.mubr.bf16.gmra.mxu0 %v479
        %v815 = vpop.f32.mrf.mxu0
        %v816 = vadd.f32 %v775, %v815
        %v817 = vpop.f32.mrf.mxu0
        %v818 = vadd.f32 %v777, %v817
        %v819 = vpop.f32.mrf.mxu0
        %v820 = vpop.f32.mrf.mxu0
        %821 = vdwg.mxu0
        %s822 = smul.u32 %s15, 256
        %s823 = sshra.s32 %s822, 7
        %s824 = sand.u32 %s822, 127
        %s825 = smul.addr %s823, 8
        %s826 = scalar_lea.vmem [#allocation2], %s825
        %827 = vst [vmem:[%s826] sm:$0xff] %v816
        %828 = vst [vmem:[%s826 + $0x8] sm:$0xff] %v818
        %v829 = vld [vmem:[#allocation3] sm:$0xff]
        %v830 = vadd.f32 %v816, %v818
        %831 = vadd.xlane.f32.xlu0 %v830
        %v832 = vpop.xlane.xlu0 %831
        %v833 = vadd.f32 %v829, %v832
        %vm834 = vcmask 7168
        %835 = vst.msk [vmem:[#allocation3] sm:$0xff] %vm834, %v833
        %v836 = vld [vmem:[#allocation4] sm:$0xff]
        %v837 = vmul.f32 %v816, %v816
        %v838 = vmul.f32 %v818, %v818
        %v839 = vadd.f32 %v837, %v838
        %840 = vadd.xlane.f32.xlu0 %v839
        %v841 = vpop.xlane.xlu0 %840
        %v842 = vadd.f32 %v836, %v841
        %843 = vst.msk [vmem:[#allocation4] sm:$0xff] %vm834, %v842
        %p844 = scmp.eq.s32.totalorder %s15, 1
        // Predicated region
        $region79: #{mcu_forward.4} parent=69 // pred_check
          %p845 = pneg %p844
        $region80: #{mcu_forward.4} parent=69 // pred_check_branch
          %847 = sbr.rel (%p845) target = $region82
        $region81: #{mcu_forward.4} parent=69 // pred_region
          %v848 = vld [vmem:[#allocation3] sm:$0xff]
          %v849 = vmul.f32 %v848, 0.001953125
          %v850 = vld [vmem:[#allocation4] sm:$0xff]
          %v851 = vmul.f32 %v850, 0.001953125
          %v852 = vmul.f32 %v849, %v849
          %v853 = vsub.f32 %v851, %v852
          %v854 = vmax.f32 %v853, 0.0
          %v855 = vld [vmem:[%s2] sm:$0xff]
          %v856 = vadd.f32 %v854, 1e-05
          %v857 = vrsqrt.pop %v856
          %v858 = vmul.f32 %v855, %v857
          %v859 = vld [vmem:[%s3] sm:$0xff]
          %v860 = vmul.f32 %v849, %v858
          %v861 = vsub.f32 %v859, %v860
          %v862 = vld [vmem:[#allocation2] sm:$0xff]
          %v863 = vld [vmem:[#allocation2 + $0x8] sm:$0xff]
          %v864 = vld [vmem:[#allocation2 + $0x10] sm:$0xff]
          %v865 = vld [vmem:[#allocation2 + $0x18] sm:$0xff]
          %867 = vset.pattern.permute.xlu0 0
          %868 = vperm.xlu0 %867, %v858
          %v869 = vpop.permute.xlu0 %868
          %v871 = vmul.f32 %v862, %v869
          %v872 = vmul.f32 %v863, %v869
          %v873 = vmul.f32 %v864, %v869
          %v874 = vmul.f32 %v865, %v869
          %876 = vset.pattern.permute.xlu0 0
          %877 = vperm.xlu0 %876, %v861
          %v878 = vpop.permute.xlu0 %877
          %v880 = vadd.f32 %v871, %v878
          %v881 = vadd.f32 %v872, %v878
          %v882 = vadd.f32 %v873, %v878
          %v883 = vadd.f32 %v874, %v878
          %v884 = vmax.f32 %v880, 0.0
          %v885 = vmax.f32 %v881, 0.0
          %v886 = vmax.f32 %v882, 0.0
          %v887 = vmax.f32 %v883, 0.0
          %v888 = vpack.c.bf16 %v884, %v884
          %v889 = vpack.c.bf16 %v885, %v885
          %v890 = vpack.c.bf16 %v886, %v886
          %v891 = vpack.c.bf16 %v887, %v887
          %v896 = vunpack.c.l.b16 %v888
          %v897 = vunpack.c.l.b16 %v889
          %v898 = vunpack.c.l.b16 %v890
          %v899 = vunpack.c.l.b16 %v891
          %v900 = vpack.c.b16 %v897, %v896
          %v901 = vpack.c.b16 %v899, %v898
          %904 = vst [vmem:[%s4] sm:$0xff] %v900
          %905 = vst [vmem:[%s4 + $0x8] sm:$0xff] %v901
        $region82: #{mcu_forward.4} parent=69 // pred_fallthru
          _
        // Predicated region
        $region83: #{mcu_forward.4} parent=69 // pred_check
          %p906 = pneg %p117
        $region84: #{mcu_forward.4} parent=69 // pred_check_branch
          %908 = sbr.rel (%p906) target = $region86
        $region85: #{mcu_forward.4} parent=69 // pred_region
          _
        $region86: #{mcu_forward.4} parent=69 // pred_fallthru
          _
        // Predicated region
        $region87: #{mcu_forward.4} parent=69 // pred_check
          %p909 = pneg %p117
        $region88: #{mcu_forward.4} parent=69 // pred_check_branch
          %911 = sbr.rel (%p909) target = $region90
        $region89: #{mcu_forward.4} parent=69 // pred_region
          _
        $region90: #{mcu_forward.4} parent=69 // pred_fallthru
          _
      $region70: #{mcu_forward.4} parent=5 // pred_fallthru
        _
      %p912 = scmp.le.s32.totalorder 2, %s10
      // Predicated region
      $region91: #{mcu_forward.4} parent=5 // pred_check
        %p913 = pneg %p912
      $region92: #{mcu_forward.4} parent=5 // pred_check_branch
        %915 = sbr.rel (%p913) target = $region94
      $region93: #{mcu_forward.4} parent=5 // pred_region
        %s916 = ssub.s32 %s10, 2
      $region94: #{mcu_forward.4} parent=5 // pred_fallthru
        _
    $region6: #{mcu_forward.4} parent=1 // loop_footer
      %s14 = sadd.s32 1, %s10
    $region7: #{mcu_forward.4} parent=1 // loop_footer_branch
      %9 = sbr.rel target = $region3
    $region8: #{mcu_forward.4} parent=1 // loop_exit
      _

// kernel: mcu_forward.5
$region0: #{mcu_forward.5}
  #allocation0 [shape = 'u32[]', space=smem, size = 0x4, offset = 0x4, fixed_abs, tag = 'smem constant byte address 0x4 - core index']
  #allocation1 [shape = 'u32[144,128]{1,0:T(1,128)}', space=vmem, size = 0x12000, scoped, tag = 'internal scratch']
  #allocation2 [shape = 'f32[8,512]{1,0:T(8,128)}', space=vmem, size = 0x4000, scoped, tag = 'scratch operand']
  #allocation3 [shape = 'f32[8,1]{1,0:T(8,128)}', space=vmem, size = 0x1000, scoped, tag = 'scratch operand']
  #allocation4 [shape = 'f32[8,1]{1,0:T(8,128)}', space=vmem, size = 0x1000, scoped, tag = 'scratch operand']
  %s0 = inlined_call_operand.vmem [shape: bf16[8,72], index: 0, kind: input, shape index: {}]
  %s1 = inlined_call_operand.vmem [shape: bf16[72,512], index: 1, kind: input, shape index: {}]
  %s2 = inlined_call_operand.vmem [shape: f32[8,1], index: 2, kind: input, shape index: {}]
  %s3 = inlined_call_operand.vmem [shape: f32[8,1], index: 3, kind: input, shape index: {}]
  %s4 = inlined_call_operand.vmem [shape: bf16[4,512], index: 4, kind: input, shape index: {}]
  %s5 = inlined_call_operand.vmem [shape: bf16[8,4], index: 5, kind: input, shape index: {}]
  %s6 = inlined_call_operand.vmem [shape: f32[8,1], index: 6, kind: input, shape index: {}]
  %s7 = inlined_call_operand.vmem [shape: f32[8,512], index: 7, kind: output, shape index: {}]
  %s8 = sld [smem:[#allocation0]]
  $region107: #{mcu_forward.5} parent=0
    _
  %s10 = ssub.s32 1, %s8
  %s11 = scalar_select 0, %s10, %s8
  $region1: #{mcu_forward.5} parent=0
    #allocation5 [shape = 'u8[73728]{0}', space=vmem, size = 0x12000, scoped, tag = 'input window, operand 1']
    loop: start=0, step=1, limit=4
    $region2: #{mcu_forward.5} parent=1 // loop_pre_header
      _
    $region3: #{mcu_forward.5} parent=1 // loop_header
      %s13 = sphi 0, %s17
      %p14 = scmp.ge.s32.totalorder %s13, 4
      %s21 = sphi 0, %s21
      %s23 = sphi 0, %s21
      %s24 = sphi 0, %s23
      %s38 = sphi 0, %s24
      %s44 = sphi 0, %s46
      %s47 = sphi 0, %s44
      %s48 = sphi 0, %s47
      %s64 = sphi 0, %s48
      %s68 = sphi 0, %s68
      %s70 = sphi 0, %s68
      %s71 = sphi 0, %s70
      %s85 = sphi 0, %s71
      %s89 = sphi 0, %s89
      %s91 = sphi 0, %s89
      %s92 = sphi 0, %s91
      %s106 = sphi 0, %s92
      %s110 = sphi 0, %s110
      %s112 = sphi 0, %s110
      %s113 = sphi 0, %s112
      %s127 = sphi 0, %s113
      %s131 = sphi 0, %s131
      %s133 = sphi 0, %s131
      %s134 = sphi 0, %s133
      %s148 = sphi 0, %s134
      %s152 = sphi 0, %s152
      %s154 = sphi 0, %s152
      %s155 = sphi 0, %s154
      %s169 = sphi 0, %s155
      %s173 = sphi 0, %s173
      %s175 = sphi 0, %s173
      %s176 = sphi 0, %s175
      %s190 = sphi 0, %s176
    $region4: #{mcu_forward.5} parent=1 // loop_header_branch
      %16 = sbr.rel (%p14) target = $region8
    $region5: #{mcu_forward.5} parent=1 // loop_body
      %s18 = ssub.s32 %s13, 1
      %s19 = ssub.s32 %s13, 2
      %s20 = sadd.s32 %s13, 1
      %s22 = sadd.s32 %s21, 1
      %p25 = scmp.eq.s32.totalorder %s13, 1
      %p26 = scmp.ne.s32.totalorder %s21, %s23
      %p27 = scmp.eq.s32.totalorder %s13, 0
      %p28 = por %p26, %p27
      %p29 = scmp.ne.s32.totalorder %s21, %s23
      %p30 = scmp.eq.s32.totalorder %s18, 1
      %p31 = por %p29, %p30
      %p32 = scmp.ne.s32.totalorder %s23, %s24
      %p33 = scmp.eq.s32.totalorder %s18, 0
      %p34 = por %p32, %p33
      %p35 = scmp.ne.s32.totalorder %s23, %s24
      %p36 = scmp.eq.s32.totalorder %s19, 1
      %p37 = por %p35, %p36
      %p39 = scmp.ne.s32.totalorder %s24, %s38
      %p40 = scmp.eq.s32.totalorder %s19, 0
      %p41 = por %p39, %p40
      %s42 = ssub.s32 %s13, %s20
      %p43 = scmp.eq.s32.totalorder %s42, 0
      %s45 = sadd.s32 %s44, 1
      %s46 = scalar_select %p43, %s44, %s45
      %p49 = pneg %p43
      %p50 = scmp.eq.s32.totalorder %s13, 1
      %p51 = por %p49, %p50
      %p52 = scmp.ne.s32.totalorder %s44, %s47
      %p53 = scmp.eq.s32.totalorder %s13, 0
      %p54 = por %p52, %p53
      %p55 = scmp.ne.s32.totalorder %s44, %s47
      %p56 = scmp.eq.s32.totalorder %s18, 1
      %p57 = por %p55, %p56
      %p58 = scmp.ne.s32.totalorder %s47, %s48
      %p59 = scmp.eq.s32.totalorder %s18, 0
      %p60 = por %p58, %p59
      %p61 = scmp.ne.s32.totalorder %s47, %s48
      %p62 = scmp.eq.s32.totalorder %s19, 1
      %p63 = por %p61, %p62
      %p65 = scmp.ne.s32.totalorder %s48, %s64
      %p66 = scmp.eq.s32.totalorder %s19, 0
      %p67 = por %p65, %p66
      %s69 = sadd.s32 %s68, 1
      %p72 = scmp.eq.s32.totalorder %s13, 1
      %p73 = scmp.ne.s32.totalorder %s68, %s70
      %p74 = scmp.eq.s32.totalorder %s13, 0
      %p75 = por %p73, %p74
      %p76 = scmp.ne.s32.totalorder %s68, %s70
      %p77 = scmp.eq.s32.totalorder %s18, 1
      %p78 = por %p76, %p77
      %p79 = scmp.ne.s32.totalorder %s70, %s71
      %p80 = scmp.eq.s32.totalorder %s18, 0
      %p81 = por %p79, %p80
      %p82 = scmp.ne.s32.totalorder %s70, %s71
      %p83 = scmp.eq.s32.totalorder %s19, 1
      %p84 = por %p82, %p83
      %p86 = scmp.ne.s32.totalorder %s71, %s85
      %p87 = scmp.eq.s32.totalorder %s19, 0
      %p88 = por %p86, %p87
      %s90 = sadd.s32 %s89, 1
      %p93 = scmp.eq.s32.totalorder %s13, 1
      %p94 = scmp.ne.s32.totalorder %s89, %s91
      %p95 = scmp.eq.s32.totalorder %s13, 0
      %p96 = por %p94, %p95
      %p97 = scmp.ne.s32.totalorder %s89, %s91
      %p98 = scmp.eq.s32.totalorder %s18, 1
      %p99 = por %p97, %p98
      %p100 = scmp.ne.s32.totalorder %s91, %s92
      %p101 = scmp.eq.s32.totalorder %s18, 0
      %p102 = por %p100, %p101
      %p103 = scmp.ne.s32.totalorder %s91, %s92
      %p104 = scmp.eq.s32.totalorder %s19, 1
      %p105 = por %p103, %p104
      %p107 = scmp.ne.s32.totalorder %s92, %s106
      %p108 = scmp.eq.s32.totalorder %s19, 0
      %p109 = por %p107, %p108
      %s111 = sadd.s32 %s110, 1
      %p114 = scmp.eq.s32.totalorder %s13, 1
      %p115 = scmp.ne.s32.totalorder %s110, %s112
      %p116 = scmp.eq.s32.totalorder %s13, 0
      %p117 = por %p115, %p116
      %p118 = scmp.ne.s32.totalorder %s110, %s112
      %p119 = scmp.eq.s32.totalorder %s18, 1
      %p120 = por %p118, %p119
      %p121 = scmp.ne.s32.totalorder %s112, %s113
      %p122 = scmp.eq.s32.totalorder %s18, 0
      %p123 = por %p121, %p122
      %p124 = scmp.ne.s32.totalorder %s112, %s113
      %p125 = scmp.eq.s32.totalorder %s19, 1
      %p126 = por %p124, %p125
      %p128 = scmp.ne.s32.totalorder %s113, %s127
      %p129 = scmp.eq.s32.totalorder %s19, 0
      %p130 = por %p128, %p129
      %s132 = sadd.s32 %s131, 1
      %p135 = scmp.eq.s32.totalorder %s13, 1
      %p136 = scmp.ne.s32.totalorder %s131, %s133
      %p137 = scmp.eq.s32.totalorder %s13, 0
      %p138 = por %p136, %p137
      %p139 = scmp.ne.s32.totalorder %s131, %s133
      %p140 = scmp.eq.s32.totalorder %s18, 1
      %p141 = por %p139, %p140
      %p142 = scmp.ne.s32.totalorder %s133, %s134
      %p143 = scmp.eq.s32.totalorder %s18, 0
      %p144 = por %p142, %p143
      %p145 = scmp.ne.s32.totalorder %s133, %s134
      %p146 = scmp.eq.s32.totalorder %s19, 1
      %p147 = por %p145, %p146
      %p149 = scmp.ne.s32.totalorder %s134, %s148
      %p150 = scmp.eq.s32.totalorder %s19, 0
      %p151 = por %p149, %p150
      %s153 = sadd.s32 %s152, 1
      %p156 = scmp.eq.s32.totalorder %s13, 1
      %p157 = scmp.ne.s32.totalorder %s152, %s154
      %p158 = scmp.eq.s32.totalorder %s13, 0
      %p159 = por %p157, %p158
      %p160 = scmp.ne.s32.totalorder %s152, %s154
      %p161 = scmp.eq.s32.totalorder %s18, 1
      %p162 = por %p160, %p161
      %p163 = scmp.ne.s32.totalorder %s154, %s155
      %p164 = scmp.eq.s32.totalorder %s18, 0
      %p165 = por %p163, %p164
      %p166 = scmp.ne.s32.totalorder %s154, %s155
      %p167 = scmp.eq.s32.totalorder %s19, 1
      %p168 = por %p166, %p167
      %p170 = scmp.ne.s32.totalorder %s155, %s169
      %p171 = scmp.eq.s32.totalorder %s19, 0
      %p172 = por %p170, %p171
      %s174 = sadd.s32 %s173, 1
      %p177 = scmp.eq.s32.totalorder %s13, 1
      %p178 = scmp.ne.s32.totalorder %s173, %s175
      %p179 = scmp.eq.s32.totalorder %s13, 0
      %p180 = por %p178, %p179
      %p181 = scmp.ne.s32.totalorder %s173, %s175
      %p182 = scmp.eq.s32.totalorder %s18, 1
      %p183 = por %p181, %p182
      %p184 = scmp.ne.s32.totalorder %s175, %s176
      %p185 = scmp.eq.s32.totalorder %s18, 0
      %p186 = por %p184, %p185
      %p187 = scmp.ne.s32.totalorder %s175, %s176
      %p188 = scmp.eq.s32.totalorder %s19, 1
      %p189 = por %p187, %p188
      %p191 = scmp.ne.s32.totalorder %s176, %s190
      %p192 = scmp.eq.s32.totalorder %s19, 0
      %p193 = por %p191, %p192
      %p194 = scmp.le.s32.totalorder 1, %s13
      %p195 = scmp.lt.s32.totalorder %s13, 3
      %p196 = pnand %p194, %p195
      %p197 = pneg %p196
      // Predicated region
      $region9: #{mcu_forward.5} parent=5 // pred_check
        _
      $region10: #{mcu_forward.5} parent=5 // pred_check_branch
        %199 = sbr.rel (%p196) target = $region12
      $region11: #{mcu_forward.5} parent=5 // pred_region
        %s200 = ssub.s32 %s13, 1
        // Predicated region
        $region13: #{mcu_forward.5} parent=11 // pred_check
          %p201 = pneg %p34
        $region14: #{mcu_forward.5} parent=11 // pred_check_branch
          %203 = sbr.rel (%p201) target = $region16
        $region15: #{mcu_forward.5} parent=11 // pred_region
          _
        $region16: #{mcu_forward.5} parent=11 // pred_fallthru
          _
        // Predicated region
        $region17: #{mcu_forward.5} parent=11 // pred_check
          %p204 = pneg %p81
        $region18: #{mcu_forward.5} parent=11 // pred_check_branch
          %206 = sbr.rel (%p204) target = $region20
        $region19: #{mcu_forward.5} parent=11 // pred_region
          _
        $region20: #{mcu_forward.5} parent=11 // pred_fallthru
          _
        // Predicated region
        $region21: #{mcu_forward.5} parent=11 // pred_check
          %p207 = pneg %p102
        $region22: #{mcu_forward.5} parent=11 // pred_check_branch
          %209 = sbr.rel (%p207) target = $region24
        $region23: #{mcu_forward.5} parent=11 // pred_region
          _
        $region24: #{mcu_forward.5} parent=11 // pred_fallthru
          _
        // Predicated region
        $region25: #{mcu_forward.5} parent=11 // pred_check
          %p210 = pneg %p123
        $region26: #{mcu_forward.5} parent=11 // pred_check_branch
          %212 = sbr.rel (%p210) target = $region28
        $region27: #{mcu_forward.5} parent=11 // pred_region
          _
        $region28: #{mcu_forward.5} parent=11 // pred_fallthru
          _
        // Predicated region
        $region29: #{mcu_forward.5} parent=11 // pred_check
          %p213 = pneg %p144
        $region30: #{mcu_forward.5} parent=11 // pred_check_branch
          %215 = sbr.rel (%p213) target = $region32
        $region31: #{mcu_forward.5} parent=11 // pred_region
          _
        $region32: #{mcu_forward.5} parent=11 // pred_fallthru
          _
        // Predicated region
        $region33: #{mcu_forward.5} parent=11 // pred_check
          %p216 = pneg %p165
        $region34: #{mcu_forward.5} parent=11 // pred_check_branch
          %218 = sbr.rel (%p216) target = $region36
        $region35: #{mcu_forward.5} parent=11 // pred_region
          _
        $region36: #{mcu_forward.5} parent=11 // pred_fallthru
          _
      $region12: #{mcu_forward.5} parent=5 // pred_fallthru
        _
      %p219 = scmp.lt.s32.totalorder %s13, 2
      // Predicated region
      $region37: #{mcu_forward.5} parent=5 // pred_check
        %p220 = pneg %p219
      $region38: #{mcu_forward.5} parent=5 // pred_check_branch
        %222 = sbr.rel (%p220) target = $region40
      $region39: #{mcu_forward.5} parent=5 // pred_region
        // Predicated region
        $region41: #{mcu_forward.5} parent=39 // pred_check
          %p223 = pneg %p54
        $region42: #{mcu_forward.5} parent=39 // pred_check_branch
          %225 = sbr.rel (%p223) target = $region44
        $region43: #{mcu_forward.5} parent=39 // pred_region
          %s226 = sand.u32 %s44, 1
          %s227 = sand.u32 %s44, 1
          %s228 = smul.addr %s227, 72
          %s229 = scalar_lea.vmem [#allocation5], %s228
          %s230 = smul.u32 2, %s13
          %s231 = smul.addr %s230, 4
          %s232 = scalar_lea.vmem %s1, %s231
          // Predicated region
          $region45: #{mcu_forward.5} parent=43 // pred_check
            _
          $region46: #{mcu_forward.5} parent=43 // pred_check_branch
            %234 = sbr.rel (0) target = $region48
          $region47: #{mcu_forward.5} parent=43 // pred_region
            // Predicated region
            $region49: #{mcu_forward.5} parent=47 // pred_check
              _
            $region50: #{mcu_forward.5} parent=47 // pred_check_branch
              %236 = sbr.rel (0) target = $region52
            $region51: #{mcu_forward.5} parent=47 // pred_region
              // Predicated region
              $region64: #{mcu_forward.5} parent=51 // pred_check
                _
              $region65: #{mcu_forward.5} parent=51 // pred_check_branch
                %268 = sbr.rel (0) target = $region67
              $region66: #{mcu_forward.5} parent=51 // pred_region
                loop: start=0, step=1, limit=1
                $region68: #{mcu_forward.5} parent=66 // loop_pre_header
                  _
                $region69: #{mcu_forward.5} parent=66 // loop_header
                  %s270 = sphi 0, %s274
                  %p271 = scmp.ge.s32.totalorder %s270, 1
                  %s275 = sphi %s232, %s232
                  %s276 = sphi %s229, %s229
                $region70: #{mcu_forward.5} parent=66 // loop_header_branch
                  %273 = sbr.rel (%p271) target = $region74
                $region71: #{mcu_forward.5} parent=66 // loop_body
                  %v277 = vld [vmem:[%s275] sm:$0xff]
                  %278 = vst [vmem:[%s276] sm:$0xff] %v277
                  %v279 = vld [vmem:[%s275 + $0x10] sm:$0xff]
                  %280 = vst [vmem:[%s276 + $0x8] sm:$0xff] %v279
                  %v281 = vld [vmem:[%s275 + $0x20] sm:$0xff]
                  %282 = vst [vmem:[%s276 + $0x10] sm:$0xff] %v281
                  %v283 = vld [vmem:[%s275 + $0x30] sm:$0xff]
                  %284 = vst [vmem:[%s276 + $0x18] sm:$0xff] %v283
                  %v285 = vld [vmem:[%s275 + $0x40] sm:$0xff]
                  %286 = vst [vmem:[%s276 + $0x20] sm:$0xff] %v285
                  %v287 = vld [vmem:[%s275 + $0x50] sm:$0xff]
                  %288 = vst [vmem:[%s276 + $0x28] sm:$0xff] %v287
                  %v289 = vld [vmem:[%s275 + $0x60] sm:$0xff]
                  %290 = vst [vmem:[%s276 + $0x30] sm:$0xff] %v289
                  %v291 = vld [vmem:[%s275 + $0x70] sm:$0xff]
                  %292 = vst [vmem:[%s276 + $0x38] sm:$0xff] %v291
                  %v293 = vld [vmem:[%s275 + $0x80] sm:$0xff]
                  %294 = vst [vmem:[%s276 + $0x40] sm:$0xff] %v293
                $region72: #{mcu_forward.5} parent=66 // loop_footer
                  %s274 = sadd.s32 1, %s270
                $region73: #{mcu_forward.5} parent=66 // loop_footer_branch
                  %269 = sbr.rel target = $region69
                $region74: #{mcu_forward.5} parent=66 // loop_exit
                  _
              $region67: #{mcu_forward.5} parent=51 // pred_fallthru
                _
              // Predicated region
              $region75: #{mcu_forward.5} parent=51 // pred_check
                _
              $region76: #{mcu_forward.5} parent=51 // pred_check_branch
                %296 = sbr.rel target = $region78
              $region77: #{mcu_forward.5} parent=51 // pred_region
                _
              $region78: #{mcu_forward.5} parent=51 // pred_fallthru
                _
            $region52: #{mcu_forward.5} parent=47 // pred_fallthru
              _
            // Predicated region
            $region53: #{mcu_forward.5} parent=47 // pred_check
              _
            $region54: #{mcu_forward.5} parent=47 // pred_check_branch
              %238 = sbr.rel target = $region56
            $region55: #{mcu_forward.5} parent=47 // pred_region
              %s240 = ssub.s32 256, 1
              loop: start=0, step=1, limit=1
              $region57: #{mcu_forward.5} parent=55 // loop_pre_header
                _
              $region58: #{mcu_forward.5} parent=55 // loop_header
                %s242 = sphi 0, %s246
                %p243 = scmp.ge.s32.totalorder %s242, 1
                %s247 = sphi %s232, %s232
                %s248 = sphi %s229, %s229
              $region59: #{mcu_forward.5} parent=55 // loop_header_branch
                %245 = sbr.rel (%p243) target = $region63
              $region60: #{mcu_forward.5} parent=55 // loop_body
                %v249 = vld [vmem:[%s247] sm:%s240]
                %250 = vst [vmem:[%s248] sm:%s240] %v249
                %v251 = vld [vmem:[%s247 + $0x10] sm:%s240]
                %252 = vst [vmem:[%s248 + $0x8] sm:%s240] %v251
                %v253 = vld [vmem:[%s247 + $0x20] sm:%s240]
                %254 = vst [vmem:[%s248 + $0x10] sm:%s240] %v253
                %v255 = vld [vmem:[%s247 + $0x30] sm:%s240]
                %256 = vst [vmem:[%s248 + $0x18] sm:%s240] %v255
                %v257 = vld [vmem:[%s247 + $0x40] sm:%s240]
                %258 = vst [vmem:[%s248 + $0x20] sm:%s240] %v257
                %v259 = vld [vmem:[%s247 + $0x50] sm:%s240]
                %260 = vst [vmem:[%s248 + $0x28] sm:%s240] %v259
                %v261 = vld [vmem:[%s247 + $0x60] sm:%s240]
                %262 = vst [vmem:[%s248 + $0x30] sm:%s240] %v261
                %v263 = vld [vmem:[%s247 + $0x70] sm:%s240]
                %264 = vst [vmem:[%s248 + $0x38] sm:%s240] %v263
                %v265 = vld [vmem:[%s247 + $0x80] sm:%s240]
                %266 = vst [vmem:[%s248 + $0x40] sm:%s240] %v265
              $region61: #{mcu_forward.5} parent=55 // loop_footer
                %s246 = sadd.s32 1, %s242
              $region62: #{mcu_forward.5} parent=55 // loop_footer_branch
                %241 = sbr.rel target = $region58
              $region63: #{mcu_forward.5} parent=55 // loop_exit
                _
            $region56: #{mcu_forward.5} parent=47 // pred_fallthru
              _
          $region48: #{mcu_forward.5} parent=43 // pred_fallthru
            _
          %297 = vnop
        $region44: #{mcu_forward.5} parent=39 // pred_fallthru
          _
      $region40: #{mcu_forward.5} parent=5 // pred_fallthru
        _
      %p298 = scmp.le.s32.totalorder 1, %s13
      %p299 = scmp.lt.s32.totalorder %s13, 3
      %p300 = pnand %p298, %p299
      %p301 = pneg %p300
      // Predicated region
      $region79: #{mcu_forward.5} parent=5 // pred_check
        _
      $region80: #{mcu_forward.5} parent=5 // pred_check_branch
        %303 = sbr.rel (%p300) target = $region82
      $region81: #{mcu_forward.5} parent=5 // pred_region
        %s304 = ssub.s32 %s13, 1
        %s305 = sand.u32 %s47, 1
        %s306 = sand.u32 %s47, 1
        %s307 = smul.addr %s306, 72
        %s308 = scalar_lea.vmem [#allocation5], %s307
        // Predicated region
        $region83: #{mcu_forward.5} parent=81 // pred_check
          %p309 = pneg %p60
        $region84: #{mcu_forward.5} parent=81 // pred_check_branch
          %311 = sbr.rel (%p309) target = $region86
        $region85: #{mcu_forward.5} parent=81 // pred_region
          _
        $region86: #{mcu_forward.5} parent=81 // pred_fallthru
          _
        %p312 = pneg %p34
        %p313 = pneg %p31
        %s314 = sand.u32 %s47, 1
        %s315 = sand.u32 %s47, 1
        %s316 = smul.addr %s315, 72
        %s317 = scalar_lea.vmem [#allocation5], %s316
        %p318 = pneg %p60
        %p319 = pneg %p57
        %p320 = pneg %p81
        %p321 = pneg %p78
        %p322 = pneg %p102
        %p323 = pneg %p99
        %p324 = pneg %p123
        %p325 = pneg %p120
        %p326 = pneg %p144
        %p327 = pneg %p141
        %p328 = pneg %p165
        %p329 = pneg %p162
        %p330 = pneg %p186
        %p331 = pneg %p183
        %s332 = smul.u32 2, %s18
        %p334 = scmp.eq.s32.totalorder %s18, 0
        // Predicated region
        $region87: #{mcu_forward.5} parent=81 // pred_check
          %p335 = pneg %p334
        $region88: #{mcu_forward.5} parent=81 // pred_check_branch
          %337 = sbr.rel (%p335) target = $region90
        $region89: #{mcu_forward.5} parent=81 // pred_region
          %vm338 = vcmask 7168
          %339 = vst.msk [vmem:[#allocation3] sm:$0xff] %vm338, 0.0
          %340 = vst.msk [vmem:[#allocation4] sm:$0xff] %vm338, 0.0
        $region90: #{mcu_forward.5} parent=81 // pred_fallthru
          _
        %v341 = vld [vmem:[%s0] sm:$0xf]
        %v342 = vld [vmem:[%s308] sm:$0xff]
        %v343 = vld [vmem:[%s308 + $0x8] sm:$0xff]
        %v344 = vld [vmem:[%s308 + $0x10] sm:$0xff]
        %v345 = vld [vmem:[%s308 + $0x18] sm:$0xff]
        %v346 = vld [vmem:[%s308 + $0x20] sm:$0xff]
        %v347 = vld [vmem:[%s308 + $0x28] sm:$0xff]
        %v348 = vld [vmem:[%s308 + $0x30] sm:$0xff]
        %v349 = vld [vmem:[%s308 + $0x38] sm:$0xff]
        %v350 = vld [vmem:[%s308 + $0x40] sm:$0xff]
        %v360 = vunpack.c.l.b16 %v342
        %v361 = vunpack.c.h.b16 %v342
        %v362 = vunpack.c.l.b16 %v343
        %v363 = vunpack.c.h.b16 %v343
        %v364 = vunpack.c.l.b16 %v344
        %v365 = vunpack.c.h.b16 %v344
        %v366 = vunpack.c.l.b16 %v345
        %v367 = vunpack.c.h.b16 %v345
        %v368 = vunpack.c.l.b16 %v346
        %v369 = vunpack.c.h.b16 %v346
        %v370 = vunpack.c.l.b16 %v347
        %v371 = vunpack.c.h.b16 %v347
        %v372 = vunpack.c.l.b16 %v348
        %v373 = vunpack.c.h.b16 %v348
        %v374 = vunpack.c.l.b16 %v349
        %v375 = vunpack.c.h.b16 %v349
        %v376 = vunpack.c.l.b16 %v350
        %v377 = vunpack.c.h.b16 %v350
        %v378 = vpack.c.b16 %v362, %v360
        %v379 = vpack.c.b16 %v363, %v361
        %v380 = vpack.c.b16 %v366, %v364
        %v381 = vpack.c.b16 %v367, %v365
        %v382 = vpack.c.b16 %v370, %v368
        %v383 = vpack.c.b16 %v371, %v369
        %v384 = vpack.c.b16 %v374, %v372
        %v385 = vpack.c.b16 %v375, %v373
        %v386 = vpack.c.b16 %v376, %v376
        %v387 = vpack.c.b16 %v377, %v377
        %vm396 = vcmask 588800
        %v398 = vsel %vm396, %v341, 0
        %vm400 = vcmask 1043456
        %v402 = vsel %vm400, %v386, 0
        %v405 = vsel %vm400, %v387, 0
        %407 = vmatprep.subr.bf16.mxu0 0
        %408 = vmatpush1.bf16.msra.mxu0 0
        %409 = vmatprep.subr.bf16.mxu0 0
        %410 = vmatpush1.bf16.msra.mxu0 0
        %411 = vmatprep.subr.bf16.mxu0 0
        %412 = vmatpush1.bf16.msra.mxu0 0
        %413 = vmatprep.subr.bf16.mxu0 %v405
        %414 = vmatpush1.bf16.msra.mxu0 %v402
        %415 = vmatprep.subr.bf16.mxu0 %v385
        %416 = vmatpush1.bf16.msra.mxu0 %v384
        %417 = vmatprep.subr.bf16.mxu0 %v383
        %418 = vmatpush1.bf16.msra.mxu0 %v382
        %419 = vmatprep.subr.bf16.mxu0 %v381
        %420 = vmatpush1.bf16.msra.mxu0 %v380
        %421 = vmatprep.subr.bf16.mxu0 %v379
        %422 = vmatpush1.bf16.msra.mxu0 %v378
        %423 = vmatprep.subr.bf16.mxu0 0
        %424 = vmatpush2.bf16.msra.mxu0 0
        %425 = vmatprep.subr.bf16.mxu0 0
        %426 = vmatpush2.bf16.msra.mxu0 0
        %427 = vmatprep.subr.bf16.mxu0 0
        %428 = vmatpush2.bf16.msra.mxu0 0
        %429 = vmatprep.subr.bf16.mxu0 0
        %430 = vmatpush2.bf16.msra.mxu0 0
        %431 = vmatprep.subr.bf16.mxu0 0
        %432 = vmatpush2.bf16.msra.mxu0 0
        %433 = vmatprep.subr.bf16.mxu0 0
        %434 = vmatpush2.bf16.msra.mxu0 0
        %435 = vmatprep.subr.bf16.mxu0 0
        %436 = vmatpush2.bf16.msra.mxu0 0
        %437 = vmatprep.subr.bf16.mxu0 0
        %438 = vmatpush2.bf16.msra.mxu0 0
        %439 = vmatprep.mubr.bf16.mxu0 0
        %440 = vmatmul.mubr.bf16.gmra.mxu0 %v398
        %v441 = vpop.f32.mrf.mxu0
        %v442 = vadd.f32 0.0, %v441
        %v443 = vpop.f32.mrf.mxu0
        %v444 = vadd.f32 0.0, %v443
        %v445 = vpop.f32.mrf.mxu0
        %v446 = vpop.f32.mrf.mxu0
        %447 = vdwg.mxu0
        %s448 = smul.u32 %s18, 256
        %s449 = sshra.s32 %s448, 7
        %s450 = sand.u32 %s448, 127
        %s451 = smul.addr %s449, 8
        %s452 = scalar_lea.vmem [#allocation2], %s451
        %453 = vst [vmem:[%s452] sm:$0xff] %v442
        %454 = vst [vmem:[%s452 + $0x8] sm:$0xff] %v444
        %v455 = vld [vmem:[#allocation3] sm:$0xff]
        %v456 = vadd.f32 %v442, %v444
        %457 = vadd.xlane.f32.xlu0 %v456
        %v458 = vpop.xlane.xlu0 %457
        %v459 = vadd.f32 %v455, %v458
        %vm460 = vcmask 7168
        %461 = vst.msk [vmem:[#allocation3] sm:$0xff] %vm460, %v459
        %v462 = vld [vmem:[#allocation4] sm:$0xff]
        %v463 = vmul.f32 %v442, %v442
        %v464 = vmul.f32 %v444, %v444
        %v465 = vadd.f32 %v463, %v464
        %466 = vadd.xlane.f32.xlu0 %v465
        %v467 = vpop.xlane.xlu0 %466
        %v468 = vadd.f32 %v462, %v467
        %469 = vst.msk [vmem:[#allocation4] sm:$0xff] %vm460, %v468
        %p470 = scmp.eq.s32.totalorder %s18, 1
        // Predicated region
        $region91: #{mcu_forward.5} parent=81 // pred_check
          %p471 = pneg %p470
        $region92: #{mcu_forward.5} parent=81 // pred_check_branch
          %473 = sbr.rel (%p471) target = $region94
        $region93: #{mcu_forward.5} parent=81 // pred_region
          %v474 = vld [vmem:[#allocation3] sm:$0xff]
          %v475 = vmul.f32 %v474, 0.001953125
          %v476 = vld [vmem:[#allocation4] sm:$0xff]
          %v477 = vmul.f32 %v476, 0.001953125
          %v478 = vmul.f32 %v475, %v475
          %v479 = vsub.f32 %v477, %v478
          %v480 = vmax.f32 %v479, 0.0
          %v481 = vld [vmem:[%s2] sm:$0xff]
          %v482 = vadd.f32 %v480, 1e-05
          %v483 = vrsqrt.pop %v482
          %v484 = vmul.f32 %v481, %v483
          %v485 = vld [vmem:[%s3] sm:$0xff]
          %v486 = vmul.f32 %v475, %v484
          %v487 = vsub.f32 %v485, %v486
          %v488 = vld [vmem:[#allocation2] sm:$0xff]
          %v489 = vld [vmem:[#allocation2 + $0x8] sm:$0xff]
          %v490 = vld [vmem:[#allocation2 + $0x10] sm:$0xff]
          %v491 = vld [vmem:[#allocation2 + $0x18] sm:$0xff]
          %493 = vset.pattern.permute.xlu0 0
          %494 = vperm.xlu0 %493, %v484
          %v495 = vpop.permute.xlu0 %494
          %v497 = vmul.f32 %v488, %v495
          %v498 = vmul.f32 %v489, %v495
          %v499 = vmul.f32 %v490, %v495
          %v500 = vmul.f32 %v491, %v495
          %502 = vset.pattern.permute.xlu0 0
          %503 = vperm.xlu0 %502, %v487
          %v504 = vpop.permute.xlu0 %503
          %v506 = vadd.f32 %v497, %v504
          %v507 = vadd.f32 %v498, %v504
          %v508 = vadd.f32 %v499, %v504
          %v509 = vadd.f32 %v500, %v504
          %v510 = vld [vmem:[%s5] sm:$0xf]
          %v511 = vld [vmem:[%s4] sm:$0xff]
          %v513 = vcombine.high %v511, %v511
          %v515 = vunpack.c.l.s4 1983009808
          %v516 = vunpack.c.0.s8 %v515
          %v517 = vlaneseq
          %v518 = vshrl.u32 %v517, 7
          %v519 = vsub.s32 %v516, %v518
          %v520 = vrot.slane %v511, %v519
          %v522 = vunpack.c.l.s4 1983009808
          %v523 = vunpack.c.0.s8 %v522
          %v524 = vlaneseq
          %v525 = vshrl.u32 %v524, 7
          %v526 = vsub.s32 %v523, %v525
          %v527 = vrot.slane %v513, %v526
          %v528 = vcombine.high %v520, %v520
          %v529 = vcombine.high %v527, %v527
          %vm530 = vcmask 31744
          %v532 = vsel %vm530, %v510, 0
          %vm534 = vcmask 1041408
          %v536 = vsel %vm534, %v520, 0
          %v539 = vsel %vm534, %v528, 0
          %v542 = vsel %vm534, %v527, 0
          %v545 = vsel %vm534, %v529, 0
          %547 = vmatprep.subr.bf16.mxu0 0
          %548 = vmatpush1.bf16.msra.mxu0 0
          %549 = vmatprep.subr.bf16.mxu0 0
          %550 = vmatpush1.bf16.msra.mxu0 0
          %551 = vmatprep.subr.bf16.mxu0 0
          %552 = vmatpush1.bf16.msra.mxu0 0
          %553 = vmatprep.subr.bf16.mxu0 0
          %554 = vmatpush1.bf16.msra.mxu0 0
          %555 = vmatprep.subr.bf16.mxu0 0
          %556 = vmatpush1.bf16.msra.mxu0 0
          %557 = vmatprep.subr.bf16.mxu0 0
          %558 = vmatpush1.bf16.msra.mxu0 0
          %559 = vmatprep.subr.bf16.mxu0 0
          %560 = vmatpush1.bf16.msra.mxu0 0
          %561 = vmatprep.subr.bf16.mxu0 %v539
          %562 = vmatpush1.bf16.msra.mxu0 %v536
          %563 = vmatprep.subr.bf16.mxu0 0
          %564 = vmatpush2.bf16.msra.mxu0 0
          %565 = vmatprep.subr.bf16.mxu0 0
          %566 = vmatpush2.bf16.msra.mxu0 0
          %567 = vmatprep.subr.bf16.mxu0 0
          %568 = vmatpush2.bf16.msra.mxu0 0
          %569 = vmatprep.subr.bf16.mxu0 0
          %570 = vmatpush2.bf16.msra.mxu0 0
          %571 = vmatprep.subr.bf16.mxu0 0
          %572 = vmatpush2.bf16.msra.mxu0 0
          %573 = vmatprep.subr.bf16.mxu0 0
          %574 = vmatpush2.bf16.msra.mxu0 0
          %575 = vmatprep.subr.bf16.mxu0 0
          %576 = vmatpush2.bf16.msra.mxu0 0
          %577 = vmatprep.subr.bf16.mxu0 0
          %578 = vmatpush2.bf16.msra.mxu0 0
          %579 = vmatprep.mubr.bf16.mxu0 0
          %580 = vmatmul.mubr.bf16.gmra.mxu0 %v532
          %v581 = vpop.f32.mrf.mxu0
          %v582 = vadd.f32 0.0, %v581
          %v583 = vpop.f32.mrf.mxu0
          %v584 = vadd.f32 0.0, %v583
          %v585 = vpop.f32.mrf.mxu0
          %v586 = vpop.f32.mrf.mxu0
          %587 = vdwg.mxu0
          %588 = vmatprep.subr.bf16.mxu0 0
          %589 = vmatpush1.bf16.msra.mxu0 0
          %590 = vmatprep.subr.bf16.mxu0 0
          %591 = vmatpush1.bf16.msra.mxu0 0
          %592 = vmatprep.subr.bf16.mxu0 0
          %593 = vmatpush1.bf16.msra.mxu0 0
          %594 = vmatprep.subr.bf16.mxu0 0
          %595 = vmatpush1.bf16.msra.mxu0 0
          %596 = vmatprep.subr.bf16.mxu0 0
          %597 = vmatpush1.bf16.msra.mxu0 0
          %598 = vmatprep.subr.bf16.mxu0 0
          %599 = vmatpush1.bf16.msra.mxu0 0
          %600 = vmatprep.subr.bf16.mxu0 0
          %601 = vmatpush1.bf16.msra.mxu0 0
          %602 = vmatprep.subr.bf16.mxu0 %v545
          %603 = vmatpush1.bf16.msra.mxu0 %v542
          %604 = vmatprep.subr.bf16.mxu0 0
          %605 = vmatpush2.bf16.msra.mxu0 0
          %606 = vmatprep.subr.bf16.mxu0 0
          %607 = vmatpush2.bf16.msra.mxu0 0
          %608 = vmatprep.subr.bf16.mxu0 0
          %609 = vmatpush2.bf16.msra.mxu0 0
          %610 = vmatprep.subr.bf16.mxu0 0
          %611 = vmatpush2.bf16.msra.mxu0 0
          %612 = vmatprep.subr.bf16.mxu0 0
          %613 = vmatpush2.bf16.msra.mxu0 0
          %614 = vmatprep.subr.bf16.mxu0 0
          %615 = vmatpush2.bf16.msra.mxu0 0
          %616 = vmatprep.subr.bf16.mxu0 0
          %617 = vmatpush2.bf16.msra.mxu0 0
          %618 = vmatprep.subr.bf16.mxu0 0
          %619 = vmatpush2.bf16.msra.mxu0 0
          %620 = vmatprep.mubr.bf16.mxu0 0
          %621 = vmatmul.mubr.bf16.gmra.mxu0 %v532
          %v622 = vpop.f32.mrf.mxu0
          %v623 = vadd.f32 0.0, %v622
          %v624 = vpop.f32.mrf.mxu0
          %v625 = vadd.f32 0.0, %v624
          %v626 = vpop.f32.mrf.mxu0
          %v627 = vpop.f32.mrf.mxu0
          %628 = vdwg.mxu0
          %v629 = vadd.f32 %v506, %v582
          %v630 = vadd.f32 %v507, %v584
          %v631 = vadd.f32 %v508, %v623
          %v632 = vadd.f32 %v509, %v625
          %v633 = vld [vmem:[%s6] sm:$0xff]
          %635 = vset.pattern.permute.xlu0 0
          %636 = vperm.xlu0 %635, %v633
          %v637 = vpop.permute.xlu0 %636
          %v639 = vadd.f32 %v629, %v637
          %v640 = vadd.f32 %v630, %v637
          %v641 = vadd.f32 %v631, %v637
          %v642 = vadd.f32 %v632, %v637
          %v643 = vmax.f32 %v639, 0.0
          %v644 = vmax.f32 %v640, 0.0
          %v645 = vmax.f32 %v641, 0.0
          %v646 = vmax.f32 %v642, 0.0
          %647 = vst [vmem:[%s7] sm:$0xff] %v643
          %648 = vst [vmem:[%s7 + $0x8] sm:$0xff] %v644
          %649 = vst [vmem:[%s7 + $0x10] sm:$0xff] %v645
          %650 = vst [vmem:[%s7 + $0x18] sm:$0xff] %v646
        $region94: #{mcu_forward.5} parent=81 // pred_fallthru
          _
        // Predicated region
        $region95: #{mcu_forward.5} parent=81 // pred_check
          %p651 = pneg %p183
        $region96: #{mcu_forward.5} parent=81 // pred_check_branch
          %653 = sbr.rel (%p651) target = $region98
        $region97: #{mcu_forward.5} parent=81 // pred_region
          _
        $region98: #{mcu_forward.5} parent=81 // pred_fallthru
          _
        // Predicated region
        $region99: #{mcu_forward.5} parent=81 // pred_check
          %p654 = pneg %p183
        $region100: #{mcu_forward.5} parent=81 // pred_check_branch
          %656 = sbr.rel (%p654) target = $region102
        $region101: #{mcu_forward.5} parent=81 // pred_region
          _
        $region102: #{mcu_forward.5} parent=81 // pred_fallthru
          _
      $region82: #{mcu_forward.5} parent=5 // pred_fallthru
        _
      %p657 = scmp.le.s32.totalorder 2, %s13
      // Predicated region
      $region103: #{mcu_forward.5} parent=5 // pred_check
        %p658 = pneg %p657
      $region104: #{mcu_forward.5} parent=5 // pred_check_branch
        %660 = sbr.rel (%p658) target = $region106
      $region105: #{mcu_forward.5} parent=5 // pred_region
        %s661 = ssub.s32 %s13, 2
      $region106: #{mcu_forward.5} parent=5 // pred_fallthru
        _
    $region6: #{mcu_forward.5} parent=1 // loop_footer
      %s17 = sadd.s32 1, %s13
    $region7: #{mcu_forward.5} parent=1 // loop_footer_branch
      %12 = sbr.rel target = $region3
    $region8: #{mcu_forward.5} parent=1 // loop_exit
      _

</llo_original>
